<compile_context>
chip_gen: v5e
topology: v5e:2x2
jax: 0.10.0
libtpu: 0.0.40
codegen_flags: <defaults>
</compile_context>

<pallas_src>
from functools import partial

import jax
import jax.numpy as jnp
from jax.experimental import pallas as pl
from jax.experimental.pallas import tpu as pltpu


def _ceil_div(a, b):
    return -(-a // b)


# ---------------------------------------------------------------------------
# Static schedule: for every conv-transpose output phase (rh, rw) of the
# stride-s lattice, which GEMM taps overlap-add into it and which max-pool
# window offsets read it.  Everything here is plain Python ints.
# ---------------------------------------------------------------------------
def _build_phase_plan(Hin, Win, kH, kW, s, p, Ho, Wo, pool_k, pool_s,
                      Hpool, Wpool):
    if pool_s % s != 0:
        # TODO(synk): general pool strides need an explicit phase interleave.
        raise NotImplementedError("pool_stride must be a multiple of stride")
    q = pool_s // s
    plan = []
    for rh in range(s):
        ah = sorted({i // s for i in range(pool_k) if i % s == rh})
        if not ah:
            continue                       # this row-phase is never pooled
        ngh = _ceil_div(Ho - rh, s)
        for a in ah:
            if a + q * (Hpool - 1) >= ngh:
                raise NotImplementedError("unsupported pooling geometry (H)")
        for rw in range(s):
            aw = sorted({j // s for j in range(pool_k) if j % s == rw})
            if not aw:
                continue
            ngw = _ceil_div(Wo - rw, s)
            for c in aw:
                if c + q * (Wpool - 1) >= ngw:
                    raise NotImplementedError("unsupported pooling geometry (W)")
            taps = []
            for dy in range(kH):
                if (dy - p) % s != rh:
                    continue
                sh = (dy - p) // s
                g0, g1 = max(0, sh), min(ngh, Hin + sh)
                if g1 <= g0:
                    continue
                for dx in range(kW):
                    if (dx - p) % s != rw:
                        continue
                    sw = (dx - p) // s
                    h0, h1 = max(0, sw), min(ngw, Win + sw)
                    if h1 <= h0:
                        continue
                    full = (g0 == 0 and g1 == ngh and h0 == 0 and h1 == ngw)
                    taps.append(dict(t=dy * kW + dx,
                                     g0=g0, g1=g1, h0=h0, h1=h1,
                                     a0=g0 - sh, a1=g1 - sh,
                                     b0=h0 - sw, b1=h1 - sw,
                                     full=full))
            taps.sort(key=lambda d: not d["full"])   # full-coverage tap first
            plan.append(dict(ngh=ngh, ngw=ngw, ah=ah, aw=aw, taps=taps))
    return plan, q


# ---------------------------------------------------------------------------
# The fused kernel (runs once per batch group).
# ---------------------------------------------------------------------------
def _fused_kernel(x_ref, w_ref, b_ref, o_ref, ph_scr, *,
                  Hin, Win, K, L, use_mxu, q, Hpool, Wpool,
                  ht_min, ht_max, plan):
    # x_ref : (Hin*Win, K)        K = Bt*Cin    (one batch group)
    # w_ref : (K, nTaps*L)        L = Bt*Cout   (block-diagonal over the group)
    # b_ref : (1, L)  per-(batch, channel) bias, o_ref : (1, L)
    # ph_scr: (ngh_max, ngw_max, L) f32 VMEM scratch (ONE phase plane)
    xv = x_ref[...]
    wv = w_ref[...]
    if use_mxu:
        # Realistic contraction sizes: one f32 MXU pass (no bf16 demotion).
        cols = jnp.dot(xv, wv, preferred_element_type=jnp.float32)
    else:
        # Tiny contraction: exact-f32 VPU broadcast-FMA.
        cols = xv[:, 0:1] * wv[0:1, :]
        for k in range(1, K):
            cols = cols + xv[:, k:k + 1] * wv[k:k + 1, :]
    n_tot = wv.shape[-1]
    cols = cols.reshape(Hin, Win, n_tot)   # free: only splits the row dim

    pooled = None
    for ph in plan:
        ngh, ngw, taps = ph["ngh"], ph["ngw"], ph["taps"]
        if taps:
            if not taps[0]["full"]:
                # Rare geometry: no single tap covers the phase -> zero first.
                ph_scr[0:ngh, 0:ngw, :] = jnp.zeros((ngh, ngw, L), jnp.float32)
            for idx, tp in enumerate(taps):
                contrib = cols[tp["a0"]:tp["a1"], tp["b0"]:tp["b1"],
                               tp["t"] * L:(tp["t"] + 1) * L]
                if idx == 0 and taps[0]["full"]:
                    ph_scr[tp["g0"]:tp["g1"], tp["h0"]:tp["h1"], :] = contrib
                else:
                    ph_scr[tp["g0"]:tp["g1"], tp["h0"]:tp["h1"], :] += contrib
        # Fused max-pool: fold this phase into the running max immediately,
        # so only one phase plane is ever materialised.
        for a in ph["ah"]:
            for c in ph["aw"]:
                if not taps:
                    sl = jnp.zeros((Hpool, Wpool, L), jnp.float32)
                elif q == 1:
                    sl = ph_scr[a:a + Hpool, c:c + Wpool, :]
                else:
                    # TODO(synk): strided (pool_stride > stride) path untested.
                    sl = ph_scr[pl.ds(a, Hpool, q), pl.ds(c, Wpool, q), :]
                pooled = sl if pooled is None else jnp.maximum(pooled, sl)

    # Bias AFTER the max-pool is valid only because it is a per-(batch,channel)
    # constant: max_i(x_i + b) == max_i(x_i) + b.
    pooled = pooled + b_ref[...].reshape(1, 1, L)
    pooled = jnp.clip(pooled, ht_min, ht_max)                 # hardtanh
    ssum = jnp.sum(pooled, axis=(0, 1), keepdims=True)        # (1, 1, L)
    mean = ssum * (1.0 / float(Hpool * Wpool))
    o_ref[...] = jnp.tanh(mean).reshape(1, L)


# ---------------------------------------------------------------------------
# Wrapper: prepares lane-packed operands and launches the fused kernel.
# ---------------------------------------------------------------------------
def model_forward(x, weight, bias, stride, padding,
                  pool_k, pool_s, ht_min, ht_max):
    B, Cin, Hin, Win = x.shape
    Cin2, Cout, kH, kW = weight.shape
    assert Cin == Cin2
    s, p = int(stride), int(padding)
    Ho = (Hin - 1) * s - 2 * p + kH
    Wo = (Win - 1) * s - 2 * p + kW
    Hpool = (Ho - pool_k) // pool_s + 1
    Wpool = (Wo - pool_k) // pool_s + 1

    plan, q = _build_phase_plan(Hin, Win, kH, kW, s, p, Ho, Wo,
                                pool_k, pool_s, Hpool, Wpool)
    ngh_max = max(ph["ngh"] for ph in plan)
    ngw_max = max(ph["ngw"] for ph in plan)

    # ---- batch grouping: accumulator lanes carry (batch-in-group, Cout) -----
    bt_ideal = max(1, 128 // Cout)
    G = _ceil_div(B, bt_ideal)
    if G < 2 and B >= 2:
        G = 2                       # keep both v7x TensorCores busy
    Bt = _ceil_div(B, G)
    G = _ceil_div(B, Bt)
    Bpad = G * Bt
    K = Bt * Cin                    # GEMM contraction width
    L = Bt * Cout                   # lane width of accumulator / output
    nTaps = kH * kW
    Ntot = nTaps * L
    HW = Hin * Win
    use_mxu = K >= 16               # tiny contractions stay on the VPU

    xf = x.astype(jnp.float32)
    if Bpad != B:
        xf = jnp.pad(xf, ((0, Bpad - B), (0, 0), (0, 0), (0, 0)))
    # (Bpad, Cin, Hin, Win) -> (G, Hin*Win, Bt*Cin)
    xp = jnp.transpose(xf.reshape(G, Bt, Cin, HW), (0, 3, 1, 2)).reshape(G, HW, K)

    # Block-diagonal (over the batch group) weight, taps on contiguous lane
    # groups:  wfull[b*Cin+ci, t*L + b*Cout+co] = weight[ci, co, dy, dx].
    w_taps = jnp.transpose(weight.astype(jnp.float32),
                           (2, 3, 0, 1)).reshape(nTaps, Cin, Cout)
    eye_b = jnp.eye(Bt, dtype=jnp.float32)
    wfull = jnp.einsum('tio,bc->bitco', w_taps, eye_b).reshape(K, Ntot)

    bias_l = jnp.broadcast_to(bias.astype(jnp.float32)[None, :],
                              (Bt, Cout)).reshape(1, L)

    kern = partial(_fused_kernel, Hin=Hin, Win=Win, K=K, L=L, use_mxu=use_mxu,
                   q=q, Hpool=Hpool, Wpool=Wpool,
                   ht_min=float(ht_min), ht_max=float(ht_max), plan=plan)

    # Modest, footprint-derived scoped-VMEM limit (review: 64 MiB == all of
    # v7x per-core VMEM leaves no headroom).
    est = 4 * (2 * HW * K + K * Ntot + 2 * HW * Ntot
               + ngh_max * ngw_max * L + Hpool * Wpool * L + 8 * L)
    vmem_limit = int(max(8 * 2 ** 20, min(2 * est + (2 << 20), 32 * 2 ** 20)))

    out = pl.pallas_call(
        kern,
        out_shape=jax.ShapeDtypeStruct((G, 1, L), jnp.float32),
        grid=(G,),
        in_specs=[
            pl.BlockSpec((None, HW, K), lambda g: (g, 0, 0)),
            pl.BlockSpec((K, Ntot), lambda g: (0, 0)),
            pl.BlockSpec((1, L), lambda g: (0, 0)),
        ],
        out_specs=pl.BlockSpec((None, 1, L), lambda g: (g, 0, 0)),
        scratch_shapes=[pltpu.VMEM((ngh_max, ngw_max, L), jnp.float32)],
        compiler_params=pltpu.CompilerParams(
            dimension_semantics=("parallel",),
            vmem_limit_bytes=vmem_limit),
    )(xp, wfull, bias_l)

    out = out.reshape(Bpad, Cout)[:B]
    return out.reshape(B, Cout, 1, 1)


# ---------------------------------------------------------------------------
# Pure-JAX reference (numerical sanity check).
# ---------------------------------------------------------------------------
def reference_forward(x, weight, bias, stride, padding,
                      pool_k, pool_s, ht_min, ht_max):
    Cin, Cout, kH, kW = weight.shape
    w_flip = jnp.transpose(weight, (1, 0, 2, 3))[:, :, ::-1, ::-1]
    conv = jax.lax.conv_general_dilated(
        x, w_flip, window_strides=(1, 1),
        padding=[(kH - 1 - padding,) * 2, (kW - 1 - padding,) * 2],
        lhs_dilation=(stride, stride),
        dimension_numbers=("NCHW", "OIHW", "NCHW"),
        precision=jax.lax.Precision.HIGHEST,
    ) + bias[None, :, None, None]
    pooled = jax.lax.reduce_window(
        conv, -jnp.inf, jax.lax.max,
        (1, 1, pool_k, pool_k), (1, 1, pool_s, pool_s), "VALID")
    pooled = jnp.clip(pooled, ht_min, ht_max)
    return jnp.tanh(pooled.mean(axis=(2, 3), keepdims=True))


if __name__ == "__main__":
    B, Cin, Cout = 2, 4, 8
    H = W = 16
    ksize, stride, padding = 4, 2, 1
    pool_k, pool_s = 2, 2
    ht_min, ht_max = -1.0, 1.0

    key = jax.random.PRNGKey(0)
    k1, k2, k3 = jax.random.split(key, 3)
    x = jax.random.normal(k1, (B, Cin, H, W), jnp.float32)
    weight = jax.random.normal(k2, (Cin, Cout, ksize, ksize), jnp.float32) * 0.1
    bias = jax.random.normal(k3, (Cout,), jnp.float32) * 0.1

    y = model_forward(x, weight, bias, stride, padding,
                      pool_k, pool_s, ht_min, ht_max)
    y = jax.block_until_ready(y)
    assert y.shape == (B, Cout, 1, 1), y.shape

    y_ref = reference_forward(x, weight, bias, stride, padding,
                              pool_k, pool_s, ht_min, ht_max)
    err = float(jnp.max(jnp.abs(y - y_ref)))
    assert jnp.allclose(y, y_ref, atol=1e-3, rtol=1e-3), err

    print("KERNEL_OK")
</pallas_src>

<mosaic_0001>
module attributes {stable_mosaic.version = 11 : i64} {
  func.func @_fused_kernel(%arg0: i32, %arg1: memref<1x256x4xf32, #tpu.memory_space<vmem>>, %arg2: memref<4x128xf32, #tpu.memory_space<vmem>>, %arg3: memref<1x8xf32, #tpu.memory_space<vmem>>, %arg4: memref<1x1x8xf32, #tpu.memory_space<vmem>>, %arg5: memref<16x16x8xf32, #tpu.memory_space<vmem>>) attributes {dimension_semantics = [#tpu.dimension_semantics<parallel>], iteration_bounds = array<i64: 2>, scalar_prefetch = 0 : i64, scratch_operands = 1 : i64, tpu.core_type = #tpu.core_type<tc>, window_params = [{transform_indices = @transform_0, window_bounds = array<i64: 1, 256, 4>}, {pipeline_mode = #tpu.pipeline_mode<synchronous>, transform_indices = @transform_1, window_bounds = array<i64: 4, 128>}, {pipeline_mode = #tpu.pipeline_mode<synchronous>, transform_indices = @transform_2, window_bounds = array<i64: 1, 8>}, {transform_indices = @transform_3, window_bounds = array<i64: 1, 1, 8>}]} {
    %c0 = arith.constant 0 : index
    %c0_0 = arith.constant 0 : index
    %c0_1 = arith.constant 0 : index
    %0 = vector.load %arg1[%c0, %c0_0, %c0_1] : memref<1x256x4xf32, #tpu.memory_space<vmem>>, vector<1x256x4xf32>
    %1 = vector.shape_cast %0 : vector<1x256x4xf32> to vector<256x4xf32>
    %c0_2 = arith.constant 0 : index
    %c0_3 = arith.constant 0 : index
    %2 = vector.load %arg2[%c0_2, %c0_3] : memref<4x128xf32, #tpu.memory_space<vmem>>, vector<4x128xf32>
    %3 = vector.extract_strided_slice %1 {offsets = [0, 0], sizes = [256, 1], strides = [1, 1]} : vector<256x4xf32> to vector<256x1xf32>
    %4 = vector.extract_strided_slice %2 {offsets = [0, 0], sizes = [1, 128], strides = [1, 1]} : vector<4x128xf32> to vector<1x128xf32>
    %5 = vector.broadcast %3 : vector<256x1xf32> to vector<256x128xf32>
    %6 = vector.broadcast %4 : vector<1x128xf32> to vector<256x128xf32>
    %7 = arith.mulf %5, %6 : vector<256x128xf32>
    %8 = vector.extract_strided_slice %1 {offsets = [0, 1], sizes = [256, 1], strides = [1, 1]} : vector<256x4xf32> to vector<256x1xf32>
    %9 = vector.extract_strided_slice %2 {offsets = [1, 0], sizes = [1, 128], strides = [1, 1]} : vector<4x128xf32> to vector<1x128xf32>
    %10 = vector.broadcast %8 : vector<256x1xf32> to vector<256x128xf32>
    %11 = vector.broadcast %9 : vector<1x128xf32> to vector<256x128xf32>
    %12 = arith.mulf %10, %11 : vector<256x128xf32>
    %13 = arith.addf %7, %12 : vector<256x128xf32>
    %14 = vector.extract_strided_slice %1 {offsets = [0, 2], sizes = [256, 1], strides = [1, 1]} : vector<256x4xf32> to vector<256x1xf32>
    %15 = vector.extract_strided_slice %2 {offsets = [2, 0], sizes = [1, 128], strides = [1, 1]} : vector<4x128xf32> to vector<1x128xf32>
    %16 = vector.broadcast %14 : vector<256x1xf32> to vector<256x128xf32>
    %17 = vector.broadcast %15 : vector<1x128xf32> to vector<256x128xf32>
    %18 = arith.mulf %16, %17 : vector<256x128xf32>
    %19 = arith.addf %13, %18 : vector<256x128xf32>
    %20 = vector.extract_strided_slice %1 {offsets = [0, 3], sizes = [256, 1], strides = [1, 1]} : vector<256x4xf32> to vector<256x1xf32>
    %21 = vector.extract_strided_slice %2 {offsets = [3, 0], sizes = [1, 128], strides = [1, 1]} : vector<4x128xf32> to vector<1x128xf32>
    %22 = vector.broadcast %20 : vector<256x1xf32> to vector<256x128xf32>
    %23 = vector.broadcast %21 : vector<1x128xf32> to vector<256x128xf32>
    %24 = arith.mulf %22, %23 : vector<256x128xf32>
    %25 = arith.addf %19, %24 : vector<256x128xf32>
    %26 = vector.shape_cast %25 : vector<256x128xf32> to vector<16x16x128xf32>
    %27 = vector.extract_strided_slice %26 {offsets = [0, 0, 40], sizes = [16, 16, 8], strides = [1, 1, 1]} : vector<16x16x128xf32> to vector<16x16x8xf32>
    %c0_4 = arith.constant 0 : index
    %c0_5 = arith.constant 0 : index
    %c0_6 = arith.constant 0 : index
    %28 = vector.load %arg5[%c0_4, %c0_5, %c0_6] : memref<16x16x8xf32, #tpu.memory_space<vmem>>, vector<16x16x8xf32>
    tpu.vector_store %arg5[%c0_4, %c0_5, %c0_6], %27 {strides = array<i32>} : memref<16x16x8xf32, #tpu.memory_space<vmem>>, vector<16x16x8xf32>,
    %29 = vector.extract_strided_slice %26 {offsets = [0, 0, 56], sizes = [16, 15, 8], strides = [1, 1, 1]} : vector<16x16x128xf32> to vector<16x15x8xf32>
    %c0_7 = arith.constant 0 : index
    %c1 = arith.constant 1 : index
    %c0_8 = arith.constant 0 : index
    %30 = vector.load %arg5[%c0_7, %c1, %c0_8] : memref<16x16x8xf32, #tpu.memory_space<vmem>>, vector<16x15x8xf32>
    %31 = arith.addf %30, %29 : vector<16x15x8xf32>
    %c0_9 = arith.constant 0 : index
    %c1_10 = arith.constant 1 : index
    %c0_11 = arith.constant 0 : index
    %32 = vector.load %arg5[%c0_9, %c1_10, %c0_11] : memref<16x16x8xf32, #tpu.memory_space<vmem>>, vector<16x15x8xf32>
    tpu.vector_store %arg5[%c0_9, %c1_10, %c0_11], %31 {strides = array<i32>} : memref<16x16x8xf32, #tpu.memory_space<vmem>>, vector<16x15x8xf32>,
    %33 = vector.extract_strided_slice %26 {offsets = [0, 0, 104], sizes = [15, 16, 8], strides = [1, 1, 1]} : vector<16x16x128xf32> to vector<15x16x8xf32>
    %c1_12 = arith.constant 1 : index
    %c0_13 = arith.constant 0 : index
    %c0_14 = arith.constant 0 : index
    %34 = vector.load %arg5[%c1_12, %c0_13, %c0_14] : memref<16x16x8xf32, #tpu.memory_space<vmem>>, vector<15x16x8xf32>
    %35 = arith.addf %34, %33 : vector<15x16x8xf32>
    %c1_15 = arith.constant 1 : index
    %c0_16 = arith.constant 0 : index
    %c0_17 = arith.constant 0 : index
    %36 = vector.load %arg5[%c1_15, %c0_16, %c0_17] : memref<16x16x8xf32, #tpu.memory_space<vmem>>, vector<15x16x8xf32>
    tpu.vector_store %arg5[%c1_15, %c0_16, %c0_17], %35 {strides = array<i32>} : memref<16x16x8xf32, #tpu.memory_space<vmem>>, vector<15x16x8xf32>,
    %37 = vector.extract_strided_slice %26 {offsets = [0, 0, 120], sizes = [15, 15, 8], strides = [1, 1, 1]} : vector<16x16x128xf32> to vector<15x15x8xf32>
    %c1_18 = arith.constant 1 : index
    %c1_19 = arith.constant 1 : index
    %c0_20 = arith.constant 0 : index
    %38 = vector.load %arg5[%c1_18, %c1_19, %c0_20] : memref<16x16x8xf32, #tpu.memory_space<vmem>>, vector<15x15x8xf32>
    %39 = arith.addf %38, %37 : vector<15x15x8xf32>
    %c1_21 = arith.constant 1 : index
    %c1_22 = arith.constant 1 : index
    %c0_23 = arith.constant 0 : index
    %40 = vector.load %arg5[%c1_21, %c1_22, %c0_23] : memref<16x16x8xf32, #tpu.memory_space<vmem>>, vector<15x15x8xf32>
    tpu.vector_store %arg5[%c1_21, %c1_22, %c0_23], %39 {strides = array<i32>} : memref<16x16x8xf32, #tpu.memory_space<vmem>>, vector<15x15x8xf32>,
    %c0_24 = arith.constant 0 : index
    %c0_25 = arith.constant 0 : index
    %c0_26 = arith.constant 0 : index
    %41 = vector.load %arg5[%c0_24, %c0_25, %c0_26] : memref<16x16x8xf32, #tpu.memory_space<vmem>>, vector<16x16x8xf32>
    %42 = vector.extract_strided_slice %26 {offsets = [0, 0, 48], sizes = [16, 16, 8], strides = [1, 1, 1]} : vector<16x16x128xf32> to vector<16x16x8xf32>
    %c0_27 = arith.constant 0 : index
    %c0_28 = arith.constant 0 : index
    %c0_29 = arith.constant 0 : index
    %43 = vector.load %arg5[%c0_27, %c0_28, %c0_29] : memref<16x16x8xf32, #tpu.memory_space<vmem>>, vector<16x16x8xf32>
    tpu.vector_store %arg5[%c0_27, %c0_28, %c0_29], %42 {strides = array<i32>} : memref<16x16x8xf32, #tpu.memory_space<vmem>>, vector<16x16x8xf32>,
    %44 = vector.extract_strided_slice %26 {offsets = [0, 1, 32], sizes = [16, 15, 8], strides = [1, 1, 1]} : vector<16x16x128xf32> to vector<16x15x8xf32>
    %c0_30 = arith.constant 0 : index
    %c0_31 = arith.constant 0 : index
    %c0_32 = arith.constant 0 : index
    %45 = vector.load %arg5[%c0_30, %c0_31, %c0_32] : memref<16x16x8xf32, #tpu.memory_space<vmem>>, vector<16x15x8xf32>
    %46 = arith.addf %45, %44 : vector<16x15x8xf32>
    %c0_33 = arith.constant 0 : index
    %c0_34 = arith.constant 0 : index
    %c0_35 = arith.constant 0 : index
    %47 = vector.load %arg5[%c0_33, %c0_34, %c0_35] : memref<16x16x8xf32, #tpu.memory_space<vmem>>, vector<16x15x8xf32>
    tpu.vector_store %arg5[%c0_33, %c0_34, %c0_35], %46 {strides = array<i32>} : memref<16x16x8xf32, #tpu.memory_space<vmem>>, vector<16x15x8xf32>,
    %48 = vector.extract_strided_slice %26 {offsets = [0, 1, 96], sizes = [15, 15, 8], strides = [1, 1, 1]} : vector<16x16x128xf32> to vector<15x15x8xf32>
    %c1_36 = arith.constant 1 : index
    %c0_37 = arith.constant 0 : index
    %c0_38 = arith.constant 0 : index
    %49 = vector.load %arg5[%c1_36, %c0_37, %c0_38] : memref<16x16x8xf32, #tpu.memory_space<vmem>>, vector<15x15x8xf32>
    %50 = arith.addf %49, %48 : vector<15x15x8xf32>
    %c1_39 = arith.constant 1 : index
    %c0_40 = arith.constant 0 : index
    %c0_41 = arith.constant 0 : index
    %51 = vector.load %arg5[%c1_39, %c0_40, %c0_41] : memref<16x16x8xf32, #tpu.memory_space<vmem>>, vector<15x15x8xf32>
    tpu.vector_store %arg5[%c1_39, %c0_40, %c0_41], %50 {strides = array<i32>} : memref<16x16x8xf32, #tpu.memory_space<vmem>>, vector<15x15x8xf32>,
    %52 = vector.extract_strided_slice %26 {offsets = [0, 0, 112], sizes = [15, 16, 8], strides = [1, 1, 1]} : vector<16x16x128xf32> to vector<15x16x8xf32>
    %c1_42 = arith.constant 1 : index
    %c0_43 = arith.constant 0 : index
    %c0_44 = arith.constant 0 : index
    %53 = vector.load %arg5[%c1_42, %c0_43, %c0_44] : memref<16x16x8xf32, #tpu.memory_space<vmem>>, vector<15x16x8xf32>
    %54 = arith.addf %53, %52 : vector<15x16x8xf32>
    %c1_45 = arith.constant 1 : index
    %c0_46 = arith.constant 0 : index
    %c0_47 = arith.constant 0 : index
    %55 = vector.load %arg5[%c1_45, %c0_46, %c0_47] : memref<16x16x8xf32, #tpu.memory_space<vmem>>, vector<15x16x8xf32>
    tpu.vector_store %arg5[%c1_45, %c0_46, %c0_47], %54 {strides = array<i32>} : memref<16x16x8xf32, #tpu.memory_space<vmem>>, vector<15x16x8xf32>,
    %c0_48 = arith.constant 0 : index
    %c0_49 = arith.constant 0 : index
    %c0_50 = arith.constant 0 : index
    %56 = vector.load %arg5[%c0_48, %c0_49, %c0_50] : memref<16x16x8xf32, #tpu.memory_space<vmem>>, vector<16x16x8xf32>
    %57 = arith.maximumf %41, %56 : vector<16x16x8xf32>
    %58 = vector.extract_strided_slice %26 {offsets = [0, 0, 72], sizes = [16, 16, 8], strides = [1, 1, 1]} : vector<16x16x128xf32> to vector<16x16x8xf32>
    %c0_51 = arith.constant 0 : index
    %c0_52 = arith.constant 0 : index
    %c0_53 = arith.constant 0 : index
    %59 = vector.load %arg5[%c0_51, %c0_52, %c0_53] : memref<16x16x8xf32, #tpu.memory_space<vmem>>, vector<16x16x8xf32>
    tpu.vector_store %arg5[%c0_51, %c0_52, %c0_53], %58 {strides = array<i32>} : memref<16x16x8xf32, #tpu.memory_space<vmem>>, vector<16x16x8xf32>,
    %60 = vector.extract_strided_slice %26 {offsets = [1, 0, 8], sizes = [15, 16, 8], strides = [1, 1, 1]} : vector<16x16x128xf32> to vector<15x16x8xf32>
    %c0_54 = arith.constant 0 : index
    %c0_55 = arith.constant 0 : index
    %c0_56 = arith.constant 0 : index
    %61 = vector.load %arg5[%c0_54, %c0_55, %c0_56] : memref<16x16x8xf32, #tpu.memory_space<vmem>>, vector<15x16x8xf32>
    %62 = arith.addf %61, %60 : vector<15x16x8xf32>
    %c0_57 = arith.constant 0 : index
    %c0_58 = arith.constant 0 : index
    %c0_59 = arith.constant 0 : index
    %63 = vector.load %arg5[%c0_57, %c0_58, %c0_59] : memref<16x16x8xf32, #tpu.memory_space<vmem>>, vector<15x16x8xf32>
    tpu.vector_store %arg5[%c0_57, %c0_58, %c0_59], %62 {strides = array<i32>} : memref<16x16x8xf32, #tpu.memory_space<vmem>>, vector<15x16x8xf32>,
    %64 = vector.extract_strided_slice %26 {offsets = [1, 0, 24], sizes = [15, 15, 8], strides = [1, 1, 1]} : vector<16x16x128xf32> to vector<15x15x8xf32>
    %c0_60 = arith.constant 0 : index
    %c1_61 = arith.constant 1 : index
    %c0_62 = arith.constant 0 : index
    %65 = vector.load %arg5[%c0_60, %c1_61, %c0_62] : memref<16x16x8xf32, #tpu.memory_space<vmem>>, vector<15x15x8xf32>
    %66 = arith.addf %65, %64 : vector<15x15x8xf32>
    %c0_63 = arith.constant 0 : index
    %c1_64 = arith.constant 1 : index
    %c0_65 = arith.constant 0 : index
    %67 = vector.load %arg5[%c0_63, %c1_64, %c0_65] : memref<16x16x8xf32, #tpu.memory_space<vmem>>, vector<15x15x8xf32>
    tpu.vector_store %arg5[%c0_63, %c1_64, %c0_65], %66 {strides = array<i32>} : memref<16x16x8xf32, #tpu.memory_space<vmem>>, vector<15x15x8xf32>,
    %68 = vector.extract_strided_slice %26 {offsets = [0, 0, 88], sizes = [16, 15, 8], strides = [1, 1, 1]} : vector<16x16x128xf32> to vector<16x15x8xf32>
    %c0_66 = arith.constant 0 : index
    %c1_67 = arith.constant 1 : index
    %c0_68 = arith.constant 0 : index
    %69 = vector.load %arg5[%c0_66, %c1_67, %c0_68] : memref<16x16x8xf32, #tpu.memory_space<vmem>>, vector<16x15x8xf32>
    %70 = arith.addf %69, %68 : vector<16x15x8xf32>
    %c0_69 = arith.constant 0 : index
    %c1_70 = arith.constant 1 : index
    %c0_71 = arith.constant 0 : index
    %71 = vector.load %arg5[%c0_69, %c1_70, %c0_71] : memref<16x16x8xf32, #tpu.memory_space<vmem>>, vector<16x15x8xf32>
    tpu.vector_store %arg5[%c0_69, %c1_70, %c0_71], %70 {strides = array<i32>} : memref<16x16x8xf32, #tpu.memory_space<vmem>>, vector<16x15x8xf32>,
    %c0_72 = arith.constant 0 : index
    %c0_73 = arith.constant 0 : index
    %c0_74 = arith.constant 0 : index
    %72 = vector.load %arg5[%c0_72, %c0_73, %c0_74] : memref<16x16x8xf32, #tpu.memory_space<vmem>>, vector<16x16x8xf32>
    %73 = arith.maximumf %57, %72 : vector<16x16x8xf32>
    %74 = vector.extract_strided_slice %26 {offsets = [0, 0, 80], sizes = [16, 16, 8], strides = [1, 1, 1]} : vector<16x16x128xf32> to vector<16x16x8xf32>
    %c0_75 = arith.constant 0 : index
    %c0_76 = arith.constant 0 : index
    %c0_77 = arith.constant 0 : index
    %75 = vector.load %arg5[%c0_75, %c0_76, %c0_77] : memref<16x16x8xf32, #tpu.memory_space<vmem>>, vector<16x16x8xf32>
    tpu.vector_store %arg5[%c0_75, %c0_76, %c0_77], %74 {strides = array<i32>} : memref<16x16x8xf32, #tpu.memory_space<vmem>>, vector<16x16x8xf32>,
    %76 = vector.extract_strided_slice %26 {offsets = [1, 1, 0], sizes = [15, 15, 8], strides = [1, 1, 1]} : vector<16x16x128xf32> to vector<15x15x8xf32>
    %c0_78 = arith.constant 0 : index
    %c0_79 = arith.constant 0 : index
    %c0_80 = arith.constant 0 : index
    %77 = vector.load %arg5[%c0_78, %c0_79, %c0_80] : memref<16x16x8xf32, #tpu.memory_space<vmem>>, vector<15x15x8xf32>
    %78 = arith.addf %77, %76 : vector<15x15x8xf32>
    %c0_81 = arith.constant 0 : index
    %c0_82 = arith.constant 0 : index
    %c0_83 = arith.constant 0 : index
    %79 = vector.load %arg5[%c0_81, %c0_82, %c0_83] : memref<16x16x8xf32, #tpu.memory_space<vmem>>, vector<15x15x8xf32>
    tpu.vector_store %arg5[%c0_81, %c0_82, %c0_83], %78 {strides = array<i32>} : memref<16x16x8xf32, #tpu.memory_space<vmem>>, vector<15x15x8xf32>,
    %80 = vector.extract_strided_slice %26 {offsets = [1, 0, 16], sizes = [15, 16, 8], strides = [1, 1, 1]} : vector<16x16x128xf32> to vector<15x16x8xf32>
    %c0_84 = arith.constant 0 : index
    %c0_85 = arith.constant 0 : index
    %c0_86 = arith.constant 0 : index
    %81 = vector.load %arg5[%c0_84, %c0_85, %c0_86] : memref<16x16x8xf32, #tpu.memory_space<vmem>>, vector<15x16x8xf32>
    %82 = arith.addf %81, %80 : vector<15x16x8xf32>
    %c0_87 = arith.constant 0 : index
    %c0_88 = arith.constant 0 : index
    %c0_89 = arith.constant 0 : index
    %83 = vector.load %arg5[%c0_87, %c0_88, %c0_89] : memref<16x16x8xf32, #tpu.memory_space<vmem>>, vector<15x16x8xf32>
    tpu.vector_store %arg5[%c0_87, %c0_88, %c0_89], %82 {strides = array<i32>} : memref<16x16x8xf32, #tpu.memory_space<vmem>>, vector<15x16x8xf32>,
    %84 = vector.extract_strided_slice %26 {offsets = [0, 1, 64], sizes = [16, 15, 8], strides = [1, 1, 1]} : vector<16x16x128xf32> to vector<16x15x8xf32>
    %c0_90 = arith.constant 0 : index
    %c0_91 = arith.constant 0 : index
    %c0_92 = arith.constant 0 : index
    %85 = vector.load %arg5[%c0_90, %c0_91, %c0_92] : memref<16x16x8xf32, #tpu.memory_space<vmem>>, vector<16x15x8xf32>
    %86 = arith.addf %85, %84 : vector<16x15x8xf32>
    %c0_93 = arith.constant 0 : index
    %c0_94 = arith.constant 0 : index
    %c0_95 = arith.constant 0 : index
    %87 = vector.load %arg5[%c0_93, %c0_94, %c0_95] : memref<16x16x8xf32, #tpu.memory_space<vmem>>, vector<16x15x8xf32>
    tpu.vector_store %arg5[%c0_93, %c0_94, %c0_95], %86 {strides = array<i32>} : memref<16x16x8xf32, #tpu.memory_space<vmem>>, vector<16x15x8xf32>,
    %c0_96 = arith.constant 0 : index
    %c0_97 = arith.constant 0 : index
    %c0_98 = arith.constant 0 : index
    %88 = vector.load %arg5[%c0_96, %c0_97, %c0_98] : memref<16x16x8xf32, #tpu.memory_space<vmem>>, vector<16x16x8xf32>
    %89 = arith.maximumf %73, %88 : vector<16x16x8xf32>
    %c0_99 = arith.constant 0 : index
    %c0_100 = arith.constant 0 : index
    %90 = vector.load %arg3[%c0_99, %c0_100] : memref<1x8xf32, #tpu.memory_space<vmem>>, vector<1x8xf32>
    %91 = vector.shape_cast %90 : vector<1x8xf32> to vector<1x1x8xf32>
    %92 = vector.broadcast %91 : vector<1x1x8xf32> to vector<16x16x8xf32>
    %93 = arith.addf %89, %92 : vector<16x16x8xf32>
    %cst = arith.constant -1.000000e+00 : f32
    %cst_101 = arith.constant 1.000000e+00 : f32
    %94 = vector.broadcast %cst : f32 to vector<16x16x8xf32>
    %95 = arith.maximumf %94, %93 : vector<16x16x8xf32>
    %96 = vector.broadcast %cst_101 : f32 to vector<16x16x8xf32>
    %97 = arith.minimumf %96, %95 : vector<16x16x8xf32>
    %cst_102 = arith.constant dense<0.000000e+00> : vector<8xf32>
    %98 = vector.multi_reduction <add>, %97, %cst_102 [0, 1] : vector<16x16x8xf32> to vector<8xf32>
    %99 = vector.shape_cast %98 : vector<8xf32> to vector<1x1x8xf32>
    %cst_103 = arith.constant 3.906250e-03 : f32
    %100 = vector.broadcast %cst_103 : f32 to vector<1x1x8xf32>
    %101 = arith.mulf %99, %100 : vector<1x1x8xf32>
    %102 = math.tanh %101 : vector<1x1x8xf32>
    %103 = vector.shape_cast %102 : vector<1x1x8xf32> to vector<1x8xf32>
    %c0_104 = arith.constant 0 : index
    %c0_105 = arith.constant 0 : index
    %c0_106 = arith.constant 0 : index
    %104 = vector.load %arg4[%c0_104, %c0_105, %c0_106] : memref<1x1x8xf32, #tpu.memory_space<vmem>>, vector<1x1x8xf32>
    %105 = vector.shape_cast %104 : vector<1x1x8xf32> to vector<1x8xf32>
    %106 = vector.shape_cast %103 : vector<1x8xf32> to vector<1x1x8xf32>
    tpu.vector_store %arg4[%c0_104, %c0_105, %c0_106], %106 {strides = array<i32>} : memref<1x1x8xf32, #tpu.memory_space<vmem>>, vector<1x1x8xf32>,
    return
  }
  func.func @transform_0(%arg0: i32) -> (i32, i32, i32) {
    %c0_i32 = arith.constant 0 : i32
    %c0_i32_0 = arith.constant 0 : i32
    %c0_i32_1 = arith.constant 0 : i32
    return %arg0, %c0_i32, %c0_i32_0 : i32, i32, i32
  }
  func.func @transform_1(%arg0: i32) -> (i32, i32) {
    %c0_i32 = arith.constant 0 : i32
    %c0_i32_0 = arith.constant 0 : i32
    %c0_i32_1 = arith.constant 0 : i32
    return %c0_i32, %c0_i32_0 : i32, i32
  }
  func.func @transform_2(%arg0: i32) -> (i32, i32) {
    %c0_i32 = arith.constant 0 : i32
    %c0_i32_0 = arith.constant 0 : i32
    %c0_i32_1 = arith.constant 0 : i32
    return %c0_i32, %c0_i32_0 : i32, i32
  }
  func.func @transform_3(%arg0: i32) -> (i32, i32, i32) {
    %c0_i32 = arith.constant 0 : i32
    %c0_i32_0 = arith.constant 0 : i32
    %c0_i32_1 = arith.constant 0 : i32
    return %arg0, %c0_i32, %c0_i32_0 : i32, i32, i32
  }
}

</mosaic_0001>

<llo_original>
// kernel: tpu_custom_call.1
$region0: #{tpu_custom_call.1}
  #allocation0 [shape = 'u32[]', space=smem, size = 0x4, offset = 0x4, fixed_abs, tag = 'smem constant byte address 0x4 - core index']
  #allocation1 [shape = 'u32[72,128]{1,0:T(1,128)}', space=vmem, size = 0x9000, scoped, tag = 'internal scratch']
  #allocation2 [shape = 'f32[16,16,8]{2,1,0:T(8,128)}', space=vmem, size = 0x20000, scoped, tag = 'scratch operand']
  %s0 = inlined_call_operand.vmem [shape: f32[2,256,4], index: 0, kind: input, shape index: {}]
  %s1 = inlined_call_operand.vmem [shape: f32[4,128], index: 1, kind: input, shape index: {}]
  %s2 = inlined_call_operand.vmem [shape: f32[1,8], index: 2, kind: input, shape index: {}]
  %s3 = inlined_call_operand.hbm [shape: f32[2,1,8], index: 3, kind: output, shape index: {}]
  %s4 = sld [smem:[#allocation0]]
  $region45: #{tpu_custom_call.1} parent=0
    _
  %s6 = ssub.s32 1, %s4
  %s7 = scalar_select 0, %s6, %s4
  $region1: #{tpu_custom_call.1} parent=0
    #allocation3 [shape = 'u8[1024]{0}', space=vmem, size = 0x400, scoped, tag = 'output window, operand 0']
    #allocation4 [shape = 's32[2]{0}', space=sflag, size = 0x8, scoped, tag = 'scoped memory for tpu_custom_call.1']
    %8 = vsyncpa [#allocation4], 0
    %s9 = scalar_lea.sflag [#allocation4], 1
    %10 = vsyncpa %s9, 0
    loop: start=0, step=1, limit=4
    $region2: #{tpu_custom_call.1} parent=1 // loop_pre_header
      _
    $region3: #{tpu_custom_call.1} parent=1 // loop_header
      %s12 = sphi 0, %s16
      %p13 = scmp.ge.s32.totalorder %s12, 4
      %s22 = sphi 0, %s24
      %s25 = sphi 0, %s22
      %s26 = sphi 0, %s25
      %s42 = sphi 0, %s26
      %s46 = sphi 0, %s46
      %s48 = sphi 0, %s46
      %s49 = sphi 0, %s48
      %s63 = sphi 0, %s49
      %s67 = sphi 0, %s67
      %s69 = sphi 0, %s67
      %s70 = sphi 0, %s69
      %s84 = sphi 0, %s70
      %s90 = sphi 0, %s92
      %s93 = sphi 0, %s90
      %s94 = sphi 0, %s93
      %s110 = sphi 0, %s94
    $region4: #{tpu_custom_call.1} parent=1 // loop_header_branch
      %15 = sbr.rel (%p13) target = $region8
    $region5: #{tpu_custom_call.1} parent=1 // loop_body
      %s17 = ssub.s32 %s12, 1
      %s18 = ssub.s32 %s12, 2
      %s19 = sadd.s32 %s12, 1
      %s20 = ssub.s32 %s12, %s19
      %p21 = scmp.eq.s32.totalorder %s20, 0
      %s23 = sadd.s32 %s22, 1
      %s24 = scalar_select %p21, %s22, %s23
      %p27 = pneg %p21
      %p28 = scmp.eq.s32.totalorder %s12, 1
      %p29 = por %p27, %p28
      %p30 = scmp.ne.s32.totalorder %s22, %s25
      %p31 = scmp.eq.s32.totalorder %s12, 0
      %p32 = por %p30, %p31
      %p33 = scmp.ne.s32.totalorder %s22, %s25
      %p34 = scmp.eq.s32.totalorder %s17, 1
      %p35 = por %p33, %p34
      %p36 = scmp.ne.s32.totalorder %s25, %s26
      %p37 = scmp.eq.s32.totalorder %s17, 0
      %p38 = por %p36, %p37
      %p39 = scmp.ne.s32.totalorder %s25, %s26
      %p40 = scmp.eq.s32.totalorder %s18, 1
      %p41 = por %p39, %p40
      %p43 = scmp.ne.s32.totalorder %s26, %s42
      %p44 = scmp.eq.s32.totalorder %s18, 0
      %p45 = por %p43, %p44
      %s47 = sadd.s32 %s46, 1
      %p50 = scmp.eq.s32.totalorder %s12, 1
      %p51 = scmp.ne.s32.totalorder %s46, %s48
      %p52 = scmp.eq.s32.totalorder %s12, 0
      %p53 = por %p51, %p52
      %p54 = scmp.ne.s32.totalorder %s46, %s48
      %p55 = scmp.eq.s32.totalorder %s17, 1
      %p56 = por %p54, %p55
      %p57 = scmp.ne.s32.totalorder %s48, %s49
      %p58 = scmp.eq.s32.totalorder %s17, 0
      %p59 = por %p57, %p58
      %p60 = scmp.ne.s32.totalorder %s48, %s49
      %p61 = scmp.eq.s32.totalorder %s18, 1
      %p62 = por %p60, %p61
      %p64 = scmp.ne.s32.totalorder %s49, %s63
      %p65 = scmp.eq.s32.totalorder %s18, 0
      %p66 = por %p64, %p65
      %s68 = sadd.s32 %s67, 1
      %p71 = scmp.eq.s32.totalorder %s12, 1
      %p72 = scmp.ne.s32.totalorder %s67, %s69
      %p73 = scmp.eq.s32.totalorder %s12, 0
      %p74 = por %p72, %p73
      %p75 = scmp.ne.s32.totalorder %s67, %s69
      %p76 = scmp.eq.s32.totalorder %s17, 1
      %p77 = por %p75, %p76
      %p78 = scmp.ne.s32.totalorder %s69, %s70
      %p79 = scmp.eq.s32.totalorder %s17, 0
      %p80 = por %p78, %p79
      %p81 = scmp.ne.s32.totalorder %s69, %s70
      %p82 = scmp.eq.s32.totalorder %s18, 1
      %p83 = por %p81, %p82
      %p85 = scmp.ne.s32.totalorder %s70, %s84
      %p86 = scmp.eq.s32.totalorder %s18, 0
      %p87 = por %p85, %p86
      %s88 = ssub.s32 %s12, %s19
      %p89 = scmp.eq.s32.totalorder %s88, 0
      %s91 = sadd.s32 %s90, 1
      %s92 = scalar_select %p89, %s90, %s91
      %p95 = pneg %p89
      %p96 = scmp.eq.s32.totalorder %s12, 1
      %p97 = por %p95, %p96
      %p98 = scmp.ne.s32.totalorder %s90, %s93
      %p99 = scmp.eq.s32.totalorder %s12, 0
      %p100 = por %p98, %p99
      %p101 = scmp.ne.s32.totalorder %s90, %s93
      %p102 = scmp.eq.s32.totalorder %s17, 1
      %p103 = por %p101, %p102
      %p104 = scmp.ne.s32.totalorder %s93, %s94
      %p105 = scmp.eq.s32.totalorder %s17, 0
      %p106 = por %p104, %p105
      %p107 = scmp.ne.s32.totalorder %s93, %s94
      %p108 = scmp.eq.s32.totalorder %s18, 1
      %p109 = por %p107, %p108
      %p111 = scmp.ne.s32.totalorder %s94, %s110
      %p112 = scmp.eq.s32.totalorder %s18, 0
      %p113 = por %p111, %p112
      %p114 = scmp.le.s32.totalorder 1, %s12
      %p115 = scmp.lt.s32.totalorder %s12, 3
      %p116 = pnand %p114, %p115
      %p117 = pneg %p116
      // Predicated region
      $region9: #{tpu_custom_call.1} parent=5 // pred_check
        _
      $region10: #{tpu_custom_call.1} parent=5 // pred_check_branch
        %119 = sbr.rel (%p116) target = $region12
      $region11: #{tpu_custom_call.1} parent=5 // pred_region
        %s120 = ssub.s32 %s12, 1
        // Predicated region
        $region13: #{tpu_custom_call.1} parent=11 // pred_check
          %p121 = pneg %p59
        $region14: #{tpu_custom_call.1} parent=11 // pred_check_branch
          %123 = sbr.rel (%p121) target = $region16
        $region15: #{tpu_custom_call.1} parent=11 // pred_region
          _
        $region16: #{tpu_custom_call.1} parent=11 // pred_fallthru
          _
        // Predicated region
        $region17: #{tpu_custom_call.1} parent=11 // pred_check
          %p124 = pneg %p80
        $region18: #{tpu_custom_call.1} parent=11 // pred_check_branch
          %126 = sbr.rel (%p124) target = $region20
        $region19: #{tpu_custom_call.1} parent=11 // pred_region
          _
        $region20: #{tpu_custom_call.1} parent=11 // pred_fallthru
          _
      $region12: #{tpu_custom_call.1} parent=5 // pred_fallthru
        _
      %p127 = scmp.lt.s32.totalorder %s12, 2
      // Predicated region
      $region21: #{tpu_custom_call.1} parent=5 // pred_check
        %p128 = pneg %p127
      $region22: #{tpu_custom_call.1} parent=5 // pred_check_branch
        %130 = sbr.rel (%p128) target = $region24
      $region23: #{tpu_custom_call.1} parent=5 // pred_region
        // Predicated region
        $region25: #{tpu_custom_call.1} parent=23 // pred_check
          %p131 = pneg %p32
        $region26: #{tpu_custom_call.1} parent=23 // pred_check_branch
          %133 = sbr.rel (%p131) target = $region28
        $region27: #{tpu_custom_call.1} parent=23 // pred_region
          %p134 = scmp.lt.s32.totalorder %s12, 1
          %s135 = scalar_select %p134, %s12, 1
          %s136 = smul.addr %s135, 32
          %s137 = smul.addr %s136, 8
          %s138 = scalar_lea.vmem %s0, %s137
        $region28: #{tpu_custom_call.1} parent=23 // pred_fallthru
          _
      $region24: #{tpu_custom_call.1} parent=5 // pred_fallthru
        _
      %p139 = scmp.le.s32.totalorder 1, %s12
      %p140 = scmp.lt.s32.totalorder %s12, 3
      %p141 = pnand %p139, %p140
      %p142 = pneg %p141
      // Predicated region
      $region29: #{tpu_custom_call.1} parent=5 // pred_check
        _
      $region30: #{tpu_custom_call.1} parent=5 // pred_check_branch
        %144 = sbr.rel (%p141) target = $region32
      $region31: #{tpu_custom_call.1} parent=5 // pred_region
        %s145 = ssub.s32 %s12, 1
        %p146 = scmp.lt.s32.totalorder %s17, 1
        %s147 = scalar_select %p146, %s17, 1
        %s148 = smul.addr %s147, 32
        %s149 = smul.addr %s148, 8
        %s150 = scalar_lea.vmem %s0, %s149
        %p151 = pneg %p38
        %p152 = pneg %p35
        %p153 = pneg %p59
        %p154 = pneg %p56
        %p155 = pneg %p80
        %p156 = pneg %p77
        %p157 = pneg %p106
        %p158 = pneg %p103
        %s159 = sand.u32 %s93, 1
        %s160 = scalar_lea.sflag [#allocation4], %s159
        %s161 = sand.u32 %s93, 1
        %s162 = scalar_lea.vmem [#allocation3], %s161
        %p163 = scmp.lt.s32.totalorder %s17, 1
        %s164 = scalar_select %p163, %s17, 1
        %s165 = smul.addr %s164, 32
        %s166 = smul.addr %s165, 8
        %s167 = scalar_lea.vmem %s0, %s166
        %v168 = vld [vmem:[%s167] sm:$0xff]
        %v169 = vld [vmem:[%s167 + $0x8] sm:$0xff]
        %v170 = vld [vmem:[%s167 + $0x10] sm:$0xff]
        %v171 = vld [vmem:[%s167 + $0x18] sm:$0xff]
        %v172 = vld [vmem:[%s167 + $0x20] sm:$0xff]
        %v173 = vld [vmem:[%s167 + $0x28] sm:$0xff]
        %v174 = vld [vmem:[%s167 + $0x30] sm:$0xff]
        %v175 = vld [vmem:[%s167 + $0x38] sm:$0xff]
        %v176 = vld [vmem:[%s167 + $0x40] sm:$0xff]
        %v177 = vld [vmem:[%s167 + $0x48] sm:$0xff]
        %v178 = vld [vmem:[%s167 + $0x50] sm:$0xff]
        %v179 = vld [vmem:[%s167 + $0x58] sm:$0xff]
        %v180 = vld [vmem:[%s167 + $0x60] sm:$0xff]
        %v181 = vld [vmem:[%s167 + $0x68] sm:$0xff]
        %v182 = vld [vmem:[%s167 + $0x70] sm:$0xff]
        %v183 = vld [vmem:[%s167 + $0x78] sm:$0xff]
        %v184 = vld [vmem:[%s167 + $0x80] sm:$0xff]
        %v185 = vld [vmem:[%s167 + $0x88] sm:$0xff]
        %v186 = vld [vmem:[%s167 + $0x90] sm:$0xff]
        %v187 = vld [vmem:[%s167 + $0x98] sm:$0xff]
        %v188 = vld [vmem:[%s167 + $0xa0] sm:$0xff]
        %v189 = vld [vmem:[%s167 + $0xa8] sm:$0xff]
        %v190 = vld [vmem:[%s167 + $0xb0] sm:$0xff]
        %v191 = vld [vmem:[%s167 + $0xb8] sm:$0xff]
        %v192 = vld [vmem:[%s167 + $0xc0] sm:$0xff]
        %v193 = vld [vmem:[%s167 + $0xc8] sm:$0xff]
        %v194 = vld [vmem:[%s167 + $0xd0] sm:$0xff]
        %v195 = vld [vmem:[%s167 + $0xd8] sm:$0xff]
        %v196 = vld [vmem:[%s167 + $0xe0] sm:$0xff]
        %v197 = vld [vmem:[%s167 + $0xe8] sm:$0xff]
        %v198 = vld [vmem:[%s167 + $0xf0] sm:$0xff]
        %v199 = vld [vmem:[%s167 + $0xf8] sm:$0xff]
        %v200 = vld [vmem:[%s1] sm:$0xf]
        %202 = vset.pattern.permute.xlu0 0
        %203 = vperm.xlu0 %202, %v168
        %v204 = vpop.permute.xlu0 %203
        %207 = vset.pattern.permute.xlu0 0
        %208 = vperm.xlu0 %207, %v169
        %v209 = vpop.permute.xlu0 %208
        %212 = vset.pattern.permute.xlu0 0
        %213 = vperm.xlu0 %212, %v170
        %v214 = vpop.permute.xlu0 %213
        %217 = vset.pattern.permute.xlu0 0
        %218 = vperm.xlu0 %217, %v171
        %v219 = vpop.permute.xlu0 %218
        %222 = vset.pattern.permute.xlu0 0
        %223 = vperm.xlu0 %222, %v172
        %v224 = vpop.permute.xlu0 %223
        %227 = vset.pattern.permute.xlu0 0
        %228 = vperm.xlu0 %227, %v173
        %v229 = vpop.permute.xlu0 %228
        %232 = vset.pattern.permute.xlu0 0
        %233 = vperm.xlu0 %232, %v174
        %v234 = vpop.permute.xlu0 %233
        %237 = vset.pattern.permute.xlu0 0
        %238 = vperm.xlu0 %237, %v175
        %v239 = vpop.permute.xlu0 %238
        %242 = vset.pattern.permute.xlu0 0
        %243 = vperm.xlu0 %242, %v176
        %v244 = vpop.permute.xlu0 %243
        %247 = vset.pattern.permute.xlu0 0
        %248 = vperm.xlu0 %247, %v177
        %v249 = vpop.permute.xlu0 %248
        %252 = vset.pattern.permute.xlu0 0
        %253 = vperm.xlu0 %252, %v178
        %v254 = vpop.permute.xlu0 %253
        %257 = vset.pattern.permute.xlu0 0
        %258 = vperm.xlu0 %257, %v179
        %v259 = vpop.permute.xlu0 %258
        %262 = vset.pattern.permute.xlu0 0
        %263 = vperm.xlu0 %262, %v180
        %v264 = vpop.permute.xlu0 %263
        %267 = vset.pattern.permute.xlu0 0
        %268 = vperm.xlu0 %267, %v181
        %v269 = vpop.permute.xlu0 %268
        %272 = vset.pattern.permute.xlu0 0
        %273 = vperm.xlu0 %272, %v182
        %v274 = vpop.permute.xlu0 %273
        %277 = vset.pattern.permute.xlu0 0
        %278 = vperm.xlu0 %277, %v183
        %v279 = vpop.permute.xlu0 %278
        %282 = vset.pattern.permute.xlu0 0
        %283 = vperm.xlu0 %282, %v184
        %v284 = vpop.permute.xlu0 %283
        %287 = vset.pattern.permute.xlu0 0
        %288 = vperm.xlu0 %287, %v185
        %v289 = vpop.permute.xlu0 %288
        %292 = vset.pattern.permute.xlu0 0
        %293 = vperm.xlu0 %292, %v186
        %v294 = vpop.permute.xlu0 %293
        %297 = vset.pattern.permute.xlu0 0
        %298 = vperm.xlu0 %297, %v187
        %v299 = vpop.permute.xlu0 %298
        %302 = vset.pattern.permute.xlu0 0
        %303 = vperm.xlu0 %302, %v188
        %v304 = vpop.permute.xlu0 %303
        %307 = vset.pattern.permute.xlu0 0
        %308 = vperm.xlu0 %307, %v189
        %v309 = vpop.permute.xlu0 %308
        %312 = vset.pattern.permute.xlu0 0
        %313 = vperm.xlu0 %312, %v190
        %v314 = vpop.permute.xlu0 %313
        %317 = vset.pattern.permute.xlu0 0
        %318 = vperm.xlu0 %317, %v191
        %v319 = vpop.permute.xlu0 %318
        %322 = vset.pattern.permute.xlu0 0
        %323 = vperm.xlu0 %322, %v192
        %v324 = vpop.permute.xlu0 %323
        %327 = vset.pattern.permute.xlu0 0
        %328 = vperm.xlu0 %327, %v193
        %v329 = vpop.permute.xlu0 %328
        %332 = vset.pattern.permute.xlu0 0
        %333 = vperm.xlu0 %332, %v194
        %v334 = vpop.permute.xlu0 %333
        %337 = vset.pattern.permute.xlu0 0
        %338 = vperm.xlu0 %337, %v195
        %v339 = vpop.permute.xlu0 %338
        %342 = vset.pattern.permute.xlu0 0
        %343 = vperm.xlu0 %342, %v196
        %v344 = vpop.permute.xlu0 %343
        %347 = vset.pattern.permute.xlu0 0
        %348 = vperm.xlu0 %347, %v197
        %v349 = vpop.permute.xlu0 %348
        %352 = vset.pattern.permute.xlu0 0
        %353 = vperm.xlu0 %352, %v198
        %v354 = vpop.permute.xlu0 %353
        %357 = vset.pattern.permute.xlu0 0
        %358 = vperm.xlu0 %357, %v199
        %v359 = vpop.permute.xlu0 %358
        %v361 = vperm.slane %v200, 0
        %v362 = vmul.f32 %v204, %v361
        %v363 = vmul.f32 %v209, %v361
        %v364 = vmul.f32 %v214, %v361
        %v365 = vmul.f32 %v219, %v361
        %v366 = vmul.f32 %v224, %v361
        %v367 = vmul.f32 %v229, %v361
        %v368 = vmul.f32 %v234, %v361
        %v369 = vmul.f32 %v239, %v361
        %v370 = vmul.f32 %v244, %v361
        %v371 = vmul.f32 %v249, %v361
        %v372 = vmul.f32 %v254, %v361
        %v373 = vmul.f32 %v259, %v361
        %v374 = vmul.f32 %v264, %v361
        %v375 = vmul.f32 %v269, %v361
        %v376 = vmul.f32 %v274, %v361
        %v377 = vmul.f32 %v279, %v361
        %v378 = vmul.f32 %v284, %v361
        %v379 = vmul.f32 %v289, %v361
        %v380 = vmul.f32 %v294, %v361
        %v381 = vmul.f32 %v299, %v361
        %v382 = vmul.f32 %v304, %v361
        %v383 = vmul.f32 %v309, %v361
        %v384 = vmul.f32 %v314, %v361
        %v385 = vmul.f32 %v319, %v361
        %v386 = vmul.f32 %v324, %v361
        %v387 = vmul.f32 %v329, %v361
        %v388 = vmul.f32 %v334, %v361
        %v389 = vmul.f32 %v339, %v361
        %v390 = vmul.f32 %v344, %v361
        %v391 = vmul.f32 %v349, %v361
        %v392 = vmul.f32 %v354, %v361
        %v393 = vmul.f32 %v359, %v361
        %394 = vset.pattern.permute.xlu0 1
        %395 = vperm.xlu0 %394, %v168
        %v396 = vpop.permute.xlu0 %395
        %398 = vset.pattern.permute.xlu0 1
        %399 = vperm.xlu0 %398, %v169
        %v400 = vpop.permute.xlu0 %399
        %402 = vset.pattern.permute.xlu0 1
        %403 = vperm.xlu0 %402, %v170
        %v404 = vpop.permute.xlu0 %403
        %406 = vset.pattern.permute.xlu0 1
        %407 = vperm.xlu0 %406, %v171
        %v408 = vpop.permute.xlu0 %407
        %410 = vset.pattern.permute.xlu0 1
        %411 = vperm.xlu0 %410, %v172
        %v412 = vpop.permute.xlu0 %411
        %414 = vset.pattern.permute.xlu0 1
        %415 = vperm.xlu0 %414, %v173
        %v416 = vpop.permute.xlu0 %415
        %418 = vset.pattern.permute.xlu0 1
        %419 = vperm.xlu0 %418, %v174
        %v420 = vpop.permute.xlu0 %419
        %422 = vset.pattern.permute.xlu0 1
        %423 = vperm.xlu0 %422, %v175
        %v424 = vpop.permute.xlu0 %423
        %426 = vset.pattern.permute.xlu0 1
        %427 = vperm.xlu0 %426, %v176
        %v428 = vpop.permute.xlu0 %427
        %430 = vset.pattern.permute.xlu0 1
        %431 = vperm.xlu0 %430, %v177
        %v432 = vpop.permute.xlu0 %431
        %434 = vset.pattern.permute.xlu0 1
        %435 = vperm.xlu0 %434, %v178
        %v436 = vpop.permute.xlu0 %435
        %438 = vset.pattern.permute.xlu0 1
        %439 = vperm.xlu0 %438, %v179
        %v440 = vpop.permute.xlu0 %439
        %442 = vset.pattern.permute.xlu0 1
        %443 = vperm.xlu0 %442, %v180
        %v444 = vpop.permute.xlu0 %443
        %446 = vset.pattern.permute.xlu0 1
        %447 = vperm.xlu0 %446, %v181
        %v448 = vpop.permute.xlu0 %447
        %450 = vset.pattern.permute.xlu0 1
        %451 = vperm.xlu0 %450, %v182
        %v452 = vpop.permute.xlu0 %451
        %454 = vset.pattern.permute.xlu0 1
        %455 = vperm.xlu0 %454, %v183
        %v456 = vpop.permute.xlu0 %455
        %458 = vset.pattern.permute.xlu0 1
        %459 = vperm.xlu0 %458, %v184
        %v460 = vpop.permute.xlu0 %459
        %462 = vset.pattern.permute.xlu0 1
        %463 = vperm.xlu0 %462, %v185
        %v464 = vpop.permute.xlu0 %463
        %466 = vset.pattern.permute.xlu0 1
        %467 = vperm.xlu0 %466, %v186
        %v468 = vpop.permute.xlu0 %467
        %470 = vset.pattern.permute.xlu0 1
        %471 = vperm.xlu0 %470, %v187
        %v472 = vpop.permute.xlu0 %471
        %474 = vset.pattern.permute.xlu0 1
        %475 = vperm.xlu0 %474, %v188
        %v476 = vpop.permute.xlu0 %475
        %478 = vset.pattern.permute.xlu0 1
        %479 = vperm.xlu0 %478, %v189
        %v480 = vpop.permute.xlu0 %479
        %482 = vset.pattern.permute.xlu0 1
        %483 = vperm.xlu0 %482, %v190
        %v484 = vpop.permute.xlu0 %483
        %486 = vset.pattern.permute.xlu0 1
        %487 = vperm.xlu0 %486, %v191
        %v488 = vpop.permute.xlu0 %487
        %490 = vset.pattern.permute.xlu0 1
        %491 = vperm.xlu0 %490, %v192
        %v492 = vpop.permute.xlu0 %491
        %494 = vset.pattern.permute.xlu0 1
        %495 = vperm.xlu0 %494, %v193
        %v496 = vpop.permute.xlu0 %495
        %498 = vset.pattern.permute.xlu0 1
        %499 = vperm.xlu0 %498, %v194
        %v500 = vpop.permute.xlu0 %499
        %502 = vset.pattern.permute.xlu0 1
        %503 = vperm.xlu0 %502, %v195
        %v504 = vpop.permute.xlu0 %503
        %506 = vset.pattern.permute.xlu0 1
        %507 = vperm.xlu0 %506, %v196
        %v508 = vpop.permute.xlu0 %507
        %510 = vset.pattern.permute.xlu0 1
        %511 = vperm.xlu0 %510, %v197
        %v512 = vpop.permute.xlu0 %511
        %514 = vset.pattern.permute.xlu0 1
        %515 = vperm.xlu0 %514, %v198
        %v516 = vpop.permute.xlu0 %515
        %518 = vset.pattern.permute.xlu0 1
        %519 = vperm.xlu0 %518, %v199
        %v520 = vpop.permute.xlu0 %519
        %v522 = vperm.slane %v200, 1
        %v523 = vmul.f32 %v396, %v522
        %v524 = vmul.f32 %v400, %v522
        %v525 = vmul.f32 %v404, %v522
        %v526 = vmul.f32 %v408, %v522
        %v527 = vmul.f32 %v412, %v522
        %v528 = vmul.f32 %v416, %v522
        %v529 = vmul.f32 %v420, %v522
        %v530 = vmul.f32 %v424, %v522
        %v531 = vmul.f32 %v428, %v522
        %v532 = vmul.f32 %v432, %v522
        %v533 = vmul.f32 %v436, %v522
        %v534 = vmul.f32 %v440, %v522
        %v535 = vmul.f32 %v444, %v522
        %v536 = vmul.f32 %v448, %v522
        %v537 = vmul.f32 %v452, %v522
        %v538 = vmul.f32 %v456, %v522
        %v539 = vmul.f32 %v460, %v522
        %v540 = vmul.f32 %v464, %v522
        %v541 = vmul.f32 %v468, %v522
        %v542 = vmul.f32 %v472, %v522
        %v543 = vmul.f32 %v476, %v522
        %v544 = vmul.f32 %v480, %v522
        %v545 = vmul.f32 %v484, %v522
        %v546 = vmul.f32 %v488, %v522
        %v547 = vmul.f32 %v492, %v522
        %v548 = vmul.f32 %v496, %v522
        %v549 = vmul.f32 %v500, %v522
        %v550 = vmul.f32 %v504, %v522
        %v551 = vmul.f32 %v508, %v522
        %v552 = vmul.f32 %v512, %v522
        %v553 = vmul.f32 %v516, %v522
        %v554 = vmul.f32 %v520, %v522
        %v555 = vadd.f32 %v362, %v523
        %v556 = vadd.f32 %v363, %v524
        %v557 = vadd.f32 %v364, %v525
        %v558 = vadd.f32 %v365, %v526
        %v559 = vadd.f32 %v366, %v527
        %v560 = vadd.f32 %v367, %v528
        %v561 = vadd.f32 %v368, %v529
        %v562 = vadd.f32 %v369, %v530
        %v563 = vadd.f32 %v370, %v531
        %v564 = vadd.f32 %v371, %v532
        %v565 = vadd.f32 %v372, %v533
        %v566 = vadd.f32 %v373, %v534
        %v567 = vadd.f32 %v374, %v535
        %v568 = vadd.f32 %v375, %v536
        %v569 = vadd.f32 %v376, %v537
        %v570 = vadd.f32 %v377, %v538
        %v571 = vadd.f32 %v378, %v539
        %v572 = vadd.f32 %v379, %v540
        %v573 = vadd.f32 %v380, %v541
        %v574 = vadd.f32 %v381, %v542
        %v575 = vadd.f32 %v382, %v543
        %v576 = vadd.f32 %v383, %v544
        %v577 = vadd.f32 %v384, %v545
        %v578 = vadd.f32 %v385, %v546
        %v579 = vadd.f32 %v386, %v547
        %v580 = vadd.f32 %v387, %v548
        %v581 = vadd.f32 %v388, %v549
        %v582 = vadd.f32 %v389, %v550
        %v583 = vadd.f32 %v390, %v551
        %v584 = vadd.f32 %v391, %v552
        %v585 = vadd.f32 %v392, %v553
        %v586 = vadd.f32 %v393, %v554
        %587 = vset.pattern.permute.xlu0 2
        %588 = vperm.xlu0 %587, %v168
        %v589 = vpop.permute.xlu0 %588
        %591 = vset.pattern.permute.xlu0 2
        %592 = vperm.xlu0 %591, %v169
        %v593 = vpop.permute.xlu0 %592
        %595 = vset.pattern.permute.xlu0 2
        %596 = vperm.xlu0 %595, %v170
        %v597 = vpop.permute.xlu0 %596
        %599 = vset.pattern.permute.xlu0 2
        %600 = vperm.xlu0 %599, %v171
        %v601 = vpop.permute.xlu0 %600
        %603 = vset.pattern.permute.xlu0 2
        %604 = vperm.xlu0 %603, %v172
        %v605 = vpop.permute.xlu0 %604
        %607 = vset.pattern.permute.xlu0 2
        %608 = vperm.xlu0 %607, %v173
        %v609 = vpop.permute.xlu0 %608
        %611 = vset.pattern.permute.xlu0 2
        %612 = vperm.xlu0 %611, %v174
        %v613 = vpop.permute.xlu0 %612
        %615 = vset.pattern.permute.xlu0 2
        %616 = vperm.xlu0 %615, %v175
        %v617 = vpop.permute.xlu0 %616
        %619 = vset.pattern.permute.xlu0 2
        %620 = vperm.xlu0 %619, %v176
        %v621 = vpop.permute.xlu0 %620
        %623 = vset.pattern.permute.xlu0 2
        %624 = vperm.xlu0 %623, %v177
        %v625 = vpop.permute.xlu0 %624
        %627 = vset.pattern.permute.xlu0 2
        %628 = vperm.xlu0 %627, %v178
        %v629 = vpop.permute.xlu0 %628
        %631 = vset.pattern.permute.xlu0 2
        %632 = vperm.xlu0 %631, %v179
        %v633 = vpop.permute.xlu0 %632
        %635 = vset.pattern.permute.xlu0 2
        %636 = vperm.xlu0 %635, %v180
        %v637 = vpop.permute.xlu0 %636
        %639 = vset.pattern.permute.xlu0 2
        %640 = vperm.xlu0 %639, %v181
        %v641 = vpop.permute.xlu0 %640
        %643 = vset.pattern.permute.xlu0 2
        %644 = vperm.xlu0 %643, %v182
        %v645 = vpop.permute.xlu0 %644
        %647 = vset.pattern.permute.xlu0 2
        %648 = vperm.xlu0 %647, %v183
        %v649 = vpop.permute.xlu0 %648
        %651 = vset.pattern.permute.xlu0 2
        %652 = vperm.xlu0 %651, %v184
        %v653 = vpop.permute.xlu0 %652
        %655 = vset.pattern.permute.xlu0 2
        %656 = vperm.xlu0 %655, %v185
        %v657 = vpop.permute.xlu0 %656
        %659 = vset.pattern.permute.xlu0 2
        %660 = vperm.xlu0 %659, %v186
        %v661 = vpop.permute.xlu0 %660
        %663 = vset.pattern.permute.xlu0 2
        %664 = vperm.xlu0 %663, %v187
        %v665 = vpop.permute.xlu0 %664
        %667 = vset.pattern.permute.xlu0 2
        %668 = vperm.xlu0 %667, %v188
        %v669 = vpop.permute.xlu0 %668
        %671 = vset.pattern.permute.xlu0 2
        %672 = vperm.xlu0 %671, %v189
        %v673 = vpop.permute.xlu0 %672
        %675 = vset.pattern.permute.xlu0 2
        %676 = vperm.xlu0 %675, %v190
        %v677 = vpop.permute.xlu0 %676
        %679 = vset.pattern.permute.xlu0 2
        %680 = vperm.xlu0 %679, %v191
        %v681 = vpop.permute.xlu0 %680
        %683 = vset.pattern.permute.xlu0 2
        %684 = vperm.xlu0 %683, %v192
        %v685 = vpop.permute.xlu0 %684
        %687 = vset.pattern.permute.xlu0 2
        %688 = vperm.xlu0 %687, %v193
        %v689 = vpop.permute.xlu0 %688
        %691 = vset.pattern.permute.xlu0 2
        %692 = vperm.xlu0 %691, %v194
        %v693 = vpop.permute.xlu0 %692
        %695 = vset.pattern.permute.xlu0 2
        %696 = vperm.xlu0 %695, %v195
        %v697 = vpop.permute.xlu0 %696
        %699 = vset.pattern.permute.xlu0 2
        %700 = vperm.xlu0 %699, %v196
        %v701 = vpop.permute.xlu0 %700
        %703 = vset.pattern.permute.xlu0 2
        %704 = vperm.xlu0 %703, %v197
        %v705 = vpop.permute.xlu0 %704
        %707 = vset.pattern.permute.xlu0 2
        %708 = vperm.xlu0 %707, %v198
        %v709 = vpop.permute.xlu0 %708
        %711 = vset.pattern.permute.xlu0 2
        %712 = vperm.xlu0 %711, %v199
        %v713 = vpop.permute.xlu0 %712
        %v715 = vperm.slane %v200, 2
        %v716 = vmul.f32 %v589, %v715
        %v717 = vmul.f32 %v593, %v715
        %v718 = vmul.f32 %v597, %v715
        %v719 = vmul.f32 %v601, %v715
        %v720 = vmul.f32 %v605, %v715
        %v721 = vmul.f32 %v609, %v715
        %v722 = vmul.f32 %v613, %v715
        %v723 = vmul.f32 %v617, %v715
        %v724 = vmul.f32 %v621, %v715
        %v725 = vmul.f32 %v625, %v715
        %v726 = vmul.f32 %v629, %v715
        %v727 = vmul.f32 %v633, %v715
        %v728 = vmul.f32 %v637, %v715
        %v729 = vmul.f32 %v641, %v715
        %v730 = vmul.f32 %v645, %v715
        %v731 = vmul.f32 %v649, %v715
        %v732 = vmul.f32 %v653, %v715
        %v733 = vmul.f32 %v657, %v715
        %v734 = vmul.f32 %v661, %v715
        %v735 = vmul.f32 %v665, %v715
        %v736 = vmul.f32 %v669, %v715
        %v737 = vmul.f32 %v673, %v715
        %v738 = vmul.f32 %v677, %v715
        %v739 = vmul.f32 %v681, %v715
        %v740 = vmul.f32 %v685, %v715
        %v741 = vmul.f32 %v689, %v715
        %v742 = vmul.f32 %v693, %v715
        %v743 = vmul.f32 %v697, %v715
        %v744 = vmul.f32 %v701, %v715
        %v745 = vmul.f32 %v705, %v715
        %v746 = vmul.f32 %v709, %v715
        %v747 = vmul.f32 %v713, %v715
        %v748 = vadd.f32 %v555, %v716
        %v749 = vadd.f32 %v556, %v717
        %v750 = vadd.f32 %v557, %v718
        %v751 = vadd.f32 %v558, %v719
        %v752 = vadd.f32 %v559, %v720
        %v753 = vadd.f32 %v560, %v721
        %v754 = vadd.f32 %v561, %v722
        %v755 = vadd.f32 %v562, %v723
        %v756 = vadd.f32 %v563, %v724
        %v757 = vadd.f32 %v564, %v725
        %v758 = vadd.f32 %v565, %v726
        %v759 = vadd.f32 %v566, %v727
        %v760 = vadd.f32 %v567, %v728
        %v761 = vadd.f32 %v568, %v729
        %v762 = vadd.f32 %v569, %v730
        %v763 = vadd.f32 %v570, %v731
        %v764 = vadd.f32 %v571, %v732
        %v765 = vadd.f32 %v572, %v733
        %v766 = vadd.f32 %v573, %v734
        %v767 = vadd.f32 %v574, %v735
        %v768 = vadd.f32 %v575, %v736
        %v769 = vadd.f32 %v576, %v737
        %v770 = vadd.f32 %v577, %v738
        %v771 = vadd.f32 %v578, %v739
        %v772 = vadd.f32 %v579, %v740
        %v773 = vadd.f32 %v580, %v741
        %v774 = vadd.f32 %v581, %v742
        %v775 = vadd.f32 %v582, %v743
        %v776 = vadd.f32 %v583, %v744
        %v777 = vadd.f32 %v584, %v745
        %v778 = vadd.f32 %v585, %v746
        %v779 = vadd.f32 %v586, %v747
        %780 = vset.pattern.permute.xlu0 3
        %781 = vperm.xlu0 %780, %v168
        %v782 = vpop.permute.xlu0 %781
        %784 = vset.pattern.permute.xlu0 3
        %785 = vperm.xlu0 %784, %v169
        %v786 = vpop.permute.xlu0 %785
        %788 = vset.pattern.permute.xlu0 3
        %789 = vperm.xlu0 %788, %v170
        %v790 = vpop.permute.xlu0 %789
        %792 = vset.pattern.permute.xlu0 3
        %793 = vperm.xlu0 %792, %v171
        %v794 = vpop.permute.xlu0 %793
        %796 = vset.pattern.permute.xlu0 3
        %797 = vperm.xlu0 %796, %v172
        %v798 = vpop.permute.xlu0 %797
        %800 = vset.pattern.permute.xlu0 3
        %801 = vperm.xlu0 %800, %v173
        %v802 = vpop.permute.xlu0 %801
        %804 = vset.pattern.permute.xlu0 3
        %805 = vperm.xlu0 %804, %v174
        %v806 = vpop.permute.xlu0 %805
        %808 = vset.pattern.permute.xlu0 3
        %809 = vperm.xlu0 %808, %v175
        %v810 = vpop.permute.xlu0 %809
        %812 = vset.pattern.permute.xlu0 3
        %813 = vperm.xlu0 %812, %v176
        %v814 = vpop.permute.xlu0 %813
        %816 = vset.pattern.permute.xlu0 3
        %817 = vperm.xlu0 %816, %v177
        %v818 = vpop.permute.xlu0 %817
        %820 = vset.pattern.permute.xlu0 3
        %821 = vperm.xlu0 %820, %v178
        %v822 = vpop.permute.xlu0 %821
        %824 = vset.pattern.permute.xlu0 3
        %825 = vperm.xlu0 %824, %v179
        %v826 = vpop.permute.xlu0 %825
        %828 = vset.pattern.permute.xlu0 3
        %829 = vperm.xlu0 %828, %v180
        %v830 = vpop.permute.xlu0 %829
        %832 = vset.pattern.permute.xlu0 3
        %833 = vperm.xlu0 %832, %v181
        %v834 = vpop.permute.xlu0 %833
        %836 = vset.pattern.permute.xlu0 3
        %837 = vperm.xlu0 %836, %v182
        %v838 = vpop.permute.xlu0 %837
        %840 = vset.pattern.permute.xlu0 3
        %841 = vperm.xlu0 %840, %v183
        %v842 = vpop.permute.xlu0 %841
        %844 = vset.pattern.permute.xlu0 3
        %845 = vperm.xlu0 %844, %v184
        %v846 = vpop.permute.xlu0 %845
        %848 = vset.pattern.permute.xlu0 3
        %849 = vperm.xlu0 %848, %v185
        %v850 = vpop.permute.xlu0 %849
        %852 = vset.pattern.permute.xlu0 3
        %853 = vperm.xlu0 %852, %v186
        %v854 = vpop.permute.xlu0 %853
        %856 = vset.pattern.permute.xlu0 3
        %857 = vperm.xlu0 %856, %v187
        %v858 = vpop.permute.xlu0 %857
        %860 = vset.pattern.permute.xlu0 3
        %861 = vperm.xlu0 %860, %v188
        %v862 = vpop.permute.xlu0 %861
        %864 = vset.pattern.permute.xlu0 3
        %865 = vperm.xlu0 %864, %v189
        %v866 = vpop.permute.xlu0 %865
        %868 = vset.pattern.permute.xlu0 3
        %869 = vperm.xlu0 %868, %v190
        %v870 = vpop.permute.xlu0 %869
        %872 = vset.pattern.permute.xlu0 3
        %873 = vperm.xlu0 %872, %v191
        %v874 = vpop.permute.xlu0 %873
        %876 = vset.pattern.permute.xlu0 3
        %877 = vperm.xlu0 %876, %v192
        %v878 = vpop.permute.xlu0 %877
        %880 = vset.pattern.permute.xlu0 3
        %881 = vperm.xlu0 %880, %v193
        %v882 = vpop.permute.xlu0 %881
        %884 = vset.pattern.permute.xlu0 3
        %885 = vperm.xlu0 %884, %v194
        %v886 = vpop.permute.xlu0 %885
        %888 = vset.pattern.permute.xlu0 3
        %889 = vperm.xlu0 %888, %v195
        %v890 = vpop.permute.xlu0 %889
        %892 = vset.pattern.permute.xlu0 3
        %893 = vperm.xlu0 %892, %v196
        %v894 = vpop.permute.xlu0 %893
        %896 = vset.pattern.permute.xlu0 3
        %897 = vperm.xlu0 %896, %v197
        %v898 = vpop.permute.xlu0 %897
        %900 = vset.pattern.permute.xlu0 3
        %901 = vperm.xlu0 %900, %v198
        %v902 = vpop.permute.xlu0 %901
        %904 = vset.pattern.permute.xlu0 3
        %905 = vperm.xlu0 %904, %v199
        %v906 = vpop.permute.xlu0 %905
        %v908 = vperm.slane %v200, 3
        %v909 = vmul.f32 %v782, %v908
        %v910 = vmul.f32 %v786, %v908
        %v911 = vmul.f32 %v790, %v908
        %v912 = vmul.f32 %v794, %v908
        %v913 = vmul.f32 %v798, %v908
        %v914 = vmul.f32 %v802, %v908
        %v915 = vmul.f32 %v806, %v908
        %v916 = vmul.f32 %v810, %v908
        %v917 = vmul.f32 %v814, %v908
        %v918 = vmul.f32 %v818, %v908
        %v919 = vmul.f32 %v822, %v908
        %v920 = vmul.f32 %v826, %v908
        %v921 = vmul.f32 %v830, %v908
        %v922 = vmul.f32 %v834, %v908
        %v923 = vmul.f32 %v838, %v908
        %v924 = vmul.f32 %v842, %v908
        %v925 = vmul.f32 %v846, %v908
        %v926 = vmul.f32 %v850, %v908
        %v927 = vmul.f32 %v854, %v908
        %v928 = vmul.f32 %v858, %v908
        %v929 = vmul.f32 %v862, %v908
        %v930 = vmul.f32 %v866, %v908
        %v931 = vmul.f32 %v870, %v908
        %v932 = vmul.f32 %v874, %v908
        %v933 = vmul.f32 %v878, %v908
        %v934 = vmul.f32 %v882, %v908
        %v935 = vmul.f32 %v886, %v908
        %v936 = vmul.f32 %v890, %v908
        %v937 = vmul.f32 %v894, %v908
        %v938 = vmul.f32 %v898, %v908
        %v939 = vmul.f32 %v902, %v908
        %v940 = vmul.f32 %v906, %v908
        %v941 = vadd.f32 %v748, %v909
        %v942 = vadd.f32 %v749, %v910
        %v943 = vadd.f32 %v750, %v911
        %v944 = vadd.f32 %v751, %v912
        %v945 = vadd.f32 %v752, %v913
        %v946 = vadd.f32 %v753, %v914
        %v947 = vadd.f32 %v754, %v915
        %v948 = vadd.f32 %v755, %v916
        %v949 = vadd.f32 %v756, %v917
        %v950 = vadd.f32 %v757, %v918
        %v951 = vadd.f32 %v758, %v919
        %v952 = vadd.f32 %v759, %v920
        %v953 = vadd.f32 %v760, %v921
        %v954 = vadd.f32 %v761, %v922
        %v955 = vadd.f32 %v762, %v923
        %v956 = vadd.f32 %v763, %v924
        %v957 = vadd.f32 %v764, %v925
        %v958 = vadd.f32 %v765, %v926
        %v959 = vadd.f32 %v766, %v927
        %v960 = vadd.f32 %v767, %v928
        %v961 = vadd.f32 %v768, %v929
        %v962 = vadd.f32 %v769, %v930
        %v963 = vadd.f32 %v770, %v931
        %v964 = vadd.f32 %v771, %v932
        %v965 = vadd.f32 %v772, %v933
        %v966 = vadd.f32 %v773, %v934
        %v967 = vadd.f32 %v774, %v935
        %v968 = vadd.f32 %v775, %v936
        %v969 = vadd.f32 %v776, %v937
        %v970 = vadd.f32 %v777, %v938
        %v971 = vadd.f32 %v778, %v939
        %v972 = vadd.f32 %v779, %v940
        %1005 = vrot.lane.b32.xlu0 %v941, 88
        %v1006 = vpop.permute.xlu0 %1005
        %1007 = vrot.lane.b32.xlu0 %v942, 88
        %v1008 = vpop.permute.xlu0 %1007
        %1009 = vrot.lane.b32.xlu0 %v943, 88
        %v1010 = vpop.permute.xlu0 %1009
        %1011 = vrot.lane.b32.xlu0 %v944, 88
        %v1012 = vpop.permute.xlu0 %1011
        %1013 = vrot.lane.b32.xlu0 %v945, 88
        %v1014 = vpop.permute.xlu0 %1013
        %1015 = vrot.lane.b32.xlu0 %v946, 88
        %v1016 = vpop.permute.xlu0 %1015
        %1017 = vrot.lane.b32.xlu0 %v947, 88
        %v1018 = vpop.permute.xlu0 %1017
        %1019 = vrot.lane.b32.xlu0 %v948, 88
        %v1020 = vpop.permute.xlu0 %1019
        %1021 = vrot.lane.b32.xlu0 %v949, 88
        %v1022 = vpop.permute.xlu0 %1021
        %1023 = vrot.lane.b32.xlu0 %v950, 88
        %v1024 = vpop.permute.xlu0 %1023
        %1025 = vrot.lane.b32.xlu0 %v951, 88
        %v1026 = vpop.permute.xlu0 %1025
        %1027 = vrot.lane.b32.xlu0 %v952, 88
        %v1028 = vpop.permute.xlu0 %1027
        %1029 = vrot.lane.b32.xlu0 %v953, 88
        %v1030 = vpop.permute.xlu0 %1029
        %1031 = vrot.lane.b32.xlu0 %v954, 88
        %v1032 = vpop.permute.xlu0 %1031
        %1033 = vrot.lane.b32.xlu0 %v955, 88
        %v1034 = vpop.permute.xlu0 %1033
        %1035 = vrot.lane.b32.xlu0 %v956, 88
        %v1036 = vpop.permute.xlu0 %1035
        %1037 = vrot.lane.b32.xlu0 %v957, 88
        %v1038 = vpop.permute.xlu0 %1037
        %1039 = vrot.lane.b32.xlu0 %v958, 88
        %v1040 = vpop.permute.xlu0 %1039
        %1041 = vrot.lane.b32.xlu0 %v959, 88
        %v1042 = vpop.permute.xlu0 %1041
        %1043 = vrot.lane.b32.xlu0 %v960, 88
        %v1044 = vpop.permute.xlu0 %1043
        %1045 = vrot.lane.b32.xlu0 %v961, 88
        %v1046 = vpop.permute.xlu0 %1045
        %1047 = vrot.lane.b32.xlu0 %v962, 88
        %v1048 = vpop.permute.xlu0 %1047
        %1049 = vrot.lane.b32.xlu0 %v963, 88
        %v1050 = vpop.permute.xlu0 %1049
        %1051 = vrot.lane.b32.xlu0 %v964, 88
        %v1052 = vpop.permute.xlu0 %1051
        %1053 = vrot.lane.b32.xlu0 %v965, 88
        %v1054 = vpop.permute.xlu0 %1053
        %1055 = vrot.lane.b32.xlu0 %v966, 88
        %v1056 = vpop.permute.xlu0 %1055
        %1057 = vrot.lane.b32.xlu0 %v967, 88
        %v1058 = vpop.permute.xlu0 %1057
        %1059 = vrot.lane.b32.xlu0 %v968, 88
        %v1060 = vpop.permute.xlu0 %1059
        %1061 = vrot.lane.b32.xlu0 %v969, 88
        %v1062 = vpop.permute.xlu0 %1061
        %1063 = vrot.lane.b32.xlu0 %v970, 88
        %v1064 = vpop.permute.xlu0 %1063
        %1065 = vrot.lane.b32.xlu0 %v971, 88
        %v1066 = vpop.permute.xlu0 %1065
        %1067 = vrot.lane.b32.xlu0 %v972, 88
        %v1068 = vpop.permute.xlu0 %1067
        %vm1101 = vcmask 64512
        %1102 = vst.msk [vmem:[#allocation2] sm:$0xff] %vm1101, %v1006
        %1103 = vst.msk [vmem:[#allocation2 + $0x8] sm:$0xff] %vm1101, %v1008
        %1104 = vst.msk [vmem:[#allocation2 + $0x10] sm:$0xff] %vm1101, %v1010
        %1105 = vst.msk [vmem:[#allocation2 + $0x18] sm:$0xff] %vm1101, %v1012
        %1106 = vst.msk [vmem:[#allocation2 + $0x20] sm:$0xff] %vm1101, %v1014
        %1107 = vst.msk [vmem:[#allocation2 + $0x28] sm:$0xff] %vm1101, %v1016
        %1108 = vst.msk [vmem:[#allocation2 + $0x30] sm:$0xff] %vm1101, %v1018
        %1109 = vst.msk [vmem:[#allocation2 + $0x38] sm:$0xff] %vm1101, %v1020
        %1110 = vst.msk [vmem:[#allocation2 + $0x40] sm:$0xff] %vm1101, %v1022
        %1111 = vst.msk [vmem:[#allocation2 + $0x48] sm:$0xff] %vm1101, %v1024
        %1112 = vst.msk [vmem:[#allocation2 + $0x50] sm:$0xff] %vm1101, %v1026
        %1113 = vst.msk [vmem:[#allocation2 + $0x58] sm:$0xff] %vm1101, %v1028
        %1114 = vst.msk [vmem:[#allocation2 + $0x60] sm:$0xff] %vm1101, %v1030
        %1115 = vst.msk [vmem:[#allocation2 + $0x68] sm:$0xff] %vm1101, %v1032
        %1116 = vst.msk [vmem:[#allocation2 + $0x70] sm:$0xff] %vm1101, %v1034
        %1117 = vst.msk [vmem:[#allocation2 + $0x78] sm:$0xff] %vm1101, %v1036
        %1118 = vst.msk [vmem:[#allocation2 + $0x80] sm:$0xff] %vm1101, %v1038
        %1119 = vst.msk [vmem:[#allocation2 + $0x88] sm:$0xff] %vm1101, %v1040
        %1120 = vst.msk [vmem:[#allocation2 + $0x90] sm:$0xff] %vm1101, %v1042
        %1121 = vst.msk [vmem:[#allocation2 + $0x98] sm:$0xff] %vm1101, %v1044
        %1122 = vst.msk [vmem:[#allocation2 + $0xa0] sm:$0xff] %vm1101, %v1046
        %1123 = vst.msk [vmem:[#allocation2 + $0xa8] sm:$0xff] %vm1101, %v1048
        %1124 = vst.msk [vmem:[#allocation2 + $0xb0] sm:$0xff] %vm1101, %v1050
        %1125 = vst.msk [vmem:[#allocation2 + $0xb8] sm:$0xff] %vm1101, %v1052
        %1126 = vst.msk [vmem:[#allocation2 + $0xc0] sm:$0xff] %vm1101, %v1054
        %1127 = vst.msk [vmem:[#allocation2 + $0xc8] sm:$0xff] %vm1101, %v1056
        %1128 = vst.msk [vmem:[#allocation2 + $0xd0] sm:$0xff] %vm1101, %v1058
        %1129 = vst.msk [vmem:[#allocation2 + $0xd8] sm:$0xff] %vm1101, %v1060
        %1130 = vst.msk [vmem:[#allocation2 + $0xe0] sm:$0xff] %vm1101, %v1062
        %1131 = vst.msk [vmem:[#allocation2 + $0xe8] sm:$0xff] %vm1101, %v1064
        %1132 = vst.msk [vmem:[#allocation2 + $0xf0] sm:$0xff] %vm1101, %v1066
        %1133 = vst.msk [vmem:[#allocation2 + $0xf8] sm:$0xff] %vm1101, %v1068
        %v1134 = vld [vmem:[#allocation2 + $0x1] sm:$0xff]
        %v1135 = vld [vmem:[#allocation2 + $0x9] sm:$0x7f]
        %v1136 = vld [vmem:[#allocation2 + $0x11] sm:$0xff]
        %v1137 = vld [vmem:[#allocation2 + $0x19] sm:$0x7f]
        %v1138 = vld [vmem:[#allocation2 + $0x21] sm:$0xff]
        %v1139 = vld [vmem:[#allocation2 + $0x29] sm:$0x7f]
        %v1140 = vld [vmem:[#allocation2 + $0x31] sm:$0xff]
        %v1141 = vld [vmem:[#allocation2 + $0x39] sm:$0x7f]
        %v1142 = vld [vmem:[#allocation2 + $0x41] sm:$0xff]
        %v1143 = vld [vmem:[#allocation2 + $0x49] sm:$0x7f]
        %v1144 = vld [vmem:[#allocation2 + $0x51] sm:$0xff]
        %v1145 = vld [vmem:[#allocation2 + $0x59] sm:$0x7f]
        %v1146 = vld [vmem:[#allocation2 + $0x61] sm:$0xff]
        %v1147 = vld [vmem:[#allocation2 + $0x69] sm:$0x7f]
        %v1148 = vld [vmem:[#allocation2 + $0x71] sm:$0xff]
        %v1149 = vld [vmem:[#allocation2 + $0x79] sm:$0x7f]
        %v1150 = vld [vmem:[#allocation2 + $0x81] sm:$0xff]
        %v1151 = vld [vmem:[#allocation2 + $0x89] sm:$0x7f]
        %v1152 = vld [vmem:[#allocation2 + $0x91] sm:$0xff]
        %v1153 = vld [vmem:[#allocation2 + $0x99] sm:$0x7f]
        %v1154 = vld [vmem:[#allocation2 + $0xa1] sm:$0xff]
        %v1155 = vld [vmem:[#allocation2 + $0xa9] sm:$0x7f]
        %v1156 = vld [vmem:[#allocation2 + $0xb1] sm:$0xff]
        %v1157 = vld [vmem:[#allocation2 + $0xb9] sm:$0x7f]
        %v1158 = vld [vmem:[#allocation2 + $0xc1] sm:$0xff]
        %v1159 = vld [vmem:[#allocation2 + $0xc9] sm:$0x7f]
        %v1160 = vld [vmem:[#allocation2 + $0xd1] sm:$0xff]
        %v1161 = vld [vmem:[#allocation2 + $0xd9] sm:$0x7f]
        %v1162 = vld [vmem:[#allocation2 + $0xe1] sm:$0xff]
        %v1163 = vld [vmem:[#allocation2 + $0xe9] sm:$0x7f]
        %v1164 = vld [vmem:[#allocation2 + $0xf1] sm:$0xff]
        %v1165 = vld [vmem:[#allocation2 + $0xf9] sm:$0x7f]
        %1166 = vrot.lane.b32.xlu0 %v941, 72
        %v1167 = vpop.permute.xlu0 %1166
        %1168 = vrot.lane.b32.xlu0 %v942, 72
        %v1169 = vpop.permute.xlu0 %1168
        %1170 = vrot.lane.b32.xlu0 %v943, 72
        %v1171 = vpop.permute.xlu0 %1170
        %1172 = vrot.lane.b32.xlu0 %v944, 72
        %v1173 = vpop.permute.xlu0 %1172
        %1174 = vrot.lane.b32.xlu0 %v945, 72
        %v1175 = vpop.permute.xlu0 %1174
        %1176 = vrot.lane.b32.xlu0 %v946, 72
        %v1177 = vpop.permute.xlu0 %1176
        %1178 = vrot.lane.b32.xlu0 %v947, 72
        %v1179 = vpop.permute.xlu0 %1178
        %1180 = vrot.lane.b32.xlu0 %v948, 72
        %v1181 = vpop.permute.xlu0 %1180
        %1182 = vrot.lane.b32.xlu0 %v949, 72
        %v1183 = vpop.permute.xlu0 %1182
        %1184 = vrot.lane.b32.xlu0 %v950, 72
        %v1185 = vpop.permute.xlu0 %1184
        %1186 = vrot.lane.b32.xlu0 %v951, 72
        %v1187 = vpop.permute.xlu0 %1186
        %1188 = vrot.lane.b32.xlu0 %v952, 72
        %v1189 = vpop.permute.xlu0 %1188
        %1190 = vrot.lane.b32.xlu0 %v953, 72
        %v1191 = vpop.permute.xlu0 %1190
        %1192 = vrot.lane.b32.xlu0 %v954, 72
        %v1193 = vpop.permute.xlu0 %1192
        %1194 = vrot.lane.b32.xlu0 %v955, 72
        %v1195 = vpop.permute.xlu0 %1194
        %1196 = vrot.lane.b32.xlu0 %v956, 72
        %v1197 = vpop.permute.xlu0 %1196
        %1198 = vrot.lane.b32.xlu0 %v957, 72
        %v1199 = vpop.permute.xlu0 %1198
        %1200 = vrot.lane.b32.xlu0 %v958, 72
        %v1201 = vpop.permute.xlu0 %1200
        %1202 = vrot.lane.b32.xlu0 %v959, 72
        %v1203 = vpop.permute.xlu0 %1202
        %1204 = vrot.lane.b32.xlu0 %v960, 72
        %v1205 = vpop.permute.xlu0 %1204
        %1206 = vrot.lane.b32.xlu0 %v961, 72
        %v1207 = vpop.permute.xlu0 %1206
        %1208 = vrot.lane.b32.xlu0 %v962, 72
        %v1209 = vpop.permute.xlu0 %1208
        %1210 = vrot.lane.b32.xlu0 %v963, 72
        %v1211 = vpop.permute.xlu0 %1210
        %1212 = vrot.lane.b32.xlu0 %v964, 72
        %v1213 = vpop.permute.xlu0 %1212
        %1214 = vrot.lane.b32.xlu0 %v965, 72
        %v1215 = vpop.permute.xlu0 %1214
        %1216 = vrot.lane.b32.xlu0 %v966, 72
        %v1217 = vpop.permute.xlu0 %1216
        %1218 = vrot.lane.b32.xlu0 %v967, 72
        %v1219 = vpop.permute.xlu0 %1218
        %1220 = vrot.lane.b32.xlu0 %v968, 72
        %v1221 = vpop.permute.xlu0 %1220
        %1222 = vrot.lane.b32.xlu0 %v969, 72
        %v1223 = vpop.permute.xlu0 %1222
        %1224 = vrot.lane.b32.xlu0 %v970, 72
        %v1225 = vpop.permute.xlu0 %1224
        %1226 = vrot.lane.b32.xlu0 %v971, 72
        %v1227 = vpop.permute.xlu0 %1226
        %1228 = vrot.lane.b32.xlu0 %v972, 72
        %v1229 = vpop.permute.xlu0 %1228
        %v1262 = vadd.f32 %v1134, %v1167
        %v1263 = vadd.f32 %v1135, %v1169
        %v1264 = vadd.f32 %v1136, %v1171
        %v1265 = vadd.f32 %v1137, %v1173
        %v1266 = vadd.f32 %v1138, %v1175
        %v1267 = vadd.f32 %v1139, %v1177
        %v1268 = vadd.f32 %v1140, %v1179
        %v1269 = vadd.f32 %v1141, %v1181
        %v1270 = vadd.f32 %v1142, %v1183
        %v1271 = vadd.f32 %v1143, %v1185
        %v1272 = vadd.f32 %v1144, %v1187
        %v1273 = vadd.f32 %v1145, %v1189
        %v1274 = vadd.f32 %v1146, %v1191
        %v1275 = vadd.f32 %v1147, %v1193
        %v1276 = vadd.f32 %v1148, %v1195
        %v1277 = vadd.f32 %v1149, %v1197
        %v1278 = vadd.f32 %v1150, %v1199
        %v1279 = vadd.f32 %v1151, %v1201
        %v1280 = vadd.f32 %v1152, %v1203
        %v1281 = vadd.f32 %v1153, %v1205
        %v1282 = vadd.f32 %v1154, %v1207
        %v1283 = vadd.f32 %v1155, %v1209
        %v1284 = vadd.f32 %v1156, %v1211
        %v1285 = vadd.f32 %v1157, %v1213
        %v1286 = vadd.f32 %v1158, %v1215
        %v1287 = vadd.f32 %v1159, %v1217
        %v1288 = vadd.f32 %v1160, %v1219
        %v1289 = vadd.f32 %v1161, %v1221
        %v1290 = vadd.f32 %v1162, %v1223
        %v1291 = vadd.f32 %v1163, %v1225
        %v1292 = vadd.f32 %v1164, %v1227
        %v1293 = vadd.f32 %v1165, %v1229
        %1294 = vst.msk [vmem:[#allocation2 + $0x1] sm:$0xff] %vm1101, %v1262
        %vm1295 = vcmask 63488
        %1296 = vst.msk [vmem:[#allocation2 + $0x9] sm:$0x7f] %vm1295, %v1263
        %1297 = vst.msk [vmem:[#allocation2 + $0x11] sm:$0xff] %vm1101, %v1264
        %1298 = vst.msk [vmem:[#allocation2 + $0x19] sm:$0x7f] %vm1295, %v1265
        %1299 = vst.msk [vmem:[#allocation2 + $0x21] sm:$0xff] %vm1101, %v1266
        %1300 = vst.msk [vmem:[#allocation2 + $0x29] sm:$0x7f] %vm1295, %v1267
        %1301 = vst.msk [vmem:[#allocation2 + $0x31] sm:$0xff] %vm1101, %v1268
        %1302 = vst.msk [vmem:[#allocation2 + $0x39] sm:$0x7f] %vm1295, %v1269
        %1303 = vst.msk [vmem:[#allocation2 + $0x41] sm:$0xff] %vm1101, %v1270
        %1304 = vst.msk [vmem:[#allocation2 + $0x49] sm:$0x7f] %vm1295, %v1271
        %1305 = vst.msk [vmem:[#allocation2 + $0x51] sm:$0xff] %vm1101, %v1272
        %1306 = vst.msk [vmem:[#allocation2 + $0x59] sm:$0x7f] %vm1295, %v1273
        %1307 = vst.msk [vmem:[#allocation2 + $0x61] sm:$0xff] %vm1101, %v1274
        %1308 = vst.msk [vmem:[#allocation2 + $0x69] sm:$0x7f] %vm1295, %v1275
        %1309 = vst.msk [vmem:[#allocation2 + $0x71] sm:$0xff] %vm1101, %v1276
        %1310 = vst.msk [vmem:[#allocation2 + $0x79] sm:$0x7f] %vm1295, %v1277
        %1311 = vst.msk [vmem:[#allocation2 + $0x81] sm:$0xff] %vm1101, %v1278
        %1312 = vst.msk [vmem:[#allocation2 + $0x89] sm:$0x7f] %vm1295, %v1279
        %1313 = vst.msk [vmem:[#allocation2 + $0x91] sm:$0xff] %vm1101, %v1280
        %1314 = vst.msk [vmem:[#allocation2 + $0x99] sm:$0x7f] %vm1295, %v1281
        %1315 = vst.msk [vmem:[#allocation2 + $0xa1] sm:$0xff] %vm1101, %v1282
        %1316 = vst.msk [vmem:[#allocation2 + $0xa9] sm:$0x7f] %vm1295, %v1283
        %1317 = vst.msk [vmem:[#allocation2 + $0xb1] sm:$0xff] %vm1101, %v1284
        %1318 = vst.msk [vmem:[#allocation2 + $0xb9] sm:$0x7f] %vm1295, %v1285
        %1319 = vst.msk [vmem:[#allocation2 + $0xc1] sm:$0xff] %vm1101, %v1286
        %1320 = vst.msk [vmem:[#allocation2 + $0xc9] sm:$0x7f] %vm1295, %v1287
        %1321 = vst.msk [vmem:[#allocation2 + $0xd1] sm:$0xff] %vm1101, %v1288
        %1322 = vst.msk [vmem:[#allocation2 + $0xd9] sm:$0x7f] %vm1295, %v1289
        %1323 = vst.msk [vmem:[#allocation2 + $0xe1] sm:$0xff] %vm1101, %v1290
        %1324 = vst.msk [vmem:[#allocation2 + $0xe9] sm:$0x7f] %vm1295, %v1291
        %1325 = vst.msk [vmem:[#allocation2 + $0xf1] sm:$0xff] %vm1101, %v1292
        %1326 = vst.msk [vmem:[#allocation2 + $0xf9] sm:$0x7f] %vm1295, %v1293
        %s1327 = scalar_lea.vmem [#allocation2], 16
        %v1328 = vld [vmem:[%s1327] sm:$0xff]
        %v1329 = vld [vmem:[%s1327 + $0x8] sm:$0xff]
        %v1330 = vld [vmem:[%s1327 + $0x10] sm:$0xff]
        %v1331 = vld [vmem:[%s1327 + $0x18] sm:$0xff]
        %v1332 = vld [vmem:[%s1327 + $0x20] sm:$0xff]
        %v1333 = vld [vmem:[%s1327 + $0x28] sm:$0xff]
        %v1334 = vld [vmem:[%s1327 + $0x30] sm:$0xff]
        %v1335 = vld [vmem:[%s1327 + $0x38] sm:$0xff]
        %v1336 = vld [vmem:[%s1327 + $0x40] sm:$0xff]
        %v1337 = vld [vmem:[%s1327 + $0x48] sm:$0xff]
        %v1338 = vld [vmem:[%s1327 + $0x50] sm:$0xff]
        %v1339 = vld [vmem:[%s1327 + $0x58] sm:$0xff]
        %v1340 = vld [vmem:[%s1327 + $0x60] sm:$0xff]
        %v1341 = vld [vmem:[%s1327 + $0x68] sm:$0xff]
        %v1342 = vld [vmem:[%s1327 + $0x70] sm:$0xff]
        %v1343 = vld [vmem:[%s1327 + $0x78] sm:$0xff]
        %v1344 = vld [vmem:[%s1327 + $0x80] sm:$0xff]
        %v1345 = vld [vmem:[%s1327 + $0x88] sm:$0xff]
        %v1346 = vld [vmem:[%s1327 + $0x90] sm:$0xff]
        %v1347 = vld [vmem:[%s1327 + $0x98] sm:$0xff]
        %v1348 = vld [vmem:[%s1327 + $0xa0] sm:$0xff]
        %v1349 = vld [vmem:[%s1327 + $0xa8] sm:$0xff]
        %v1350 = vld [vmem:[%s1327 + $0xb0] sm:$0xff]
        %v1351 = vld [vmem:[%s1327 + $0xb8] sm:$0xff]
        %v1352 = vld [vmem:[%s1327 + $0xc0] sm:$0xff]
        %v1353 = vld [vmem:[%s1327 + $0xc8] sm:$0xff]
        %v1354 = vld [vmem:[%s1327 + $0xd0] sm:$0xff]
        %v1355 = vld [vmem:[%s1327 + $0xd8] sm:$0xff]
        %v1356 = vld [vmem:[%s1327 + $0xe0] sm:$0xff]
        %v1357 = vld [vmem:[%s1327 + $0xe8] sm:$0xff]
        %1358 = vrot.lane.b32.xlu0 %v941, 24
        %v1359 = vpop.permute.xlu0 %1358
        %1360 = vrot.lane.b32.xlu0 %v942, 24
        %v1361 = vpop.permute.xlu0 %1360
        %1362 = vrot.lane.b32.xlu0 %v943, 24
        %v1363 = vpop.permute.xlu0 %1362
        %1364 = vrot.lane.b32.xlu0 %v944, 24
        %v1365 = vpop.permute.xlu0 %1364
        %1366 = vrot.lane.b32.xlu0 %v945, 24
        %v1367 = vpop.permute.xlu0 %1366
        %1368 = vrot.lane.b32.xlu0 %v946, 24
        %v1369 = vpop.permute.xlu0 %1368
        %1370 = vrot.lane.b32.xlu0 %v947, 24
        %v1371 = vpop.permute.xlu0 %1370
        %1372 = vrot.lane.b32.xlu0 %v948, 24
        %v1373 = vpop.permute.xlu0 %1372
        %1374 = vrot.lane.b32.xlu0 %v949, 24
        %v1375 = vpop.permute.xlu0 %1374
        %1376 = vrot.lane.b32.xlu0 %v950, 24
        %v1377 = vpop.permute.xlu0 %1376
        %1378 = vrot.lane.b32.xlu0 %v951, 24
        %v1379 = vpop.permute.xlu0 %1378
        %1380 = vrot.lane.b32.xlu0 %v952, 24
        %v1381 = vpop.permute.xlu0 %1380
        %1382 = vrot.lane.b32.xlu0 %v953, 24
        %v1383 = vpop.permute.xlu0 %1382
        %1384 = vrot.lane.b32.xlu0 %v954, 24
        %v1385 = vpop.permute.xlu0 %1384
        %1386 = vrot.lane.b32.xlu0 %v955, 24
        %v1387 = vpop.permute.xlu0 %1386
        %1388 = vrot.lane.b32.xlu0 %v956, 24
        %v1389 = vpop.permute.xlu0 %1388
        %1390 = vrot.lane.b32.xlu0 %v957, 24
        %v1391 = vpop.permute.xlu0 %1390
        %1392 = vrot.lane.b32.xlu0 %v958, 24
        %v1393 = vpop.permute.xlu0 %1392
        %1394 = vrot.lane.b32.xlu0 %v959, 24
        %v1395 = vpop.permute.xlu0 %1394
        %1396 = vrot.lane.b32.xlu0 %v960, 24
        %v1397 = vpop.permute.xlu0 %1396
        %1398 = vrot.lane.b32.xlu0 %v961, 24
        %v1399 = vpop.permute.xlu0 %1398
        %1400 = vrot.lane.b32.xlu0 %v962, 24
        %v1401 = vpop.permute.xlu0 %1400
        %1402 = vrot.lane.b32.xlu0 %v963, 24
        %v1403 = vpop.permute.xlu0 %1402
        %1404 = vrot.lane.b32.xlu0 %v964, 24
        %v1405 = vpop.permute.xlu0 %1404
        %1406 = vrot.lane.b32.xlu0 %v965, 24
        %v1407 = vpop.permute.xlu0 %1406
        %1408 = vrot.lane.b32.xlu0 %v966, 24
        %v1409 = vpop.permute.xlu0 %1408
        %1410 = vrot.lane.b32.xlu0 %v967, 24
        %v1411 = vpop.permute.xlu0 %1410
        %1412 = vrot.lane.b32.xlu0 %v968, 24
        %v1413 = vpop.permute.xlu0 %1412
        %1414 = vrot.lane.b32.xlu0 %v969, 24
        %v1415 = vpop.permute.xlu0 %1414
        %1416 = vrot.lane.b32.xlu0 %v970, 24
        %v1417 = vpop.permute.xlu0 %1416
        %v1448 = vadd.f32 %v1328, %v1359
        %v1449 = vadd.f32 %v1329, %v1361
        %v1450 = vadd.f32 %v1330, %v1363
        %v1451 = vadd.f32 %v1331, %v1365
        %v1452 = vadd.f32 %v1332, %v1367
        %v1453 = vadd.f32 %v1333, %v1369
        %v1454 = vadd.f32 %v1334, %v1371
        %v1455 = vadd.f32 %v1335, %v1373
        %v1456 = vadd.f32 %v1336, %v1375
        %v1457 = vadd.f32 %v1337, %v1377
        %v1458 = vadd.f32 %v1338, %v1379
        %v1459 = vadd.f32 %v1339, %v1381
        %v1460 = vadd.f32 %v1340, %v1383
        %v1461 = vadd.f32 %v1341, %v1385
        %v1462 = vadd.f32 %v1342, %v1387
        %v1463 = vadd.f32 %v1343, %v1389
        %v1464 = vadd.f32 %v1344, %v1391
        %v1465 = vadd.f32 %v1345, %v1393
        %v1466 = vadd.f32 %v1346, %v1395
        %v1467 = vadd.f32 %v1347, %v1397
        %v1468 = vadd.f32 %v1348, %v1399
        %v1469 = vadd.f32 %v1349, %v1401
        %v1470 = vadd.f32 %v1350, %v1403
        %v1471 = vadd.f32 %v1351, %v1405
        %v1472 = vadd.f32 %v1352, %v1407
        %v1473 = vadd.f32 %v1353, %v1409
        %v1474 = vadd.f32 %v1354, %v1411
        %v1475 = vadd.f32 %v1355, %v1413
        %v1476 = vadd.f32 %v1356, %v1415
        %v1477 = vadd.f32 %v1357, %v1417
        %1478 = vst.msk [vmem:[%s1327] sm:$0xff] %vm1101, %v1448
        %1479 = vst.msk [vmem:[%s1327 + $0x8] sm:$0xff] %vm1101, %v1449
        %1480 = vst.msk [vmem:[%s1327 + $0x10] sm:$0xff] %vm1101, %v1450
        %1481 = vst.msk [vmem:[%s1327 + $0x18] sm:$0xff] %vm1101, %v1451
        %1482 = vst.msk [vmem:[%s1327 + $0x20] sm:$0xff] %vm1101, %v1452
        %1483 = vst.msk [vmem:[%s1327 + $0x28] sm:$0xff] %vm1101, %v1453
        %1484 = vst.msk [vmem:[%s1327 + $0x30] sm:$0xff] %vm1101, %v1454
        %1485 = vst.msk [vmem:[%s1327 + $0x38] sm:$0xff] %vm1101, %v1455
        %1486 = vst.msk [vmem:[%s1327 + $0x40] sm:$0xff] %vm1101, %v1456
        %1487 = vst.msk [vmem:[%s1327 + $0x48] sm:$0xff] %vm1101, %v1457
        %1488 = vst.msk [vmem:[%s1327 + $0x50] sm:$0xff] %vm1101, %v1458
        %1489 = vst.msk [vmem:[%s1327 + $0x58] sm:$0xff] %vm1101, %v1459
        %1490 = vst.msk [vmem:[%s1327 + $0x60] sm:$0xff] %vm1101, %v1460
        %1491 = vst.msk [vmem:[%s1327 + $0x68] sm:$0xff] %vm1101, %v1461
        %1492 = vst.msk [vmem:[%s1327 + $0x70] sm:$0xff] %vm1101, %v1462
        %1493 = vst.msk [vmem:[%s1327 + $0x78] sm:$0xff] %vm1101, %v1463
        %1494 = vst.msk [vmem:[%s1327 + $0x80] sm:$0xff] %vm1101, %v1464
        %1495 = vst.msk [vmem:[%s1327 + $0x88] sm:$0xff] %vm1101, %v1465
        %1496 = vst.msk [vmem:[%s1327 + $0x90] sm:$0xff] %vm1101, %v1466
        %1497 = vst.msk [vmem:[%s1327 + $0x98] sm:$0xff] %vm1101, %v1467
        %1498 = vst.msk [vmem:[%s1327 + $0xa0] sm:$0xff] %vm1101, %v1468
        %1499 = vst.msk [vmem:[%s1327 + $0xa8] sm:$0xff] %vm1101, %v1469
        %1500 = vst.msk [vmem:[%s1327 + $0xb0] sm:$0xff] %vm1101, %v1470
        %1501 = vst.msk [vmem:[%s1327 + $0xb8] sm:$0xff] %vm1101, %v1471
        %1502 = vst.msk [vmem:[%s1327 + $0xc0] sm:$0xff] %vm1101, %v1472
        %1503 = vst.msk [vmem:[%s1327 + $0xc8] sm:$0xff] %vm1101, %v1473
        %1504 = vst.msk [vmem:[%s1327 + $0xd0] sm:$0xff] %vm1101, %v1474
        %1505 = vst.msk [vmem:[%s1327 + $0xd8] sm:$0xff] %vm1101, %v1475
        %1506 = vst.msk [vmem:[%s1327 + $0xe0] sm:$0xff] %vm1101, %v1476
        %1507 = vst.msk [vmem:[%s1327 + $0xe8] sm:$0xff] %vm1101, %v1477
        %v1508 = vld [vmem:[%s1327 + $0x1] sm:$0xff]
        %v1509 = vld [vmem:[%s1327 + $0x9] sm:$0x7f]
        %v1510 = vld [vmem:[%s1327 + $0x11] sm:$0xff]
        %v1511 = vld [vmem:[%s1327 + $0x19] sm:$0x7f]
        %v1512 = vld [vmem:[%s1327 + $0x21] sm:$0xff]
        %v1513 = vld [vmem:[%s1327 + $0x29] sm:$0x7f]
        %v1514 = vld [vmem:[%s1327 + $0x31] sm:$0xff]
        %v1515 = vld [vmem:[%s1327 + $0x39] sm:$0x7f]
        %v1516 = vld [vmem:[%s1327 + $0x41] sm:$0xff]
        %v1517 = vld [vmem:[%s1327 + $0x49] sm:$0x7f]
        %v1518 = vld [vmem:[%s1327 + $0x51] sm:$0xff]
        %v1519 = vld [vmem:[%s1327 + $0x59] sm:$0x7f]
        %v1520 = vld [vmem:[%s1327 + $0x61] sm:$0xff]
        %v1521 = vld [vmem:[%s1327 + $0x69] sm:$0x7f]
        %v1522 = vld [vmem:[%s1327 + $0x71] sm:$0xff]
        %v1523 = vld [vmem:[%s1327 + $0x79] sm:$0x7f]
        %v1524 = vld [vmem:[%s1327 + $0x81] sm:$0xff]
        %v1525 = vld [vmem:[%s1327 + $0x89] sm:$0x7f]
        %v1526 = vld [vmem:[%s1327 + $0x91] sm:$0xff]
        %v1527 = vld [vmem:[%s1327 + $0x99] sm:$0x7f]
        %v1528 = vld [vmem:[%s1327 + $0xa1] sm:$0xff]
        %v1529 = vld [vmem:[%s1327 + $0xa9] sm:$0x7f]
        %v1530 = vld [vmem:[%s1327 + $0xb1] sm:$0xff]
        %v1531 = vld [vmem:[%s1327 + $0xb9] sm:$0x7f]
        %v1532 = vld [vmem:[%s1327 + $0xc1] sm:$0xff]
        %v1533 = vld [vmem:[%s1327 + $0xc9] sm:$0x7f]
        %v1534 = vld [vmem:[%s1327 + $0xd1] sm:$0xff]
        %v1535 = vld [vmem:[%s1327 + $0xd9] sm:$0x7f]
        %v1536 = vld [vmem:[%s1327 + $0xe1] sm:$0xff]
        %v1537 = vld [vmem:[%s1327 + $0xe9] sm:$0x7f]
        %1538 = vrot.lane.b32.xlu0 %v941, 8
        %v1539 = vpop.permute.xlu0 %1538
        %1540 = vrot.lane.b32.xlu0 %v942, 8
        %v1541 = vpop.permute.xlu0 %1540
        %1542 = vrot.lane.b32.xlu0 %v943, 8
        %v1543 = vpop.permute.xlu0 %1542
        %1544 = vrot.lane.b32.xlu0 %v944, 8
        %v1545 = vpop.permute.xlu0 %1544
        %1546 = vrot.lane.b32.xlu0 %v945, 8
        %v1547 = vpop.permute.xlu0 %1546
        %1548 = vrot.lane.b32.xlu0 %v946, 8
        %v1549 = vpop.permute.xlu0 %1548
        %1550 = vrot.lane.b32.xlu0 %v947, 8
        %v1551 = vpop.permute.xlu0 %1550
        %1552 = vrot.lane.b32.xlu0 %v948, 8
        %v1553 = vpop.permute.xlu0 %1552
        %1554 = vrot.lane.b32.xlu0 %v949, 8
        %v1555 = vpop.permute.xlu0 %1554
        %1556 = vrot.lane.b32.xlu0 %v950, 8
        %v1557 = vpop.permute.xlu0 %1556
        %1558 = vrot.lane.b32.xlu0 %v951, 8
        %v1559 = vpop.permute.xlu0 %1558
        %1560 = vrot.lane.b32.xlu0 %v952, 8
        %v1561 = vpop.permute.xlu0 %1560
        %1562 = vrot.lane.b32.xlu0 %v953, 8
        %v1563 = vpop.permute.xlu0 %1562
        %1564 = vrot.lane.b32.xlu0 %v954, 8
        %v1565 = vpop.permute.xlu0 %1564
        %1566 = vrot.lane.b32.xlu0 %v955, 8
        %v1567 = vpop.permute.xlu0 %1566
        %1568 = vrot.lane.b32.xlu0 %v956, 8
        %v1569 = vpop.permute.xlu0 %1568
        %1570 = vrot.lane.b32.xlu0 %v957, 8
        %v1571 = vpop.permute.xlu0 %1570
        %1572 = vrot.lane.b32.xlu0 %v958, 8
        %v1573 = vpop.permute.xlu0 %1572
        %1574 = vrot.lane.b32.xlu0 %v959, 8
        %v1575 = vpop.permute.xlu0 %1574
        %1576 = vrot.lane.b32.xlu0 %v960, 8
        %v1577 = vpop.permute.xlu0 %1576
        %1578 = vrot.lane.b32.xlu0 %v961, 8
        %v1579 = vpop.permute.xlu0 %1578
        %1580 = vrot.lane.b32.xlu0 %v962, 8
        %v1581 = vpop.permute.xlu0 %1580
        %1582 = vrot.lane.b32.xlu0 %v963, 8
        %v1583 = vpop.permute.xlu0 %1582
        %1584 = vrot.lane.b32.xlu0 %v964, 8
        %v1585 = vpop.permute.xlu0 %1584
        %1586 = vrot.lane.b32.xlu0 %v965, 8
        %v1587 = vpop.permute.xlu0 %1586
        %1588 = vrot.lane.b32.xlu0 %v966, 8
        %v1589 = vpop.permute.xlu0 %1588
        %1590 = vrot.lane.b32.xlu0 %v967, 8
        %v1591 = vpop.permute.xlu0 %1590
        %1592 = vrot.lane.b32.xlu0 %v968, 8
        %v1593 = vpop.permute.xlu0 %1592
        %1594 = vrot.lane.b32.xlu0 %v969, 8
        %v1595 = vpop.permute.xlu0 %1594
        %1596 = vrot.lane.b32.xlu0 %v970, 8
        %v1597 = vpop.permute.xlu0 %1596
        %v1628 = vadd.f32 %v1508, %v1539
        %v1629 = vadd.f32 %v1509, %v1541
        %v1630 = vadd.f32 %v1510, %v1543
        %v1631 = vadd.f32 %v1511, %v1545
        %v1632 = vadd.f32 %v1512, %v1547
        %v1633 = vadd.f32 %v1513, %v1549
        %v1634 = vadd.f32 %v1514, %v1551
        %v1635 = vadd.f32 %v1515, %v1553
        %v1636 = vadd.f32 %v1516, %v1555
        %v1637 = vadd.f32 %v1517, %v1557
        %v1638 = vadd.f32 %v1518, %v1559
        %v1639 = vadd.f32 %v1519, %v1561
        %v1640 = vadd.f32 %v1520, %v1563
        %v1641 = vadd.f32 %v1521, %v1565
        %v1642 = vadd.f32 %v1522, %v1567
        %v1643 = vadd.f32 %v1523, %v1569
        %v1644 = vadd.f32 %v1524, %v1571
        %v1645 = vadd.f32 %v1525, %v1573
        %v1646 = vadd.f32 %v1526, %v1575
        %v1647 = vadd.f32 %v1527, %v1577
        %v1648 = vadd.f32 %v1528, %v1579
        %v1649 = vadd.f32 %v1529, %v1581
        %v1650 = vadd.f32 %v1530, %v1583
        %v1651 = vadd.f32 %v1531, %v1585
        %v1652 = vadd.f32 %v1532, %v1587
        %v1653 = vadd.f32 %v1533, %v1589
        %v1654 = vadd.f32 %v1534, %v1591
        %v1655 = vadd.f32 %v1535, %v1593
        %v1656 = vadd.f32 %v1536, %v1595
        %v1657 = vadd.f32 %v1537, %v1597
        %1658 = vst.msk [vmem:[%s1327 + $0x1] sm:$0xff] %vm1101, %v1628
        %1659 = vst.msk [vmem:[%s1327 + $0x9] sm:$0x7f] %vm1295, %v1629
        %1660 = vst.msk [vmem:[%s1327 + $0x11] sm:$0xff] %vm1101, %v1630
        %1661 = vst.msk [vmem:[%s1327 + $0x19] sm:$0x7f] %vm1295, %v1631
        %1662 = vst.msk [vmem:[%s1327 + $0x21] sm:$0xff] %vm1101, %v1632
        %1663 = vst.msk [vmem:[%s1327 + $0x29] sm:$0x7f] %vm1295, %v1633
        %1664 = vst.msk [vmem:[%s1327 + $0x31] sm:$0xff] %vm1101, %v1634
        %1665 = vst.msk [vmem:[%s1327 + $0x39] sm:$0x7f] %vm1295, %v1635
        %1666 = vst.msk [vmem:[%s1327 + $0x41] sm:$0xff] %vm1101, %v1636
        %1667 = vst.msk [vmem:[%s1327 + $0x49] sm:$0x7f] %vm1295, %v1637
        %1668 = vst.msk [vmem:[%s1327 + $0x51] sm:$0xff] %vm1101, %v1638
        %1669 = vst.msk [vmem:[%s1327 + $0x59] sm:$0x7f] %vm1295, %v1639
        %1670 = vst.msk [vmem:[%s1327 + $0x61] sm:$0xff] %vm1101, %v1640
        %1671 = vst.msk [vmem:[%s1327 + $0x69] sm:$0x7f] %vm1295, %v1641
        %1672 = vst.msk [vmem:[%s1327 + $0x71] sm:$0xff] %vm1101, %v1642
        %1673 = vst.msk [vmem:[%s1327 + $0x79] sm:$0x7f] %vm1295, %v1643
        %1674 = vst.msk [vmem:[%s1327 + $0x81] sm:$0xff] %vm1101, %v1644
        %1675 = vst.msk [vmem:[%s1327 + $0x89] sm:$0x7f] %vm1295, %v1645
        %1676 = vst.msk [vmem:[%s1327 + $0x91] sm:$0xff] %vm1101, %v1646
        %1677 = vst.msk [vmem:[%s1327 + $0x99] sm:$0x7f] %vm1295, %v1647
        %1678 = vst.msk [vmem:[%s1327 + $0xa1] sm:$0xff] %vm1101, %v1648
        %1679 = vst.msk [vmem:[%s1327 + $0xa9] sm:$0x7f] %vm1295, %v1649
        %1680 = vst.msk [vmem:[%s1327 + $0xb1] sm:$0xff] %vm1101, %v1650
        %1681 = vst.msk [vmem:[%s1327 + $0xb9] sm:$0x7f] %vm1295, %v1651
        %1682 = vst.msk [vmem:[%s1327 + $0xc1] sm:$0xff] %vm1101, %v1652
        %1683 = vst.msk [vmem:[%s1327 + $0xc9] sm:$0x7f] %vm1295, %v1653
        %1684 = vst.msk [vmem:[%s1327 + $0xd1] sm:$0xff] %vm1101, %v1654
        %1685 = vst.msk [vmem:[%s1327 + $0xd9] sm:$0x7f] %vm1295, %v1655
        %1686 = vst.msk [vmem:[%s1327 + $0xe1] sm:$0xff] %vm1101, %v1656
        %1687 = vst.msk [vmem:[%s1327 + $0xe9] sm:$0x7f] %vm1295, %v1657
        %v1688 = vld [vmem:[#allocation2] sm:$0xff]
        %v1689 = vld [vmem:[#allocation2 + $0x8] sm:$0xff]
        %v1690 = vld [vmem:[#allocation2 + $0x10] sm:$0xff]
        %v1691 = vld [vmem:[#allocation2 + $0x18] sm:$0xff]
        %v1692 = vld [vmem:[#allocation2 + $0x20] sm:$0xff]
        %v1693 = vld [vmem:[#allocation2 + $0x28] sm:$0xff]
        %v1694 = vld [vmem:[#allocation2 + $0x30] sm:$0xff]
        %v1695 = vld [vmem:[#allocation2 + $0x38] sm:$0xff]
        %v1696 = vld [vmem:[#allocation2 + $0x40] sm:$0xff]
        %v1697 = vld [vmem:[#allocation2 + $0x48] sm:$0xff]
        %v1698 = vld [vmem:[#allocation2 + $0x50] sm:$0xff]
        %v1699 = vld [vmem:[#allocation2 + $0x58] sm:$0xff]
        %v1700 = vld [vmem:[#allocation2 + $0x60] sm:$0xff]
        %v1701 = vld [vmem:[#allocation2 + $0x68] sm:$0xff]
        %v1702 = vld [vmem:[#allocation2 + $0x70] sm:$0xff]
        %v1703 = vld [vmem:[#allocation2 + $0x78] sm:$0xff]
        %v1704 = vld [vmem:[#allocation2 + $0x80] sm:$0xff]
        %v1705 = vld [vmem:[#allocation2 + $0x88] sm:$0xff]
        %v1706 = vld [vmem:[#allocation2 + $0x90] sm:$0xff]
        %v1707 = vld [vmem:[#allocation2 + $0x98] sm:$0xff]
        %v1708 = vld [vmem:[#allocation2 + $0xa0] sm:$0xff]
        %v1709 = vld [vmem:[#allocation2 + $0xa8] sm:$0xff]
        %v1710 = vld [vmem:[#allocation2 + $0xb0] sm:$0xff]
        %v1711 = vld [vmem:[#allocation2 + $0xb8] sm:$0xff]
        %v1712 = vld [vmem:[#allocation2 + $0xc0] sm:$0xff]
        %v1713 = vld [vmem:[#allocation2 + $0xc8] sm:$0xff]
        %v1714 = vld [vmem:[#allocation2 + $0xd0] sm:$0xff]
        %v1715 = vld [vmem:[#allocation2 + $0xd8] sm:$0xff]
        %v1716 = vld [vmem:[#allocation2 + $0xe0] sm:$0xff]
        %v1717 = vld [vmem:[#allocation2 + $0xe8] sm:$0xff]
        %v1718 = vld [vmem:[#allocation2 + $0xf0] sm:$0xff]
        %v1719 = vld [vmem:[#allocation2 + $0xf8] sm:$0xff]
        %1720 = vrot.lane.b32.xlu0 %v941, 80
        %v1721 = vpop.permute.xlu0 %1720
        %1722 = vrot.lane.b32.xlu0 %v942, 80
        %v1723 = vpop.permute.xlu0 %1722
        %1724 = vrot.lane.b32.xlu0 %v943, 80
        %v1725 = vpop.permute.xlu0 %1724
        %1726 = vrot.lane.b32.xlu0 %v944, 80
        %v1727 = vpop.permute.xlu0 %1726
        %1728 = vrot.lane.b32.xlu0 %v945, 80
        %v1729 = vpop.permute.xlu0 %1728
        %1730 = vrot.lane.b32.xlu0 %v946, 80
        %v1731 = vpop.permute.xlu0 %1730
        %1732 = vrot.lane.b32.xlu0 %v947, 80
        %v1733 = vpop.permute.xlu0 %1732
        %1734 = vrot.lane.b32.xlu0 %v948, 80
        %v1735 = vpop.permute.xlu0 %1734
        %1736 = vrot.lane.b32.xlu0 %v949, 80
        %v1737 = vpop.permute.xlu0 %1736
        %1738 = vrot.lane.b32.xlu0 %v950, 80
        %v1739 = vpop.permute.xlu0 %1738
        %1740 = vrot.lane.b32.xlu0 %v951, 80
        %v1741 = vpop.permute.xlu0 %1740
        %1742 = vrot.lane.b32.xlu0 %v952, 80
        %v1743 = vpop.permute.xlu0 %1742
        %1744 = vrot.lane.b32.xlu0 %v953, 80
        %v1745 = vpop.permute.xlu0 %1744
        %1746 = vrot.lane.b32.xlu0 %v954, 80
        %v1747 = vpop.permute.xlu0 %1746
        %1748 = vrot.lane.b32.xlu0 %v955, 80
        %v1749 = vpop.permute.xlu0 %1748
        %1750 = vrot.lane.b32.xlu0 %v956, 80
        %v1751 = vpop.permute.xlu0 %1750
        %1752 = vrot.lane.b32.xlu0 %v957, 80
        %v1753 = vpop.permute.xlu0 %1752
        %1754 = vrot.lane.b32.xlu0 %v958, 80
        %v1755 = vpop.permute.xlu0 %1754
        %1756 = vrot.lane.b32.xlu0 %v959, 80
        %v1757 = vpop.permute.xlu0 %1756
        %1758 = vrot.lane.b32.xlu0 %v960, 80
        %v1759 = vpop.permute.xlu0 %1758
        %1760 = vrot.lane.b32.xlu0 %v961, 80
        %v1761 = vpop.permute.xlu0 %1760
        %1762 = vrot.lane.b32.xlu0 %v962, 80
        %v1763 = vpop.permute.xlu0 %1762
        %1764 = vrot.lane.b32.xlu0 %v963, 80
        %v1765 = vpop.permute.xlu0 %1764
        %1766 = vrot.lane.b32.xlu0 %v964, 80
        %v1767 = vpop.permute.xlu0 %1766
        %1768 = vrot.lane.b32.xlu0 %v965, 80
        %v1769 = vpop.permute.xlu0 %1768
        %1770 = vrot.lane.b32.xlu0 %v966, 80
        %v1771 = vpop.permute.xlu0 %1770
        %1772 = vrot.lane.b32.xlu0 %v967, 80
        %v1773 = vpop.permute.xlu0 %1772
        %1774 = vrot.lane.b32.xlu0 %v968, 80
        %v1775 = vpop.permute.xlu0 %1774
        %1776 = vrot.lane.b32.xlu0 %v969, 80
        %v1777 = vpop.permute.xlu0 %1776
        %1778 = vrot.lane.b32.xlu0 %v970, 80
        %v1779 = vpop.permute.xlu0 %1778
        %1780 = vrot.lane.b32.xlu0 %v971, 80
        %v1781 = vpop.permute.xlu0 %1780
        %1782 = vrot.lane.b32.xlu0 %v972, 80
        %v1783 = vpop.permute.xlu0 %1782
        %1816 = vst.msk [vmem:[#allocation2] sm:$0xff] %vm1101, %v1721
        %1817 = vst.msk [vmem:[#allocation2 + $0x8] sm:$0xff] %vm1101, %v1723
        %1818 = vst.msk [vmem:[#allocation2 + $0x10] sm:$0xff] %vm1101, %v1725
        %1819 = vst.msk [vmem:[#allocation2 + $0x18] sm:$0xff] %vm1101, %v1727
        %1820 = vst.msk [vmem:[#allocation2 + $0x20] sm:$0xff] %vm1101, %v1729
        %1821 = vst.msk [vmem:[#allocation2 + $0x28] sm:$0xff] %vm1101, %v1731
        %1822 = vst.msk [vmem:[#allocation2 + $0x30] sm:$0xff] %vm1101, %v1733
        %1823 = vst.msk [vmem:[#allocation2 + $0x38] sm:$0xff] %vm1101, %v1735
        %1824 = vst.msk [vmem:[#allocation2 + $0x40] sm:$0xff] %vm1101, %v1737
        %1825 = vst.msk [vmem:[#allocation2 + $0x48] sm:$0xff] %vm1101, %v1739
        %1826 = vst.msk [vmem:[#allocation2 + $0x50] sm:$0xff] %vm1101, %v1741
        %1827 = vst.msk [vmem:[#allocation2 + $0x58] sm:$0xff] %vm1101, %v1743
        %1828 = vst.msk [vmem:[#allocation2 + $0x60] sm:$0xff] %vm1101, %v1745
        %1829 = vst.msk [vmem:[#allocation2 + $0x68] sm:$0xff] %vm1101, %v1747
        %1830 = vst.msk [vmem:[#allocation2 + $0x70] sm:$0xff] %vm1101, %v1749
        %1831 = vst.msk [vmem:[#allocation2 + $0x78] sm:$0xff] %vm1101, %v1751
        %1832 = vst.msk [vmem:[#allocation2 + $0x80] sm:$0xff] %vm1101, %v1753
        %1833 = vst.msk [vmem:[#allocation2 + $0x88] sm:$0xff] %vm1101, %v1755
        %1834 = vst.msk [vmem:[#allocation2 + $0x90] sm:$0xff] %vm1101, %v1757
        %1835 = vst.msk [vmem:[#allocation2 + $0x98] sm:$0xff] %vm1101, %v1759
        %1836 = vst.msk [vmem:[#allocation2 + $0xa0] sm:$0xff] %vm1101, %v1761
        %1837 = vst.msk [vmem:[#allocation2 + $0xa8] sm:$0xff] %vm1101, %v1763
        %1838 = vst.msk [vmem:[#allocation2 + $0xb0] sm:$0xff] %vm1101, %v1765
        %1839 = vst.msk [vmem:[#allocation2 + $0xb8] sm:$0xff] %vm1101, %v1767
        %1840 = vst.msk [vmem:[#allocation2 + $0xc0] sm:$0xff] %vm1101, %v1769
        %1841 = vst.msk [vmem:[#allocation2 + $0xc8] sm:$0xff] %vm1101, %v1771
        %1842 = vst.msk [vmem:[#allocation2 + $0xd0] sm:$0xff] %vm1101, %v1773
        %1843 = vst.msk [vmem:[#allocation2 + $0xd8] sm:$0xff] %vm1101, %v1775
        %1844 = vst.msk [vmem:[#allocation2 + $0xe0] sm:$0xff] %vm1101, %v1777
        %1845 = vst.msk [vmem:[#allocation2 + $0xe8] sm:$0xff] %vm1101, %v1779
        %1846 = vst.msk [vmem:[#allocation2 + $0xf0] sm:$0xff] %vm1101, %v1781
        %1847 = vst.msk [vmem:[#allocation2 + $0xf8] sm:$0xff] %vm1101, %v1783
        %v1848 = vld [vmem:[#allocation2] sm:$0xff]
        %v1849 = vld [vmem:[#allocation2 + $0x8] sm:$0x7f]
        %v1850 = vld [vmem:[#allocation2 + $0x10] sm:$0xff]
        %v1851 = vld [vmem:[#allocation2 + $0x18] sm:$0x7f]
        %v1852 = vld [vmem:[#allocation2 + $0x20] sm:$0xff]
        %v1853 = vld [vmem:[#allocation2 + $0x28] sm:$0x7f]
        %v1854 = vld [vmem:[#allocation2 + $0x30] sm:$0xff]
        %v1855 = vld [vmem:[#allocation2 + $0x38] sm:$0x7f]
        %v1856 = vld [vmem:[#allocation2 + $0x40] sm:$0xff]
        %v1857 = vld [vmem:[#allocation2 + $0x48] sm:$0x7f]
        %v1858 = vld [vmem:[#allocation2 + $0x50] sm:$0xff]
        %v1859 = vld [vmem:[#allocation2 + $0x58] sm:$0x7f]
        %v1860 = vld [vmem:[#allocation2 + $0x60] sm:$0xff]
        %v1861 = vld [vmem:[#allocation2 + $0x68] sm:$0x7f]
        %v1862 = vld [vmem:[#allocation2 + $0x70] sm:$0xff]
        %v1863 = vld [vmem:[#allocation2 + $0x78] sm:$0x7f]
        %v1864 = vld [vmem:[#allocation2 + $0x80] sm:$0xff]
        %v1865 = vld [vmem:[#allocation2 + $0x88] sm:$0x7f]
        %v1866 = vld [vmem:[#allocation2 + $0x90] sm:$0xff]
        %v1867 = vld [vmem:[#allocation2 + $0x98] sm:$0x7f]
        %v1868 = vld [vmem:[#allocation2 + $0xa0] sm:$0xff]
        %v1869 = vld [vmem:[#allocation2 + $0xa8] sm:$0x7f]
        %v1870 = vld [vmem:[#allocation2 + $0xb0] sm:$0xff]
        %v1871 = vld [vmem:[#allocation2 + $0xb8] sm:$0x7f]
        %v1872 = vld [vmem:[#allocation2 + $0xc0] sm:$0xff]
        %v1873 = vld [vmem:[#allocation2 + $0xc8] sm:$0x7f]
        %v1874 = vld [vmem:[#allocation2 + $0xd0] sm:$0xff]
        %v1875 = vld [vmem:[#allocation2 + $0xd8] sm:$0x7f]
        %v1876 = vld [vmem:[#allocation2 + $0xe0] sm:$0xff]
        %v1877 = vld [vmem:[#allocation2 + $0xe8] sm:$0x7f]
        %v1878 = vld [vmem:[#allocation2 + $0xf0] sm:$0xff]
        %v1879 = vld [vmem:[#allocation2 + $0xf8] sm:$0x7f]
        %vm1880 = vcmask 1046528
        %v1881 = vrot.slane %v941, 1
        %v1882 = vrot.slane %v942, 1
        %v1883 = vsel %vm1880, %v1881, %v1882
        %v1884 = vrot.slane %v943, 1
        %v1885 = vrot.slane %v944, 1
        %v1886 = vsel %vm1880, %v1884, %v1885
        %v1887 = vrot.slane %v945, 1
        %v1888 = vrot.slane %v946, 1
        %v1889 = vsel %vm1880, %v1887, %v1888
        %v1890 = vrot.slane %v947, 1
        %v1891 = vrot.slane %v948, 1
        %v1892 = vsel %vm1880, %v1890, %v1891
        %v1893 = vrot.slane %v949, 1
        %v1894 = vrot.slane %v950, 1
        %v1895 = vsel %vm1880, %v1893, %v1894
        %v1896 = vrot.slane %v951, 1
        %v1897 = vrot.slane %v952, 1
        %v1898 = vsel %vm1880, %v1896, %v1897
        %v1899 = vrot.slane %v953, 1
        %v1900 = vrot.slane %v954, 1
        %v1901 = vsel %vm1880, %v1899, %v1900
        %v1902 = vrot.slane %v955, 1
        %v1903 = vrot.slane %v956, 1
        %v1904 = vsel %vm1880, %v1902, %v1903
        %v1905 = vrot.slane %v957, 1
        %v1906 = vrot.slane %v958, 1
        %v1907 = vsel %vm1880, %v1905, %v1906
        %v1908 = vrot.slane %v959, 1
        %v1909 = vrot.slane %v960, 1
        %v1910 = vsel %vm1880, %v1908, %v1909
        %v1911 = vrot.slane %v961, 1
        %v1912 = vrot.slane %v962, 1
        %v1913 = vsel %vm1880, %v1911, %v1912
        %v1914 = vrot.slane %v963, 1
        %v1915 = vrot.slane %v964, 1
        %v1916 = vsel %vm1880, %v1914, %v1915
        %v1917 = vrot.slane %v965, 1
        %v1918 = vrot.slane %v966, 1
        %v1919 = vsel %vm1880, %v1917, %v1918
        %v1920 = vrot.slane %v967, 1
        %v1921 = vrot.slane %v968, 1
        %v1922 = vsel %vm1880, %v1920, %v1921
        %v1923 = vrot.slane %v969, 1
        %v1924 = vrot.slane %v970, 1
        %v1925 = vsel %vm1880, %v1923, %v1924
        %v1926 = vrot.slane %v971, 1
        %v1927 = vrot.slane %v972, 1
        %v1928 = vsel %vm1880, %v1926, %v1927
        %1929 = vrot.lane.b32.xlu0 %v1883, 96
        %v1930 = vpop.permute.xlu0 %1929
        %1931 = vrot.lane.b32.xlu0 %v1882, 96
        %v1932 = vpop.permute.xlu0 %1931
        %1933 = vrot.lane.b32.xlu0 %v1886, 96
        %v1934 = vpop.permute.xlu0 %1933
        %1935 = vrot.lane.b32.xlu0 %v1885, 96
        %v1936 = vpop.permute.xlu0 %1935
        %1937 = vrot.lane.b32.xlu0 %v1889, 96
        %v1938 = vpop.permute.xlu0 %1937
        %1939 = vrot.lane.b32.xlu0 %v1888, 96
        %v1940 = vpop.permute.xlu0 %1939
        %1941 = vrot.lane.b32.xlu0 %v1892, 96
        %v1942 = vpop.permute.xlu0 %1941
        %1943 = vrot.lane.b32.xlu0 %v1891, 96
        %v1944 = vpop.permute.xlu0 %1943
        %1945 = vrot.lane.b32.xlu0 %v1895, 96
        %v1946 = vpop.permute.xlu0 %1945
        %1947 = vrot.lane.b32.xlu0 %v1894, 96
        %v1948 = vpop.permute.xlu0 %1947
        %1949 = vrot.lane.b32.xlu0 %v1898, 96
        %v1950 = vpop.permute.xlu0 %1949
        %1951 = vrot.lane.b32.xlu0 %v1897, 96
        %v1952 = vpop.permute.xlu0 %1951
        %1953 = vrot.lane.b32.xlu0 %v1901, 96
        %v1954 = vpop.permute.xlu0 %1953
        %1955 = vrot.lane.b32.xlu0 %v1900, 96
        %v1956 = vpop.permute.xlu0 %1955
        %1957 = vrot.lane.b32.xlu0 %v1904, 96
        %v1958 = vpop.permute.xlu0 %1957
        %1959 = vrot.lane.b32.xlu0 %v1903, 96
        %v1960 = vpop.permute.xlu0 %1959
        %1961 = vrot.lane.b32.xlu0 %v1907, 96
        %v1962 = vpop.permute.xlu0 %1961
        %1963 = vrot.lane.b32.xlu0 %v1906, 96
        %v1964 = vpop.permute.xlu0 %1963
        %1965 = vrot.lane.b32.xlu0 %v1910, 96
        %v1966 = vpop.permute.xlu0 %1965
        %1967 = vrot.lane.b32.xlu0 %v1909, 96
        %v1968 = vpop.permute.xlu0 %1967
        %1969 = vrot.lane.b32.xlu0 %v1913, 96
        %v1970 = vpop.permute.xlu0 %1969
        %1971 = vrot.lane.b32.xlu0 %v1912, 96
        %v1972 = vpop.permute.xlu0 %1971
        %1973 = vrot.lane.b32.xlu0 %v1916, 96
        %v1974 = vpop.permute.xlu0 %1973
        %1975 = vrot.lane.b32.xlu0 %v1915, 96
        %v1976 = vpop.permute.xlu0 %1975
        %1977 = vrot.lane.b32.xlu0 %v1919, 96
        %v1978 = vpop.permute.xlu0 %1977
        %1979 = vrot.lane.b32.xlu0 %v1918, 96
        %v1980 = vpop.permute.xlu0 %1979
        %1981 = vrot.lane.b32.xlu0 %v1922, 96
        %v1982 = vpop.permute.xlu0 %1981
        %1983 = vrot.lane.b32.xlu0 %v1921, 96
        %v1984 = vpop.permute.xlu0 %1983
        %1985 = vrot.lane.b32.xlu0 %v1925, 96
        %v1986 = vpop.permute.xlu0 %1985
        %1987 = vrot.lane.b32.xlu0 %v1924, 96
        %v1988 = vpop.permute.xlu0 %1987
        %1989 = vrot.lane.b32.xlu0 %v1928, 96
        %v1990 = vpop.permute.xlu0 %1989
        %1991 = vrot.lane.b32.xlu0 %v1927, 96
        %v1992 = vpop.permute.xlu0 %1991
        %v2025 = vadd.f32 %v1848, %v1930
        %v2026 = vadd.f32 %v1849, %v1932
        %v2027 = vadd.f32 %v1850, %v1934
        %v2028 = vadd.f32 %v1851, %v1936
        %v2029 = vadd.f32 %v1852, %v1938
        %v2030 = vadd.f32 %v1853, %v1940
        %v2031 = vadd.f32 %v1854, %v1942
        %v2032 = vadd.f32 %v1855, %v1944
        %v2033 = vadd.f32 %v1856, %v1946
        %v2034 = vadd.f32 %v1857, %v1948
        %v2035 = vadd.f32 %v1858, %v1950
        %v2036 = vadd.f32 %v1859, %v1952
        %v2037 = vadd.f32 %v1860, %v1954
        %v2038 = vadd.f32 %v1861, %v1956
        %v2039 = vadd.f32 %v1862, %v1958
        %v2040 = vadd.f32 %v1863, %v1960
        %v2041 = vadd.f32 %v1864, %v1962
        %v2042 = vadd.f32 %v1865, %v1964
        %v2043 = vadd.f32 %v1866, %v1966
        %v2044 = vadd.f32 %v1867, %v1968
        %v2045 = vadd.f32 %v1868, %v1970
        %v2046 = vadd.f32 %v1869, %v1972
        %v2047 = vadd.f32 %v1870, %v1974
        %v2048 = vadd.f32 %v1871, %v1976
        %v2049 = vadd.f32 %v1872, %v1978
        %v2050 = vadd.f32 %v1873, %v1980
        %v2051 = vadd.f32 %v1874, %v1982
        %v2052 = vadd.f32 %v1875, %v1984
        %v2053 = vadd.f32 %v1876, %v1986
        %v2054 = vadd.f32 %v1877, %v1988
        %v2055 = vadd.f32 %v1878, %v1990
        %v2056 = vadd.f32 %v1879, %v1992
        %2057 = vst.msk [vmem:[#allocation2] sm:$0xff] %vm1101, %v2025
        %2058 = vst.msk [vmem:[#allocation2 + $0x8] sm:$0x7f] %vm1295, %v2026
        %2059 = vst.msk [vmem:[#allocation2 + $0x10] sm:$0xff] %vm1101, %v2027
        %2060 = vst.msk [vmem:[#allocation2 + $0x18] sm:$0x7f] %vm1295, %v2028
        %2061 = vst.msk [vmem:[#allocation2 + $0x20] sm:$0xff] %vm1101, %v2029
        %2062 = vst.msk [vmem:[#allocation2 + $0x28] sm:$0x7f] %vm1295, %v2030
        %2063 = vst.msk [vmem:[#allocation2 + $0x30] sm:$0xff] %vm1101, %v2031
        %2064 = vst.msk [vmem:[#allocation2 + $0x38] sm:$0x7f] %vm1295, %v2032
        %2065 = vst.msk [vmem:[#allocation2 + $0x40] sm:$0xff] %vm1101, %v2033
        %2066 = vst.msk [vmem:[#allocation2 + $0x48] sm:$0x7f] %vm1295, %v2034
        %2067 = vst.msk [vmem:[#allocation2 + $0x50] sm:$0xff] %vm1101, %v2035
        %2068 = vst.msk [vmem:[#allocation2 + $0x58] sm:$0x7f] %vm1295, %v2036
        %2069 = vst.msk [vmem:[#allocation2 + $0x60] sm:$0xff] %vm1101, %v2037
        %2070 = vst.msk [vmem:[#allocation2 + $0x68] sm:$0x7f] %vm1295, %v2038
        %2071 = vst.msk [vmem:[#allocation2 + $0x70] sm:$0xff] %vm1101, %v2039
        %2072 = vst.msk [vmem:[#allocation2 + $0x78] sm:$0x7f] %vm1295, %v2040
        %2073 = vst.msk [vmem:[#allocation2 + $0x80] sm:$0xff] %vm1101, %v2041
        %2074 = vst.msk [vmem:[#allocation2 + $0x88] sm:$0x7f] %vm1295, %v2042
        %2075 = vst.msk [vmem:[#allocation2 + $0x90] sm:$0xff] %vm1101, %v2043
        %2076 = vst.msk [vmem:[#allocation2 + $0x98] sm:$0x7f] %vm1295, %v2044
        %2077 = vst.msk [vmem:[#allocation2 + $0xa0] sm:$0xff] %vm1101, %v2045
        %2078 = vst.msk [vmem:[#allocation2 + $0xa8] sm:$0x7f] %vm1295, %v2046
        %2079 = vst.msk [vmem:[#allocation2 + $0xb0] sm:$0xff] %vm1101, %v2047
        %2080 = vst.msk [vmem:[#allocation2 + $0xb8] sm:$0x7f] %vm1295, %v2048
        %2081 = vst.msk [vmem:[#allocation2 + $0xc0] sm:$0xff] %vm1101, %v2049
        %2082 = vst.msk [vmem:[#allocation2 + $0xc8] sm:$0x7f] %vm1295, %v2050
        %2083 = vst.msk [vmem:[#allocation2 + $0xd0] sm:$0xff] %vm1101, %v2051
        %2084 = vst.msk [vmem:[#allocation2 + $0xd8] sm:$0x7f] %vm1295, %v2052
        %2085 = vst.msk [vmem:[#allocation2 + $0xe0] sm:$0xff] %vm1101, %v2053
        %2086 = vst.msk [vmem:[#allocation2 + $0xe8] sm:$0x7f] %vm1295, %v2054
        %2087 = vst.msk [vmem:[#allocation2 + $0xf0] sm:$0xff] %vm1101, %v2055
        %2088 = vst.msk [vmem:[#allocation2 + $0xf8] sm:$0x7f] %vm1295, %v2056
        %v2089 = vld [vmem:[%s1327] sm:$0xff]
        %v2090 = vld [vmem:[%s1327 + $0x8] sm:$0x7f]
        %v2091 = vld [vmem:[%s1327 + $0x10] sm:$0xff]
        %v2092 = vld [vmem:[%s1327 + $0x18] sm:$0x7f]
        %v2093 = vld [vmem:[%s1327 + $0x20] sm:$0xff]
        %v2094 = vld [vmem:[%s1327 + $0x28] sm:$0x7f]
        %v2095 = vld [vmem:[%s1327 + $0x30] sm:$0xff]
        %v2096 = vld [vmem:[%s1327 + $0x38] sm:$0x7f]
        %v2097 = vld [vmem:[%s1327 + $0x40] sm:$0xff]
        %v2098 = vld [vmem:[%s1327 + $0x48] sm:$0x7f]
        %v2099 = vld [vmem:[%s1327 + $0x50] sm:$0xff]
        %v2100 = vld [vmem:[%s1327 + $0x58] sm:$0x7f]
        %v2101 = vld [vmem:[%s1327 + $0x60] sm:$0xff]
        %v2102 = vld [vmem:[%s1327 + $0x68] sm:$0x7f]
        %v2103 = vld [vmem:[%s1327 + $0x70] sm:$0xff]
        %v2104 = vld [vmem:[%s1327 + $0x78] sm:$0x7f]
        %v2105 = vld [vmem:[%s1327 + $0x80] sm:$0xff]
        %v2106 = vld [vmem:[%s1327 + $0x88] sm:$0x7f]
        %v2107 = vld [vmem:[%s1327 + $0x90] sm:$0xff]
        %v2108 = vld [vmem:[%s1327 + $0x98] sm:$0x7f]
        %v2109 = vld [vmem:[%s1327 + $0xa0] sm:$0xff]
        %v2110 = vld [vmem:[%s1327 + $0xa8] sm:$0x7f]
        %v2111 = vld [vmem:[%s1327 + $0xb0] sm:$0xff]
        %v2112 = vld [vmem:[%s1327 + $0xb8] sm:$0x7f]
        %v2113 = vld [vmem:[%s1327 + $0xc0] sm:$0xff]
        %v2114 = vld [vmem:[%s1327 + $0xc8] sm:$0x7f]
        %v2115 = vld [vmem:[%s1327 + $0xd0] sm:$0xff]
        %v2116 = vld [vmem:[%s1327 + $0xd8] sm:$0x7f]
        %v2117 = vld [vmem:[%s1327 + $0xe0] sm:$0xff]
        %v2118 = vld [vmem:[%s1327 + $0xe8] sm:$0x7f]
        %2119 = vrot.lane.b32.xlu0 %v1883, 32
        %v2120 = vpop.permute.xlu0 %2119
        %2121 = vrot.lane.b32.xlu0 %v1882, 32
        %v2122 = vpop.permute.xlu0 %2121
        %2123 = vrot.lane.b32.xlu0 %v1886, 32
        %v2124 = vpop.permute.xlu0 %2123
        %2125 = vrot.lane.b32.xlu0 %v1885, 32
        %v2126 = vpop.permute.xlu0 %2125
        %2127 = vrot.lane.b32.xlu0 %v1889, 32
        %v2128 = vpop.permute.xlu0 %2127
        %2129 = vrot.lane.b32.xlu0 %v1888, 32
        %v2130 = vpop.permute.xlu0 %2129
        %2131 = vrot.lane.b32.xlu0 %v1892, 32
        %v2132 = vpop.permute.xlu0 %2131
        %2133 = vrot.lane.b32.xlu0 %v1891, 32
        %v2134 = vpop.permute.xlu0 %2133
        %2135 = vrot.lane.b32.xlu0 %v1895, 32
        %v2136 = vpop.permute.xlu0 %2135
        %2137 = vrot.lane.b32.xlu0 %v1894, 32
        %v2138 = vpop.permute.xlu0 %2137
        %2139 = vrot.lane.b32.xlu0 %v1898, 32
        %v2140 = vpop.permute.xlu0 %2139
        %2141 = vrot.lane.b32.xlu0 %v1897, 32
        %v2142 = vpop.permute.xlu0 %2141
        %2143 = vrot.lane.b32.xlu0 %v1901, 32
        %v2144 = vpop.permute.xlu0 %2143
        %2145 = vrot.lane.b32.xlu0 %v1900, 32
        %v2146 = vpop.permute.xlu0 %2145
        %2147 = vrot.lane.b32.xlu0 %v1904, 32
        %v2148 = vpop.permute.xlu0 %2147
        %2149 = vrot.lane.b32.xlu0 %v1903, 32
        %v2150 = vpop.permute.xlu0 %2149
        %2151 = vrot.lane.b32.xlu0 %v1907, 32
        %v2152 = vpop.permute.xlu0 %2151
        %2153 = vrot.lane.b32.xlu0 %v1906, 32
        %v2154 = vpop.permute.xlu0 %2153
        %2155 = vrot.lane.b32.xlu0 %v1910, 32
        %v2156 = vpop.permute.xlu0 %2155
        %2157 = vrot.lane.b32.xlu0 %v1909, 32
        %v2158 = vpop.permute.xlu0 %2157
        %2159 = vrot.lane.b32.xlu0 %v1913, 32
        %v2160 = vpop.permute.xlu0 %2159
        %2161 = vrot.lane.b32.xlu0 %v1912, 32
        %v2162 = vpop.permute.xlu0 %2161
        %2163 = vrot.lane.b32.xlu0 %v1916, 32
        %v2164 = vpop.permute.xlu0 %2163
        %2165 = vrot.lane.b32.xlu0 %v1915, 32
        %v2166 = vpop.permute.xlu0 %2165
        %2167 = vrot.lane.b32.xlu0 %v1919, 32
        %v2168 = vpop.permute.xlu0 %2167
        %2169 = vrot.lane.b32.xlu0 %v1918, 32
        %v2170 = vpop.permute.xlu0 %2169
        %2171 = vrot.lane.b32.xlu0 %v1922, 32
        %v2172 = vpop.permute.xlu0 %2171
        %2173 = vrot.lane.b32.xlu0 %v1921, 32
        %v2174 = vpop.permute.xlu0 %2173
        %2175 = vrot.lane.b32.xlu0 %v1925, 32
        %v2176 = vpop.permute.xlu0 %2175
        %2177 = vrot.lane.b32.xlu0 %v1924, 32
        %v2178 = vpop.permute.xlu0 %2177
        %v2209 = vadd.f32 %v2089, %v2120
        %v2210 = vadd.f32 %v2090, %v2122
        %v2211 = vadd.f32 %v2091, %v2124
        %v2212 = vadd.f32 %v2092, %v2126
        %v2213 = vadd.f32 %v2093, %v2128
        %v2214 = vadd.f32 %v2094, %v2130
        %v2215 = vadd.f32 %v2095, %v2132
        %v2216 = vadd.f32 %v2096, %v2134
        %v2217 = vadd.f32 %v2097, %v2136
        %v2218 = vadd.f32 %v2098, %v2138
        %v2219 = vadd.f32 %v2099, %v2140
        %v2220 = vadd.f32 %v2100, %v2142
        %v2221 = vadd.f32 %v2101, %v2144
        %v2222 = vadd.f32 %v2102, %v2146
        %v2223 = vadd.f32 %v2103, %v2148
        %v2224 = vadd.f32 %v2104, %v2150
        %v2225 = vadd.f32 %v2105, %v2152
        %v2226 = vadd.f32 %v2106, %v2154
        %v2227 = vadd.f32 %v2107, %v2156
        %v2228 = vadd.f32 %v2108, %v2158
        %v2229 = vadd.f32 %v2109, %v2160
        %v2230 = vadd.f32 %v2110, %v2162
        %v2231 = vadd.f32 %v2111, %v2164
        %v2232 = vadd.f32 %v2112, %v2166
        %v2233 = vadd.f32 %v2113, %v2168
        %v2234 = vadd.f32 %v2114, %v2170
        %v2235 = vadd.f32 %v2115, %v2172
        %v2236 = vadd.f32 %v2116, %v2174
        %v2237 = vadd.f32 %v2117, %v2176
        %v2238 = vadd.f32 %v2118, %v2178
        %2239 = vst.msk [vmem:[%s1327] sm:$0xff] %vm1101, %v2209
        %2240 = vst.msk [vmem:[%s1327 + $0x8] sm:$0x7f] %vm1295, %v2210
        %2241 = vst.msk [vmem:[%s1327 + $0x10] sm:$0xff] %vm1101, %v2211
        %2242 = vst.msk [vmem:[%s1327 + $0x18] sm:$0x7f] %vm1295, %v2212
        %2243 = vst.msk [vmem:[%s1327 + $0x20] sm:$0xff] %vm1101, %v2213
        %2244 = vst.msk [vmem:[%s1327 + $0x28] sm:$0x7f] %vm1295, %v2214
        %2245 = vst.msk [vmem:[%s1327 + $0x30] sm:$0xff] %vm1101, %v2215
        %2246 = vst.msk [vmem:[%s1327 + $0x38] sm:$0x7f] %vm1295, %v2216
        %2247 = vst.msk [vmem:[%s1327 + $0x40] sm:$0xff] %vm1101, %v2217
        %2248 = vst.msk [vmem:[%s1327 + $0x48] sm:$0x7f] %vm1295, %v2218
        %2249 = vst.msk [vmem:[%s1327 + $0x50] sm:$0xff] %vm1101, %v2219
        %2250 = vst.msk [vmem:[%s1327 + $0x58] sm:$0x7f] %vm1295, %v2220
        %2251 = vst.msk [vmem:[%s1327 + $0x60] sm:$0xff] %vm1101, %v2221
        %2252 = vst.msk [vmem:[%s1327 + $0x68] sm:$0x7f] %vm1295, %v2222
        %2253 = vst.msk [vmem:[%s1327 + $0x70] sm:$0xff] %vm1101, %v2223
        %2254 = vst.msk [vmem:[%s1327 + $0x78] sm:$0x7f] %vm1295, %v2224
        %2255 = vst.msk [vmem:[%s1327 + $0x80] sm:$0xff] %vm1101, %v2225
        %2256 = vst.msk [vmem:[%s1327 + $0x88] sm:$0x7f] %vm1295, %v2226
        %2257 = vst.msk [vmem:[%s1327 + $0x90] sm:$0xff] %vm1101, %v2227
        %2258 = vst.msk [vmem:[%s1327 + $0x98] sm:$0x7f] %vm1295, %v2228
        %2259 = vst.msk [vmem:[%s1327 + $0xa0] sm:$0xff] %vm1101, %v2229
        %2260 = vst.msk [vmem:[%s1327 + $0xa8] sm:$0x7f] %vm1295, %v2230
        %2261 = vst.msk [vmem:[%s1327 + $0xb0] sm:$0xff] %vm1101, %v2231
        %2262 = vst.msk [vmem:[%s1327 + $0xb8] sm:$0x7f] %vm1295, %v2232
        %2263 = vst.msk [vmem:[%s1327 + $0xc0] sm:$0xff] %vm1101, %v2233
        %2264 = vst.msk [vmem:[%s1327 + $0xc8] sm:$0x7f] %vm1295, %v2234
        %2265 = vst.msk [vmem:[%s1327 + $0xd0] sm:$0xff] %vm1101, %v2235
        %2266 = vst.msk [vmem:[%s1327 + $0xd8] sm:$0x7f] %vm1295, %v2236
        %2267 = vst.msk [vmem:[%s1327 + $0xe0] sm:$0xff] %vm1101, %v2237
        %2268 = vst.msk [vmem:[%s1327 + $0xe8] sm:$0x7f] %vm1295, %v2238
        %v2269 = vld [vmem:[%s1327] sm:$0xff]
        %v2270 = vld [vmem:[%s1327 + $0x8] sm:$0xff]
        %v2271 = vld [vmem:[%s1327 + $0x10] sm:$0xff]
        %v2272 = vld [vmem:[%s1327 + $0x18] sm:$0xff]
        %v2273 = vld [vmem:[%s1327 + $0x20] sm:$0xff]
        %v2274 = vld [vmem:[%s1327 + $0x28] sm:$0xff]
        %v2275 = vld [vmem:[%s1327 + $0x30] sm:$0xff]
        %v2276 = vld [vmem:[%s1327 + $0x38] sm:$0xff]
        %v2277 = vld [vmem:[%s1327 + $0x40] sm:$0xff]
        %v2278 = vld [vmem:[%s1327 + $0x48] sm:$0xff]
        %v2279 = vld [vmem:[%s1327 + $0x50] sm:$0xff]
        %v2280 = vld [vmem:[%s1327 + $0x58] sm:$0xff]
        %v2281 = vld [vmem:[%s1327 + $0x60] sm:$0xff]
        %v2282 = vld [vmem:[%s1327 + $0x68] sm:$0xff]
        %v2283 = vld [vmem:[%s1327 + $0x70] sm:$0xff]
        %v2284 = vld [vmem:[%s1327 + $0x78] sm:$0xff]
        %v2285 = vld [vmem:[%s1327 + $0x80] sm:$0xff]
        %v2286 = vld [vmem:[%s1327 + $0x88] sm:$0xff]
        %v2287 = vld [vmem:[%s1327 + $0x90] sm:$0xff]
        %v2288 = vld [vmem:[%s1327 + $0x98] sm:$0xff]
        %v2289 = vld [vmem:[%s1327 + $0xa0] sm:$0xff]
        %v2290 = vld [vmem:[%s1327 + $0xa8] sm:$0xff]
        %v2291 = vld [vmem:[%s1327 + $0xb0] sm:$0xff]
        %v2292 = vld [vmem:[%s1327 + $0xb8] sm:$0xff]
        %v2293 = vld [vmem:[%s1327 + $0xc0] sm:$0xff]
        %v2294 = vld [vmem:[%s1327 + $0xc8] sm:$0xff]
        %v2295 = vld [vmem:[%s1327 + $0xd0] sm:$0xff]
        %v2296 = vld [vmem:[%s1327 + $0xd8] sm:$0xff]
        %v2297 = vld [vmem:[%s1327 + $0xe0] sm:$0xff]
        %v2298 = vld [vmem:[%s1327 + $0xe8] sm:$0xff]
        %2299 = vrot.lane.b32.xlu0 %v941, 16
        %v2300 = vpop.permute.xlu0 %2299
        %2301 = vrot.lane.b32.xlu0 %v942, 16
        %v2302 = vpop.permute.xlu0 %2301
        %2303 = vrot.lane.b32.xlu0 %v943, 16
        %v2304 = vpop.permute.xlu0 %2303
        %2305 = vrot.lane.b32.xlu0 %v944, 16
        %v2306 = vpop.permute.xlu0 %2305
        %2307 = vrot.lane.b32.xlu0 %v945, 16
        %v2308 = vpop.permute.xlu0 %2307
        %2309 = vrot.lane.b32.xlu0 %v946, 16
        %v2310 = vpop.permute.xlu0 %2309
        %2311 = vrot.lane.b32.xlu0 %v947, 16
        %v2312 = vpop.permute.xlu0 %2311
        %2313 = vrot.lane.b32.xlu0 %v948, 16
        %v2314 = vpop.permute.xlu0 %2313
        %2315 = vrot.lane.b32.xlu0 %v949, 16
        %v2316 = vpop.permute.xlu0 %2315
        %2317 = vrot.lane.b32.xlu0 %v950, 16
        %v2318 = vpop.permute.xlu0 %2317
        %2319 = vrot.lane.b32.xlu0 %v951, 16
        %v2320 = vpop.permute.xlu0 %2319
        %2321 = vrot.lane.b32.xlu0 %v952, 16
        %v2322 = vpop.permute.xlu0 %2321
        %2323 = vrot.lane.b32.xlu0 %v953, 16
        %v2324 = vpop.permute.xlu0 %2323
        %2325 = vrot.lane.b32.xlu0 %v954, 16
        %v2326 = vpop.permute.xlu0 %2325
        %2327 = vrot.lane.b32.xlu0 %v955, 16
        %v2328 = vpop.permute.xlu0 %2327
        %2329 = vrot.lane.b32.xlu0 %v956, 16
        %v2330 = vpop.permute.xlu0 %2329
        %2331 = vrot.lane.b32.xlu0 %v957, 16
        %v2332 = vpop.permute.xlu0 %2331
        %2333 = vrot.lane.b32.xlu0 %v958, 16
        %v2334 = vpop.permute.xlu0 %2333
        %2335 = vrot.lane.b32.xlu0 %v959, 16
        %v2336 = vpop.permute.xlu0 %2335
        %2337 = vrot.lane.b32.xlu0 %v960, 16
        %v2338 = vpop.permute.xlu0 %2337
        %2339 = vrot.lane.b32.xlu0 %v961, 16
        %v2340 = vpop.permute.xlu0 %2339
        %2341 = vrot.lane.b32.xlu0 %v962, 16
        %v2342 = vpop.permute.xlu0 %2341
        %2343 = vrot.lane.b32.xlu0 %v963, 16
        %v2344 = vpop.permute.xlu0 %2343
        %2345 = vrot.lane.b32.xlu0 %v964, 16
        %v2346 = vpop.permute.xlu0 %2345
        %2347 = vrot.lane.b32.xlu0 %v965, 16
        %v2348 = vpop.permute.xlu0 %2347
        %2349 = vrot.lane.b32.xlu0 %v966, 16
        %v2350 = vpop.permute.xlu0 %2349
        %2351 = vrot.lane.b32.xlu0 %v967, 16
        %v2352 = vpop.permute.xlu0 %2351
        %2353 = vrot.lane.b32.xlu0 %v968, 16
        %v2354 = vpop.permute.xlu0 %2353
        %2355 = vrot.lane.b32.xlu0 %v969, 16
        %v2356 = vpop.permute.xlu0 %2355
        %2357 = vrot.lane.b32.xlu0 %v970, 16
        %v2358 = vpop.permute.xlu0 %2357
        %v2389 = vadd.f32 %v2269, %v2300
        %v2390 = vadd.f32 %v2270, %v2302
        %v2391 = vadd.f32 %v2271, %v2304
        %v2392 = vadd.f32 %v2272, %v2306
        %v2393 = vadd.f32 %v2273, %v2308
        %v2394 = vadd.f32 %v2274, %v2310
        %v2395 = vadd.f32 %v2275, %v2312
        %v2396 = vadd.f32 %v2276, %v2314
        %v2397 = vadd.f32 %v2277, %v2316
        %v2398 = vadd.f32 %v2278, %v2318
        %v2399 = vadd.f32 %v2279, %v2320
        %v2400 = vadd.f32 %v2280, %v2322
        %v2401 = vadd.f32 %v2281, %v2324
        %v2402 = vadd.f32 %v2282, %v2326
        %v2403 = vadd.f32 %v2283, %v2328
        %v2404 = vadd.f32 %v2284, %v2330
        %v2405 = vadd.f32 %v2285, %v2332
        %v2406 = vadd.f32 %v2286, %v2334
        %v2407 = vadd.f32 %v2287, %v2336
        %v2408 = vadd.f32 %v2288, %v2338
        %v2409 = vadd.f32 %v2289, %v2340
        %v2410 = vadd.f32 %v2290, %v2342
        %v2411 = vadd.f32 %v2291, %v2344
        %v2412 = vadd.f32 %v2292, %v2346
        %v2413 = vadd.f32 %v2293, %v2348
        %v2414 = vadd.f32 %v2294, %v2350
        %v2415 = vadd.f32 %v2295, %v2352
        %v2416 = vadd.f32 %v2296, %v2354
        %v2417 = vadd.f32 %v2297, %v2356
        %v2418 = vadd.f32 %v2298, %v2358
        %2419 = vst.msk [vmem:[%s1327] sm:$0xff] %vm1101, %v2389
        %2420 = vst.msk [vmem:[%s1327 + $0x8] sm:$0xff] %vm1101, %v2390
        %2421 = vst.msk [vmem:[%s1327 + $0x10] sm:$0xff] %vm1101, %v2391
        %2422 = vst.msk [vmem:[%s1327 + $0x18] sm:$0xff] %vm1101, %v2392
        %2423 = vst.msk [vmem:[%s1327 + $0x20] sm:$0xff] %vm1101, %v2393
        %2424 = vst.msk [vmem:[%s1327 + $0x28] sm:$0xff] %vm1101, %v2394
        %2425 = vst.msk [vmem:[%s1327 + $0x30] sm:$0xff] %vm1101, %v2395
        %2426 = vst.msk [vmem:[%s1327 + $0x38] sm:$0xff] %vm1101, %v2396
        %2427 = vst.msk [vmem:[%s1327 + $0x40] sm:$0xff] %vm1101, %v2397
        %2428 = vst.msk [vmem:[%s1327 + $0x48] sm:$0xff] %vm1101, %v2398
        %2429 = vst.msk [vmem:[%s1327 + $0x50] sm:$0xff] %vm1101, %v2399
        %2430 = vst.msk [vmem:[%s1327 + $0x58] sm:$0xff] %vm1101, %v2400
        %2431 = vst.msk [vmem:[%s1327 + $0x60] sm:$0xff] %vm1101, %v2401
        %2432 = vst.msk [vmem:[%s1327 + $0x68] sm:$0xff] %vm1101, %v2402
        %2433 = vst.msk [vmem:[%s1327 + $0x70] sm:$0xff] %vm1101, %v2403
        %2434 = vst.msk [vmem:[%s1327 + $0x78] sm:$0xff] %vm1101, %v2404
        %2435 = vst.msk [vmem:[%s1327 + $0x80] sm:$0xff] %vm1101, %v2405
        %2436 = vst.msk [vmem:[%s1327 + $0x88] sm:$0xff] %vm1101, %v2406
        %2437 = vst.msk [vmem:[%s1327 + $0x90] sm:$0xff] %vm1101, %v2407
        %2438 = vst.msk [vmem:[%s1327 + $0x98] sm:$0xff] %vm1101, %v2408
        %2439 = vst.msk [vmem:[%s1327 + $0xa0] sm:$0xff] %vm1101, %v2409
        %2440 = vst.msk [vmem:[%s1327 + $0xa8] sm:$0xff] %vm1101, %v2410
        %2441 = vst.msk [vmem:[%s1327 + $0xb0] sm:$0xff] %vm1101, %v2411
        %2442 = vst.msk [vmem:[%s1327 + $0xb8] sm:$0xff] %vm1101, %v2412
        %2443 = vst.msk [vmem:[%s1327 + $0xc0] sm:$0xff] %vm1101, %v2413
        %2444 = vst.msk [vmem:[%s1327 + $0xc8] sm:$0xff] %vm1101, %v2414
        %2445 = vst.msk [vmem:[%s1327 + $0xd0] sm:$0xff] %vm1101, %v2415
        %2446 = vst.msk [vmem:[%s1327 + $0xd8] sm:$0xff] %vm1101, %v2416
        %2447 = vst.msk [vmem:[%s1327 + $0xe0] sm:$0xff] %vm1101, %v2417
        %2448 = vst.msk [vmem:[%s1327 + $0xe8] sm:$0xff] %vm1101, %v2418
        %v2449 = vld [vmem:[#allocation2] sm:$0xff]
        %v2450 = vld [vmem:[#allocation2 + $0x8] sm:$0xff]
        %v2451 = vld [vmem:[#allocation2 + $0x10] sm:$0xff]
        %v2452 = vld [vmem:[#allocation2 + $0x18] sm:$0xff]
        %v2453 = vld [vmem:[#allocation2 + $0x20] sm:$0xff]
        %v2454 = vld [vmem:[#allocation2 + $0x28] sm:$0xff]
        %v2455 = vld [vmem:[#allocation2 + $0x30] sm:$0xff]
        %v2456 = vld [vmem:[#allocation2 + $0x38] sm:$0xff]
        %v2457 = vld [vmem:[#allocation2 + $0x40] sm:$0xff]
        %v2458 = vld [vmem:[#allocation2 + $0x48] sm:$0xff]
        %v2459 = vld [vmem:[#allocation2 + $0x50] sm:$0xff]
        %v2460 = vld [vmem:[#allocation2 + $0x58] sm:$0xff]
        %v2461 = vld [vmem:[#allocation2 + $0x60] sm:$0xff]
        %v2462 = vld [vmem:[#allocation2 + $0x68] sm:$0xff]
        %v2463 = vld [vmem:[#allocation2 + $0x70] sm:$0xff]
        %v2464 = vld [vmem:[#allocation2 + $0x78] sm:$0xff]
        %v2465 = vld [vmem:[#allocation2 + $0x80] sm:$0xff]
        %v2466 = vld [vmem:[#allocation2 + $0x88] sm:$0xff]
        %v2467 = vld [vmem:[#allocation2 + $0x90] sm:$0xff]
        %v2468 = vld [vmem:[#allocation2 + $0x98] sm:$0xff]
        %v2469 = vld [vmem:[#allocation2 + $0xa0] sm:$0xff]
        %v2470 = vld [vmem:[#allocation2 + $0xa8] sm:$0xff]
        %v2471 = vld [vmem:[#allocation2 + $0xb0] sm:$0xff]
        %v2472 = vld [vmem:[#allocation2 + $0xb8] sm:$0xff]
        %v2473 = vld [vmem:[#allocation2 + $0xc0] sm:$0xff]
        %v2474 = vld [vmem:[#allocation2 + $0xc8] sm:$0xff]
        %v2475 = vld [vmem:[#allocation2 + $0xd0] sm:$0xff]
        %v2476 = vld [vmem:[#allocation2 + $0xd8] sm:$0xff]
        %v2477 = vld [vmem:[#allocation2 + $0xe0] sm:$0xff]
        %v2478 = vld [vmem:[#allocation2 + $0xe8] sm:$0xff]
        %v2479 = vld [vmem:[#allocation2 + $0xf0] sm:$0xff]
        %v2480 = vld [vmem:[#allocation2 + $0xf8] sm:$0xff]
        %v2481 = vmax.f32 %v1688, %v2449
        %v2482 = vmax.f32 %v1689, %v2450
        %v2483 = vmax.f32 %v1690, %v2451
        %v2484 = vmax.f32 %v1691, %v2452
        %v2485 = vmax.f32 %v1692, %v2453
        %v2486 = vmax.f32 %v1693, %v2454
        %v2487 = vmax.f32 %v1694, %v2455
        %v2488 = vmax.f32 %v1695, %v2456
        %v2489 = vmax.f32 %v1696, %v2457
        %v2490 = vmax.f32 %v1697, %v2458
        %v2491 = vmax.f32 %v1698, %v2459
        %v2492 = vmax.f32 %v1699, %v2460
        %v2493 = vmax.f32 %v1700, %v2461
        %v2494 = vmax.f32 %v1701, %v2462
        %v2495 = vmax.f32 %v1702, %v2463
        %v2496 = vmax.f32 %v1703, %v2464
        %v2497 = vmax.f32 %v1704, %v2465
        %v2498 = vmax.f32 %v1705, %v2466
        %v2499 = vmax.f32 %v1706, %v2467
        %v2500 = vmax.f32 %v1707, %v2468
        %v2501 = vmax.f32 %v1708, %v2469
        %v2502 = vmax.f32 %v1709, %v2470
        %v2503 = vmax.f32 %v1710, %v2471
        %v2504 = vmax.f32 %v1711, %v2472
        %v2505 = vmax.f32 %v1712, %v2473
        %v2506 = vmax.f32 %v1713, %v2474
        %v2507 = vmax.f32 %v1714, %v2475
        %v2508 = vmax.f32 %v1715, %v2476
        %v2509 = vmax.f32 %v1716, %v2477
        %v2510 = vmax.f32 %v1717, %v2478
        %v2511 = vmax.f32 %v1718, %v2479
        %v2512 = vmax.f32 %v1719, %v2480
        %2513 = vrot.lane.b32.xlu0 %v941, 56
        %v2514 = vpop.permute.xlu0 %2513
        %2515 = vrot.lane.b32.xlu0 %v942, 56
        %v2516 = vpop.permute.xlu0 %2515
        %2517 = vrot.lane.b32.xlu0 %v943, 56
        %v2518 = vpop.permute.xlu0 %2517
        %2519 = vrot.lane.b32.xlu0 %v944, 56
        %v2520 = vpop.permute.xlu0 %2519
        %2521 = vrot.lane.b32.xlu0 %v945, 56
        %v2522 = vpop.permute.xlu0 %2521
        %2523 = vrot.lane.b32.xlu0 %v946, 56
        %v2524 = vpop.permute.xlu0 %2523
        %2525 = vrot.lane.b32.xlu0 %v947, 56
        %v2526 = vpop.permute.xlu0 %2525
        %2527 = vrot.lane.b32.xlu0 %v948, 56
        %v2528 = vpop.permute.xlu0 %2527
        %2529 = vrot.lane.b32.xlu0 %v949, 56
        %v2530 = vpop.permute.xlu0 %2529
        %2531 = vrot.lane.b32.xlu0 %v950, 56
        %v2532 = vpop.permute.xlu0 %2531
        %2533 = vrot.lane.b32.xlu0 %v951, 56
        %v2534 = vpop.permute.xlu0 %2533
        %2535 = vrot.lane.b32.xlu0 %v952, 56
        %v2536 = vpop.permute.xlu0 %2535
        %2537 = vrot.lane.b32.xlu0 %v953, 56
        %v2538 = vpop.permute.xlu0 %2537
        %2539 = vrot.lane.b32.xlu0 %v954, 56
        %v2540 = vpop.permute.xlu0 %2539
        %2541 = vrot.lane.b32.xlu0 %v955, 56
        %v2542 = vpop.permute.xlu0 %2541
        %2543 = vrot.lane.b32.xlu0 %v956, 56
        %v2544 = vpop.permute.xlu0 %2543
        %2545 = vrot.lane.b32.xlu0 %v957, 56
        %v2546 = vpop.permute.xlu0 %2545
        %2547 = vrot.lane.b32.xlu0 %v958, 56
        %v2548 = vpop.permute.xlu0 %2547
        %2549 = vrot.lane.b32.xlu0 %v959, 56
        %v2550 = vpop.permute.xlu0 %2549
        %2551 = vrot.lane.b32.xlu0 %v960, 56
        %v2552 = vpop.permute.xlu0 %2551
        %2553 = vrot.lane.b32.xlu0 %v961, 56
        %v2554 = vpop.permute.xlu0 %2553
        %2555 = vrot.lane.b32.xlu0 %v962, 56
        %v2556 = vpop.permute.xlu0 %2555
        %2557 = vrot.lane.b32.xlu0 %v963, 56
        %v2558 = vpop.permute.xlu0 %2557
        %2559 = vrot.lane.b32.xlu0 %v964, 56
        %v2560 = vpop.permute.xlu0 %2559
        %2561 = vrot.lane.b32.xlu0 %v965, 56
        %v2562 = vpop.permute.xlu0 %2561
        %2563 = vrot.lane.b32.xlu0 %v966, 56
        %v2564 = vpop.permute.xlu0 %2563
        %2565 = vrot.lane.b32.xlu0 %v967, 56
        %v2566 = vpop.permute.xlu0 %2565
        %2567 = vrot.lane.b32.xlu0 %v968, 56
        %v2568 = vpop.permute.xlu0 %2567
        %2569 = vrot.lane.b32.xlu0 %v969, 56
        %v2570 = vpop.permute.xlu0 %2569
        %2571 = vrot.lane.b32.xlu0 %v970, 56
        %v2572 = vpop.permute.xlu0 %2571
        %2573 = vrot.lane.b32.xlu0 %v971, 56
        %v2574 = vpop.permute.xlu0 %2573
        %2575 = vrot.lane.b32.xlu0 %v972, 56
        %v2576 = vpop.permute.xlu0 %2575
        %2609 = vst.msk [vmem:[#allocation2] sm:$0xff] %vm1101, %v2514
        %2610 = vst.msk [vmem:[#allocation2 + $0x8] sm:$0xff] %vm1101, %v2516
        %2611 = vst.msk [vmem:[#allocation2 + $0x10] sm:$0xff] %vm1101, %v2518
        %2612 = vst.msk [vmem:[#allocation2 + $0x18] sm:$0xff] %vm1101, %v2520
        %2613 = vst.msk [vmem:[#allocation2 + $0x20] sm:$0xff] %vm1101, %v2522
        %2614 = vst.msk [vmem:[#allocation2 + $0x28] sm:$0xff] %vm1101, %v2524
        %2615 = vst.msk [vmem:[#allocation2 + $0x30] sm:$0xff] %vm1101, %v2526
        %2616 = vst.msk [vmem:[#allocation2 + $0x38] sm:$0xff] %vm1101, %v2528
        %2617 = vst.msk [vmem:[#allocation2 + $0x40] sm:$0xff] %vm1101, %v2530
        %2618 = vst.msk [vmem:[#allocation2 + $0x48] sm:$0xff] %vm1101, %v2532
        %2619 = vst.msk [vmem:[#allocation2 + $0x50] sm:$0xff] %vm1101, %v2534
        %2620 = vst.msk [vmem:[#allocation2 + $0x58] sm:$0xff] %vm1101, %v2536
        %2621 = vst.msk [vmem:[#allocation2 + $0x60] sm:$0xff] %vm1101, %v2538
        %2622 = vst.msk [vmem:[#allocation2 + $0x68] sm:$0xff] %vm1101, %v2540
        %2623 = vst.msk [vmem:[#allocation2 + $0x70] sm:$0xff] %vm1101, %v2542
        %2624 = vst.msk [vmem:[#allocation2 + $0x78] sm:$0xff] %vm1101, %v2544
        %2625 = vst.msk [vmem:[#allocation2 + $0x80] sm:$0xff] %vm1101, %v2546
        %2626 = vst.msk [vmem:[#allocation2 + $0x88] sm:$0xff] %vm1101, %v2548
        %2627 = vst.msk [vmem:[#allocation2 + $0x90] sm:$0xff] %vm1101, %v2550
        %2628 = vst.msk [vmem:[#allocation2 + $0x98] sm:$0xff] %vm1101, %v2552
        %2629 = vst.msk [vmem:[#allocation2 + $0xa0] sm:$0xff] %vm1101, %v2554
        %2630 = vst.msk [vmem:[#allocation2 + $0xa8] sm:$0xff] %vm1101, %v2556
        %2631 = vst.msk [vmem:[#allocation2 + $0xb0] sm:$0xff] %vm1101, %v2558
        %2632 = vst.msk [vmem:[#allocation2 + $0xb8] sm:$0xff] %vm1101, %v2560
        %2633 = vst.msk [vmem:[#allocation2 + $0xc0] sm:$0xff] %vm1101, %v2562
        %2634 = vst.msk [vmem:[#allocation2 + $0xc8] sm:$0xff] %vm1101, %v2564
        %2635 = vst.msk [vmem:[#allocation2 + $0xd0] sm:$0xff] %vm1101, %v2566
        %2636 = vst.msk [vmem:[#allocation2 + $0xd8] sm:$0xff] %vm1101, %v2568
        %2637 = vst.msk [vmem:[#allocation2 + $0xe0] sm:$0xff] %vm1101, %v2570
        %2638 = vst.msk [vmem:[#allocation2 + $0xe8] sm:$0xff] %vm1101, %v2572
        %2639 = vst.msk [vmem:[#allocation2 + $0xf0] sm:$0xff] %vm1101, %v2574
        %2640 = vst.msk [vmem:[#allocation2 + $0xf8] sm:$0xff] %vm1101, %v2576
        %v2641 = vld [vmem:[#allocation2] sm:$0xff]
        %v2642 = vld [vmem:[#allocation2 + $0x8] sm:$0xff]
        %v2643 = vld [vmem:[#allocation2 + $0x10] sm:$0xff]
        %v2644 = vld [vmem:[#allocation2 + $0x18] sm:$0xff]
        %v2645 = vld [vmem:[#allocation2 + $0x20] sm:$0xff]
        %v2646 = vld [vmem:[#allocation2 + $0x28] sm:$0xff]
        %v2647 = vld [vmem:[#allocation2 + $0x30] sm:$0xff]
        %v2648 = vld [vmem:[#allocation2 + $0x38] sm:$0xff]
        %v2649 = vld [vmem:[#allocation2 + $0x40] sm:$0xff]
        %v2650 = vld [vmem:[#allocation2 + $0x48] sm:$0xff]
        %v2651 = vld [vmem:[#allocation2 + $0x50] sm:$0xff]
        %v2652 = vld [vmem:[#allocation2 + $0x58] sm:$0xff]
        %v2653 = vld [vmem:[#allocation2 + $0x60] sm:$0xff]
        %v2654 = vld [vmem:[#allocation2 + $0x68] sm:$0xff]
        %v2655 = vld [vmem:[#allocation2 + $0x70] sm:$0xff]
        %v2656 = vld [vmem:[#allocation2 + $0x78] sm:$0xff]
        %v2657 = vld [vmem:[#allocation2 + $0x80] sm:$0xff]
        %v2658 = vld [vmem:[#allocation2 + $0x88] sm:$0xff]
        %v2659 = vld [vmem:[#allocation2 + $0x90] sm:$0xff]
        %v2660 = vld [vmem:[#allocation2 + $0x98] sm:$0xff]
        %v2661 = vld [vmem:[#allocation2 + $0xa0] sm:$0xff]
        %v2662 = vld [vmem:[#allocation2 + $0xa8] sm:$0xff]
        %v2663 = vld [vmem:[#allocation2 + $0xb0] sm:$0xff]
        %v2664 = vld [vmem:[#allocation2 + $0xb8] sm:$0xff]
        %v2665 = vld [vmem:[#allocation2 + $0xc0] sm:$0xff]
        %v2666 = vld [vmem:[#allocation2 + $0xc8] sm:$0xff]
        %v2667 = vld [vmem:[#allocation2 + $0xd0] sm:$0xff]
        %v2668 = vld [vmem:[#allocation2 + $0xd8] sm:$0xff]
        %v2669 = vld [vmem:[#allocation2 + $0xe0] sm:$0xff]
        %v2670 = vld [vmem:[#allocation2 + $0xe8] sm:$0xff]
        %2671 = vrot.lane.b32.xlu0 %v943, 120
        %v2672 = vpop.permute.xlu0 %2671
        %2673 = vrot.lane.b32.xlu0 %v944, 120
        %v2674 = vpop.permute.xlu0 %2673
        %2675 = vrot.lane.b32.xlu0 %v945, 120
        %v2676 = vpop.permute.xlu0 %2675
        %2677 = vrot.lane.b32.xlu0 %v946, 120
        %v2678 = vpop.permute.xlu0 %2677
        %2679 = vrot.lane.b32.xlu0 %v947, 120
        %v2680 = vpop.permute.xlu0 %2679
        %2681 = vrot.lane.b32.xlu0 %v948, 120
        %v2682 = vpop.permute.xlu0 %2681
        %2683 = vrot.lane.b32.xlu0 %v949, 120
        %v2684 = vpop.permute.xlu0 %2683
        %2685 = vrot.lane.b32.xlu0 %v950, 120
        %v2686 = vpop.permute.xlu0 %2685
        %2687 = vrot.lane.b32.xlu0 %v951, 120
        %v2688 = vpop.permute.xlu0 %2687
        %2689 = vrot.lane.b32.xlu0 %v952, 120
        %v2690 = vpop.permute.xlu0 %2689
        %2691 = vrot.lane.b32.xlu0 %v953, 120
        %v2692 = vpop.permute.xlu0 %2691
        %2693 = vrot.lane.b32.xlu0 %v954, 120
        %v2694 = vpop.permute.xlu0 %2693
        %2695 = vrot.lane.b32.xlu0 %v955, 120
        %v2696 = vpop.permute.xlu0 %2695
        %2697 = vrot.lane.b32.xlu0 %v956, 120
        %v2698 = vpop.permute.xlu0 %2697
        %2699 = vrot.lane.b32.xlu0 %v957, 120
        %v2700 = vpop.permute.xlu0 %2699
        %2701 = vrot.lane.b32.xlu0 %v958, 120
        %v2702 = vpop.permute.xlu0 %2701
        %2703 = vrot.lane.b32.xlu0 %v959, 120
        %v2704 = vpop.permute.xlu0 %2703
        %2705 = vrot.lane.b32.xlu0 %v960, 120
        %v2706 = vpop.permute.xlu0 %2705
        %2707 = vrot.lane.b32.xlu0 %v961, 120
        %v2708 = vpop.permute.xlu0 %2707
        %2709 = vrot.lane.b32.xlu0 %v962, 120
        %v2710 = vpop.permute.xlu0 %2709
        %2711 = vrot.lane.b32.xlu0 %v963, 120
        %v2712 = vpop.permute.xlu0 %2711
        %2713 = vrot.lane.b32.xlu0 %v964, 120
        %v2714 = vpop.permute.xlu0 %2713
        %2715 = vrot.lane.b32.xlu0 %v965, 120
        %v2716 = vpop.permute.xlu0 %2715
        %2717 = vrot.lane.b32.xlu0 %v966, 120
        %v2718 = vpop.permute.xlu0 %2717
        %2719 = vrot.lane.b32.xlu0 %v967, 120
        %v2720 = vpop.permute.xlu0 %2719
        %2721 = vrot.lane.b32.xlu0 %v968, 120
        %v2722 = vpop.permute.xlu0 %2721
        %2723 = vrot.lane.b32.xlu0 %v969, 120
        %v2724 = vpop.permute.xlu0 %2723
        %2725 = vrot.lane.b32.xlu0 %v970, 120
        %v2726 = vpop.permute.xlu0 %2725
        %2727 = vrot.lane.b32.xlu0 %v971, 120
        %v2728 = vpop.permute.xlu0 %2727
        %2729 = vrot.lane.b32.xlu0 %v972, 120
        %v2730 = vpop.permute.xlu0 %2729
        %v2761 = vadd.f32 %v2641, %v2672
        %v2762 = vadd.f32 %v2642, %v2674
        %v2763 = vadd.f32 %v2643, %v2676
        %v2764 = vadd.f32 %v2644, %v2678
        %v2765 = vadd.f32 %v2645, %v2680
        %v2766 = vadd.f32 %v2646, %v2682
        %v2767 = vadd.f32 %v2647, %v2684
        %v2768 = vadd.f32 %v2648, %v2686
        %v2769 = vadd.f32 %v2649, %v2688
        %v2770 = vadd.f32 %v2650, %v2690
        %v2771 = vadd.f32 %v2651, %v2692
        %v2772 = vadd.f32 %v2652, %v2694
        %v2773 = vadd.f32 %v2653, %v2696
        %v2774 = vadd.f32 %v2654, %v2698
        %v2775 = vadd.f32 %v2655, %v2700
        %v2776 = vadd.f32 %v2656, %v2702
        %v2777 = vadd.f32 %v2657, %v2704
        %v2778 = vadd.f32 %v2658, %v2706
        %v2779 = vadd.f32 %v2659, %v2708
        %v2780 = vadd.f32 %v2660, %v2710
        %v2781 = vadd.f32 %v2661, %v2712
        %v2782 = vadd.f32 %v2662, %v2714
        %v2783 = vadd.f32 %v2663, %v2716
        %v2784 = vadd.f32 %v2664, %v2718
        %v2785 = vadd.f32 %v2665, %v2720
        %v2786 = vadd.f32 %v2666, %v2722
        %v2787 = vadd.f32 %v2667, %v2724
        %v2788 = vadd.f32 %v2668, %v2726
        %v2789 = vadd.f32 %v2669, %v2728
        %v2790 = vadd.f32 %v2670, %v2730
        %2791 = vst.msk [vmem:[#allocation2] sm:$0xff] %vm1101, %v2761
        %2792 = vst.msk [vmem:[#allocation2 + $0x8] sm:$0xff] %vm1101, %v2762
        %2793 = vst.msk [vmem:[#allocation2 + $0x10] sm:$0xff] %vm1101, %v2763
        %2794 = vst.msk [vmem:[#allocation2 + $0x18] sm:$0xff] %vm1101, %v2764
        %2795 = vst.msk [vmem:[#allocation2 + $0x20] sm:$0xff] %vm1101, %v2765
        %2796 = vst.msk [vmem:[#allocation2 + $0x28] sm:$0xff] %vm1101, %v2766
        %2797 = vst.msk [vmem:[#allocation2 + $0x30] sm:$0xff] %vm1101, %v2767
        %2798 = vst.msk [vmem:[#allocation2 + $0x38] sm:$0xff] %vm1101, %v2768
        %2799 = vst.msk [vmem:[#allocation2 + $0x40] sm:$0xff] %vm1101, %v2769
        %2800 = vst.msk [vmem:[#allocation2 + $0x48] sm:$0xff] %vm1101, %v2770
        %2801 = vst.msk [vmem:[#allocation2 + $0x50] sm:$0xff] %vm1101, %v2771
        %2802 = vst.msk [vmem:[#allocation2 + $0x58] sm:$0xff] %vm1101, %v2772
        %2803 = vst.msk [vmem:[#allocation2 + $0x60] sm:$0xff] %vm1101, %v2773
        %2804 = vst.msk [vmem:[#allocation2 + $0x68] sm:$0xff] %vm1101, %v2774
        %2805 = vst.msk [vmem:[#allocation2 + $0x70] sm:$0xff] %vm1101, %v2775
        %2806 = vst.msk [vmem:[#allocation2 + $0x78] sm:$0xff] %vm1101, %v2776
        %2807 = vst.msk [vmem:[#allocation2 + $0x80] sm:$0xff] %vm1101, %v2777
        %2808 = vst.msk [vmem:[#allocation2 + $0x88] sm:$0xff] %vm1101, %v2778
        %2809 = vst.msk [vmem:[#allocation2 + $0x90] sm:$0xff] %vm1101, %v2779
        %2810 = vst.msk [vmem:[#allocation2 + $0x98] sm:$0xff] %vm1101, %v2780
        %2811 = vst.msk [vmem:[#allocation2 + $0xa0] sm:$0xff] %vm1101, %v2781
        %2812 = vst.msk [vmem:[#allocation2 + $0xa8] sm:$0xff] %vm1101, %v2782
        %2813 = vst.msk [vmem:[#allocation2 + $0xb0] sm:$0xff] %vm1101, %v2783
        %2814 = vst.msk [vmem:[#allocation2 + $0xb8] sm:$0xff] %vm1101, %v2784
        %2815 = vst.msk [vmem:[#allocation2 + $0xc0] sm:$0xff] %vm1101, %v2785
        %2816 = vst.msk [vmem:[#allocation2 + $0xc8] sm:$0xff] %vm1101, %v2786
        %2817 = vst.msk [vmem:[#allocation2 + $0xd0] sm:$0xff] %vm1101, %v2787
        %2818 = vst.msk [vmem:[#allocation2 + $0xd8] sm:$0xff] %vm1101, %v2788
        %2819 = vst.msk [vmem:[#allocation2 + $0xe0] sm:$0xff] %vm1101, %v2789
        %2820 = vst.msk [vmem:[#allocation2 + $0xe8] sm:$0xff] %vm1101, %v2790
        %v2821 = vld [vmem:[#allocation2 + $0x1] sm:$0xff]
        %v2822 = vld [vmem:[#allocation2 + $0x9] sm:$0x7f]
        %v2823 = vld [vmem:[#allocation2 + $0x11] sm:$0xff]
        %v2824 = vld [vmem:[#allocation2 + $0x19] sm:$0x7f]
        %v2825 = vld [vmem:[#allocation2 + $0x21] sm:$0xff]
        %v2826 = vld [vmem:[#allocation2 + $0x29] sm:$0x7f]
        %v2827 = vld [vmem:[#allocation2 + $0x31] sm:$0xff]
        %v2828 = vld [vmem:[#allocation2 + $0x39] sm:$0x7f]
        %v2829 = vld [vmem:[#allocation2 + $0x41] sm:$0xff]
        %v2830 = vld [vmem:[#allocation2 + $0x49] sm:$0x7f]
        %v2831 = vld [vmem:[#allocation2 + $0x51] sm:$0xff]
        %v2832 = vld [vmem:[#allocation2 + $0x59] sm:$0x7f]
        %v2833 = vld [vmem:[#allocation2 + $0x61] sm:$0xff]
        %v2834 = vld [vmem:[#allocation2 + $0x69] sm:$0x7f]
        %v2835 = vld [vmem:[#allocation2 + $0x71] sm:$0xff]
        %v2836 = vld [vmem:[#allocation2 + $0x79] sm:$0x7f]
        %v2837 = vld [vmem:[#allocation2 + $0x81] sm:$0xff]
        %v2838 = vld [vmem:[#allocation2 + $0x89] sm:$0x7f]
        %v2839 = vld [vmem:[#allocation2 + $0x91] sm:$0xff]
        %v2840 = vld [vmem:[#allocation2 + $0x99] sm:$0x7f]
        %v2841 = vld [vmem:[#allocation2 + $0xa1] sm:$0xff]
        %v2842 = vld [vmem:[#allocation2 + $0xa9] sm:$0x7f]
        %v2843 = vld [vmem:[#allocation2 + $0xb1] sm:$0xff]
        %v2844 = vld [vmem:[#allocation2 + $0xb9] sm:$0x7f]
        %v2845 = vld [vmem:[#allocation2 + $0xc1] sm:$0xff]
        %v2846 = vld [vmem:[#allocation2 + $0xc9] sm:$0x7f]
        %v2847 = vld [vmem:[#allocation2 + $0xd1] sm:$0xff]
        %v2848 = vld [vmem:[#allocation2 + $0xd9] sm:$0x7f]
        %v2849 = vld [vmem:[#allocation2 + $0xe1] sm:$0xff]
        %v2850 = vld [vmem:[#allocation2 + $0xe9] sm:$0x7f]
        %2851 = vrot.lane.b32.xlu0 %v943, 104
        %v2852 = vpop.permute.xlu0 %2851
        %2853 = vrot.lane.b32.xlu0 %v944, 104
        %v2854 = vpop.permute.xlu0 %2853
        %2855 = vrot.lane.b32.xlu0 %v945, 104
        %v2856 = vpop.permute.xlu0 %2855
        %2857 = vrot.lane.b32.xlu0 %v946, 104
        %v2858 = vpop.permute.xlu0 %2857
        %2859 = vrot.lane.b32.xlu0 %v947, 104
        %v2860 = vpop.permute.xlu0 %2859
        %2861 = vrot.lane.b32.xlu0 %v948, 104
        %v2862 = vpop.permute.xlu0 %2861
        %2863 = vrot.lane.b32.xlu0 %v949, 104
        %v2864 = vpop.permute.xlu0 %2863
        %2865 = vrot.lane.b32.xlu0 %v950, 104
        %v2866 = vpop.permute.xlu0 %2865
        %2867 = vrot.lane.b32.xlu0 %v951, 104
        %v2868 = vpop.permute.xlu0 %2867
        %2869 = vrot.lane.b32.xlu0 %v952, 104
        %v2870 = vpop.permute.xlu0 %2869
        %2871 = vrot.lane.b32.xlu0 %v953, 104
        %v2872 = vpop.permute.xlu0 %2871
        %2873 = vrot.lane.b32.xlu0 %v954, 104
        %v2874 = vpop.permute.xlu0 %2873
        %2875 = vrot.lane.b32.xlu0 %v955, 104
        %v2876 = vpop.permute.xlu0 %2875
        %2877 = vrot.lane.b32.xlu0 %v956, 104
        %v2878 = vpop.permute.xlu0 %2877
        %2879 = vrot.lane.b32.xlu0 %v957, 104
        %v2880 = vpop.permute.xlu0 %2879
        %2881 = vrot.lane.b32.xlu0 %v958, 104
        %v2882 = vpop.permute.xlu0 %2881
        %2883 = vrot.lane.b32.xlu0 %v959, 104
        %v2884 = vpop.permute.xlu0 %2883
        %2885 = vrot.lane.b32.xlu0 %v960, 104
        %v2886 = vpop.permute.xlu0 %2885
        %2887 = vrot.lane.b32.xlu0 %v961, 104
        %v2888 = vpop.permute.xlu0 %2887
        %2889 = vrot.lane.b32.xlu0 %v962, 104
        %v2890 = vpop.permute.xlu0 %2889
        %2891 = vrot.lane.b32.xlu0 %v963, 104
        %v2892 = vpop.permute.xlu0 %2891
        %2893 = vrot.lane.b32.xlu0 %v964, 104
        %v2894 = vpop.permute.xlu0 %2893
        %2895 = vrot.lane.b32.xlu0 %v965, 104
        %v2896 = vpop.permute.xlu0 %2895
        %2897 = vrot.lane.b32.xlu0 %v966, 104
        %v2898 = vpop.permute.xlu0 %2897
        %2899 = vrot.lane.b32.xlu0 %v967, 104
        %v2900 = vpop.permute.xlu0 %2899
        %2901 = vrot.lane.b32.xlu0 %v968, 104
        %v2902 = vpop.permute.xlu0 %2901
        %2903 = vrot.lane.b32.xlu0 %v969, 104
        %v2904 = vpop.permute.xlu0 %2903
        %2905 = vrot.lane.b32.xlu0 %v970, 104
        %v2906 = vpop.permute.xlu0 %2905
        %2907 = vrot.lane.b32.xlu0 %v971, 104
        %v2908 = vpop.permute.xlu0 %2907
        %2909 = vrot.lane.b32.xlu0 %v972, 104
        %v2910 = vpop.permute.xlu0 %2909
        %v2941 = vadd.f32 %v2821, %v2852
        %v2942 = vadd.f32 %v2822, %v2854
        %v2943 = vadd.f32 %v2823, %v2856
        %v2944 = vadd.f32 %v2824, %v2858
        %v2945 = vadd.f32 %v2825, %v2860
        %v2946 = vadd.f32 %v2826, %v2862
        %v2947 = vadd.f32 %v2827, %v2864
        %v2948 = vadd.f32 %v2828, %v2866
        %v2949 = vadd.f32 %v2829, %v2868
        %v2950 = vadd.f32 %v2830, %v2870
        %v2951 = vadd.f32 %v2831, %v2872
        %v2952 = vadd.f32 %v2832, %v2874
        %v2953 = vadd.f32 %v2833, %v2876
        %v2954 = vadd.f32 %v2834, %v2878
        %v2955 = vadd.f32 %v2835, %v2880
        %v2956 = vadd.f32 %v2836, %v2882
        %v2957 = vadd.f32 %v2837, %v2884
        %v2958 = vadd.f32 %v2838, %v2886
        %v2959 = vadd.f32 %v2839, %v2888
        %v2960 = vadd.f32 %v2840, %v2890
        %v2961 = vadd.f32 %v2841, %v2892
        %v2962 = vadd.f32 %v2842, %v2894
        %v2963 = vadd.f32 %v2843, %v2896
        %v2964 = vadd.f32 %v2844, %v2898
        %v2965 = vadd.f32 %v2845, %v2900
        %v2966 = vadd.f32 %v2846, %v2902
        %v2967 = vadd.f32 %v2847, %v2904
        %v2968 = vadd.f32 %v2848, %v2906
        %v2969 = vadd.f32 %v2849, %v2908
        %v2970 = vadd.f32 %v2850, %v2910
        %2971 = vst.msk [vmem:[#allocation2 + $0x1] sm:$0xff] %vm1101, %v2941
        %2972 = vst.msk [vmem:[#allocation2 + $0x9] sm:$0x7f] %vm1295, %v2942
        %2973 = vst.msk [vmem:[#allocation2 + $0x11] sm:$0xff] %vm1101, %v2943
        %2974 = vst.msk [vmem:[#allocation2 + $0x19] sm:$0x7f] %vm1295, %v2944
        %2975 = vst.msk [vmem:[#allocation2 + $0x21] sm:$0xff] %vm1101, %v2945
        %2976 = vst.msk [vmem:[#allocation2 + $0x29] sm:$0x7f] %vm1295, %v2946
        %2977 = vst.msk [vmem:[#allocation2 + $0x31] sm:$0xff] %vm1101, %v2947
        %2978 = vst.msk [vmem:[#allocation2 + $0x39] sm:$0x7f] %vm1295, %v2948
        %2979 = vst.msk [vmem:[#allocation2 + $0x41] sm:$0xff] %vm1101, %v2949
        %2980 = vst.msk [vmem:[#allocation2 + $0x49] sm:$0x7f] %vm1295, %v2950
        %2981 = vst.msk [vmem:[#allocation2 + $0x51] sm:$0xff] %vm1101, %v2951
        %2982 = vst.msk [vmem:[#allocation2 + $0x59] sm:$0x7f] %vm1295, %v2952
        %2983 = vst.msk [vmem:[#allocation2 + $0x61] sm:$0xff] %vm1101, %v2953
        %2984 = vst.msk [vmem:[#allocation2 + $0x69] sm:$0x7f] %vm1295, %v2954
        %2985 = vst.msk [vmem:[#allocation2 + $0x71] sm:$0xff] %vm1101, %v2955
        %2986 = vst.msk [vmem:[#allocation2 + $0x79] sm:$0x7f] %vm1295, %v2956
        %2987 = vst.msk [vmem:[#allocation2 + $0x81] sm:$0xff] %vm1101, %v2957
        %2988 = vst.msk [vmem:[#allocation2 + $0x89] sm:$0x7f] %vm1295, %v2958
        %2989 = vst.msk [vmem:[#allocation2 + $0x91] sm:$0xff] %vm1101, %v2959
        %2990 = vst.msk [vmem:[#allocation2 + $0x99] sm:$0x7f] %vm1295, %v2960
        %2991 = vst.msk [vmem:[#allocation2 + $0xa1] sm:$0xff] %vm1101, %v2961
        %2992 = vst.msk [vmem:[#allocation2 + $0xa9] sm:$0x7f] %vm1295, %v2962
        %2993 = vst.msk [vmem:[#allocation2 + $0xb1] sm:$0xff] %vm1101, %v2963
        %2994 = vst.msk [vmem:[#allocation2 + $0xb9] sm:$0x7f] %vm1295, %v2964
        %2995 = vst.msk [vmem:[#allocation2 + $0xc1] sm:$0xff] %vm1101, %v2965
        %2996 = vst.msk [vmem:[#allocation2 + $0xc9] sm:$0x7f] %vm1295, %v2966
        %2997 = vst.msk [vmem:[#allocation2 + $0xd1] sm:$0xff] %vm1101, %v2967
        %2998 = vst.msk [vmem:[#allocation2 + $0xd9] sm:$0x7f] %vm1295, %v2968
        %2999 = vst.msk [vmem:[#allocation2 + $0xe1] sm:$0xff] %vm1101, %v2969
        %3000 = vst.msk [vmem:[#allocation2 + $0xe9] sm:$0x7f] %vm1295, %v2970
        %v3001 = vld [vmem:[#allocation2 + $0x1] sm:$0xff]
        %v3002 = vld [vmem:[#allocation2 + $0x9] sm:$0x7f]
        %v3003 = vld [vmem:[#allocation2 + $0x11] sm:$0xff]
        %v3004 = vld [vmem:[#allocation2 + $0x19] sm:$0x7f]
        %v3005 = vld [vmem:[#allocation2 + $0x21] sm:$0xff]
        %v3006 = vld [vmem:[#allocation2 + $0x29] sm:$0x7f]
        %v3007 = vld [vmem:[#allocation2 + $0x31] sm:$0xff]
        %v3008 = vld [vmem:[#allocation2 + $0x39] sm:$0x7f]
        %v3009 = vld [vmem:[#allocation2 + $0x41] sm:$0xff]
        %v3010 = vld [vmem:[#allocation2 + $0x49] sm:$0x7f]
        %v3011 = vld [vmem:[#allocation2 + $0x51] sm:$0xff]
        %v3012 = vld [vmem:[#allocation2 + $0x59] sm:$0x7f]
        %v3013 = vld [vmem:[#allocation2 + $0x61] sm:$0xff]
        %v3014 = vld [vmem:[#allocation2 + $0x69] sm:$0x7f]
        %v3015 = vld [vmem:[#allocation2 + $0x71] sm:$0xff]
        %v3016 = vld [vmem:[#allocation2 + $0x79] sm:$0x7f]
        %v3017 = vld [vmem:[#allocation2 + $0x81] sm:$0xff]
        %v3018 = vld [vmem:[#allocation2 + $0x89] sm:$0x7f]
        %v3019 = vld [vmem:[#allocation2 + $0x91] sm:$0xff]
        %v3020 = vld [vmem:[#allocation2 + $0x99] sm:$0x7f]
        %v3021 = vld [vmem:[#allocation2 + $0xa1] sm:$0xff]
        %v3022 = vld [vmem:[#allocation2 + $0xa9] sm:$0x7f]
        %v3023 = vld [vmem:[#allocation2 + $0xb1] sm:$0xff]
        %v3024 = vld [vmem:[#allocation2 + $0xb9] sm:$0x7f]
        %v3025 = vld [vmem:[#allocation2 + $0xc1] sm:$0xff]
        %v3026 = vld [vmem:[#allocation2 + $0xc9] sm:$0x7f]
        %v3027 = vld [vmem:[#allocation2 + $0xd1] sm:$0xff]
        %v3028 = vld [vmem:[#allocation2 + $0xd9] sm:$0x7f]
        %v3029 = vld [vmem:[#allocation2 + $0xe1] sm:$0xff]
        %v3030 = vld [vmem:[#allocation2 + $0xe9] sm:$0x7f]
        %v3031 = vld [vmem:[#allocation2 + $0xf1] sm:$0xff]
        %v3032 = vld [vmem:[#allocation2 + $0xf9] sm:$0x7f]
        %3033 = vrot.lane.b32.xlu0 %v941, 40
        %v3034 = vpop.permute.xlu0 %3033
        %3035 = vrot.lane.b32.xlu0 %v942, 40
        %v3036 = vpop.permute.xlu0 %3035
        %3037 = vrot.lane.b32.xlu0 %v943, 40
        %v3038 = vpop.permute.xlu0 %3037
        %3039 = vrot.lane.b32.xlu0 %v944, 40
        %v3040 = vpop.permute.xlu0 %3039
        %3041 = vrot.lane.b32.xlu0 %v945, 40
        %v3042 = vpop.permute.xlu0 %3041
        %3043 = vrot.lane.b32.xlu0 %v946, 40
        %v3044 = vpop.permute.xlu0 %3043
        %3045 = vrot.lane.b32.xlu0 %v947, 40
        %v3046 = vpop.permute.xlu0 %3045
        %3047 = vrot.lane.b32.xlu0 %v948, 40
        %v3048 = vpop.permute.xlu0 %3047
        %3049 = vrot.lane.b32.xlu0 %v949, 40
        %v3050 = vpop.permute.xlu0 %3049
        %3051 = vrot.lane.b32.xlu0 %v950, 40
        %v3052 = vpop.permute.xlu0 %3051
        %3053 = vrot.lane.b32.xlu0 %v951, 40
        %v3054 = vpop.permute.xlu0 %3053
        %3055 = vrot.lane.b32.xlu0 %v952, 40
        %v3056 = vpop.permute.xlu0 %3055
        %3057 = vrot.lane.b32.xlu0 %v953, 40
        %v3058 = vpop.permute.xlu0 %3057
        %3059 = vrot.lane.b32.xlu0 %v954, 40
        %v3060 = vpop.permute.xlu0 %3059
        %3061 = vrot.lane.b32.xlu0 %v955, 40
        %v3062 = vpop.permute.xlu0 %3061
        %3063 = vrot.lane.b32.xlu0 %v956, 40
        %v3064 = vpop.permute.xlu0 %3063
        %3065 = vrot.lane.b32.xlu0 %v957, 40
        %v3066 = vpop.permute.xlu0 %3065
        %3067 = vrot.lane.b32.xlu0 %v958, 40
        %v3068 = vpop.permute.xlu0 %3067
        %3069 = vrot.lane.b32.xlu0 %v959, 40
        %v3070 = vpop.permute.xlu0 %3069
        %3071 = vrot.lane.b32.xlu0 %v960, 40
        %v3072 = vpop.permute.xlu0 %3071
        %3073 = vrot.lane.b32.xlu0 %v961, 40
        %v3074 = vpop.permute.xlu0 %3073
        %3075 = vrot.lane.b32.xlu0 %v962, 40
        %v3076 = vpop.permute.xlu0 %3075
        %3077 = vrot.lane.b32.xlu0 %v963, 40
        %v3078 = vpop.permute.xlu0 %3077
        %3079 = vrot.lane.b32.xlu0 %v964, 40
        %v3080 = vpop.permute.xlu0 %3079
        %3081 = vrot.lane.b32.xlu0 %v965, 40
        %v3082 = vpop.permute.xlu0 %3081
        %3083 = vrot.lane.b32.xlu0 %v966, 40
        %v3084 = vpop.permute.xlu0 %3083
        %3085 = vrot.lane.b32.xlu0 %v967, 40
        %v3086 = vpop.permute.xlu0 %3085
        %3087 = vrot.lane.b32.xlu0 %v968, 40
        %v3088 = vpop.permute.xlu0 %3087
        %3089 = vrot.lane.b32.xlu0 %v969, 40
        %v3090 = vpop.permute.xlu0 %3089
        %3091 = vrot.lane.b32.xlu0 %v970, 40
        %v3092 = vpop.permute.xlu0 %3091
        %3093 = vrot.lane.b32.xlu0 %v971, 40
        %v3094 = vpop.permute.xlu0 %3093
        %3095 = vrot.lane.b32.xlu0 %v972, 40
        %v3096 = vpop.permute.xlu0 %3095
        %v3129 = vadd.f32 %v3001, %v3034
        %v3130 = vadd.f32 %v3002, %v3036
        %v3131 = vadd.f32 %v3003, %v3038
        %v3132 = vadd.f32 %v3004, %v3040
        %v3133 = vadd.f32 %v3005, %v3042
        %v3134 = vadd.f32 %v3006, %v3044
        %v3135 = vadd.f32 %v3007, %v3046
        %v3136 = vadd.f32 %v3008, %v3048
        %v3137 = vadd.f32 %v3009, %v3050
        %v3138 = vadd.f32 %v3010, %v3052
        %v3139 = vadd.f32 %v3011, %v3054
        %v3140 = vadd.f32 %v3012, %v3056
        %v3141 = vadd.f32 %v3013, %v3058
        %v3142 = vadd.f32 %v3014, %v3060
        %v3143 = vadd.f32 %v3015, %v3062
        %v3144 = vadd.f32 %v3016, %v3064
        %v3145 = vadd.f32 %v3017, %v3066
        %v3146 = vadd.f32 %v3018, %v3068
        %v3147 = vadd.f32 %v3019, %v3070
        %v3148 = vadd.f32 %v3020, %v3072
        %v3149 = vadd.f32 %v3021, %v3074
        %v3150 = vadd.f32 %v3022, %v3076
        %v3151 = vadd.f32 %v3023, %v3078
        %v3152 = vadd.f32 %v3024, %v3080
        %v3153 = vadd.f32 %v3025, %v3082
        %v3154 = vadd.f32 %v3026, %v3084
        %v3155 = vadd.f32 %v3027, %v3086
        %v3156 = vadd.f32 %v3028, %v3088
        %v3157 = vadd.f32 %v3029, %v3090
        %v3158 = vadd.f32 %v3030, %v3092
        %v3159 = vadd.f32 %v3031, %v3094
        %v3160 = vadd.f32 %v3032, %v3096
        %3161 = vst.msk [vmem:[#allocation2 + $0x1] sm:$0xff] %vm1101, %v3129
        %3162 = vst.msk [vmem:[#allocation2 + $0x9] sm:$0x7f] %vm1295, %v3130
        %3163 = vst.msk [vmem:[#allocation2 + $0x11] sm:$0xff] %vm1101, %v3131
        %3164 = vst.msk [vmem:[#allocation2 + $0x19] sm:$0x7f] %vm1295, %v3132
        %3165 = vst.msk [vmem:[#allocation2 + $0x21] sm:$0xff] %vm1101, %v3133
        %3166 = vst.msk [vmem:[#allocation2 + $0x29] sm:$0x7f] %vm1295, %v3134
        %3167 = vst.msk [vmem:[#allocation2 + $0x31] sm:$0xff] %vm1101, %v3135
        %3168 = vst.msk [vmem:[#allocation2 + $0x39] sm:$0x7f] %vm1295, %v3136
        %3169 = vst.msk [vmem:[#allocation2 + $0x41] sm:$0xff] %vm1101, %v3137
        %3170 = vst.msk [vmem:[#allocation2 + $0x49] sm:$0x7f] %vm1295, %v3138
        %3171 = vst.msk [vmem:[#allocation2 + $0x51] sm:$0xff] %vm1101, %v3139
        %3172 = vst.msk [vmem:[#allocation2 + $0x59] sm:$0x7f] %vm1295, %v3140
        %3173 = vst.msk [vmem:[#allocation2 + $0x61] sm:$0xff] %vm1101, %v3141
        %3174 = vst.msk [vmem:[#allocation2 + $0x69] sm:$0x7f] %vm1295, %v3142
        %3175 = vst.msk [vmem:[#allocation2 + $0x71] sm:$0xff] %vm1101, %v3143
        %3176 = vst.msk [vmem:[#allocation2 + $0x79] sm:$0x7f] %vm1295, %v3144
        %3177 = vst.msk [vmem:[#allocation2 + $0x81] sm:$0xff] %vm1101, %v3145
        %3178 = vst.msk [vmem:[#allocation2 + $0x89] sm:$0x7f] %vm1295, %v3146
        %3179 = vst.msk [vmem:[#allocation2 + $0x91] sm:$0xff] %vm1101, %v3147
        %3180 = vst.msk [vmem:[#allocation2 + $0x99] sm:$0x7f] %vm1295, %v3148
        %3181 = vst.msk [vmem:[#allocation2 + $0xa1] sm:$0xff] %vm1101, %v3149
        %3182 = vst.msk [vmem:[#allocation2 + $0xa9] sm:$0x7f] %vm1295, %v3150
        %3183 = vst.msk [vmem:[#allocation2 + $0xb1] sm:$0xff] %vm1101, %v3151
        %3184 = vst.msk [vmem:[#allocation2 + $0xb9] sm:$0x7f] %vm1295, %v3152
        %3185 = vst.msk [vmem:[#allocation2 + $0xc1] sm:$0xff] %vm1101, %v3153
        %3186 = vst.msk [vmem:[#allocation2 + $0xc9] sm:$0x7f] %vm1295, %v3154
        %3187 = vst.msk [vmem:[#allocation2 + $0xd1] sm:$0xff] %vm1101, %v3155
        %3188 = vst.msk [vmem:[#allocation2 + $0xd9] sm:$0x7f] %vm1295, %v3156
        %3189 = vst.msk [vmem:[#allocation2 + $0xe1] sm:$0xff] %vm1101, %v3157
        %3190 = vst.msk [vmem:[#allocation2 + $0xe9] sm:$0x7f] %vm1295, %v3158
        %3191 = vst.msk [vmem:[#allocation2 + $0xf1] sm:$0xff] %vm1101, %v3159
        %3192 = vst.msk [vmem:[#allocation2 + $0xf9] sm:$0x7f] %vm1295, %v3160
        %v3193 = vld [vmem:[#allocation2] sm:$0xff]
        %v3194 = vld [vmem:[#allocation2 + $0x8] sm:$0xff]
        %v3195 = vld [vmem:[#allocation2 + $0x10] sm:$0xff]
        %v3196 = vld [vmem:[#allocation2 + $0x18] sm:$0xff]
        %v3197 = vld [vmem:[#allocation2 + $0x20] sm:$0xff]
        %v3198 = vld [vmem:[#allocation2 + $0x28] sm:$0xff]
        %v3199 = vld [vmem:[#allocation2 + $0x30] sm:$0xff]
        %v3200 = vld [vmem:[#allocation2 + $0x38] sm:$0xff]
        %v3201 = vld [vmem:[#allocation2 + $0x40] sm:$0xff]
        %v3202 = vld [vmem:[#allocation2 + $0x48] sm:$0xff]
        %v3203 = vld [vmem:[#allocation2 + $0x50] sm:$0xff]
        %v3204 = vld [vmem:[#allocation2 + $0x58] sm:$0xff]
        %v3205 = vld [vmem:[#allocation2 + $0x60] sm:$0xff]
        %v3206 = vld [vmem:[#allocation2 + $0x68] sm:$0xff]
        %v3207 = vld [vmem:[#allocation2 + $0x70] sm:$0xff]
        %v3208 = vld [vmem:[#allocation2 + $0x78] sm:$0xff]
        %v3209 = vld [vmem:[#allocation2 + $0x80] sm:$0xff]
        %v3210 = vld [vmem:[#allocation2 + $0x88] sm:$0xff]
        %v3211 = vld [vmem:[#allocation2 + $0x90] sm:$0xff]
        %v3212 = vld [vmem:[#allocation2 + $0x98] sm:$0xff]
        %v3213 = vld [vmem:[#allocation2 + $0xa0] sm:$0xff]
        %v3214 = vld [vmem:[#allocation2 + $0xa8] sm:$0xff]
        %v3215 = vld [vmem:[#allocation2 + $0xb0] sm:$0xff]
        %v3216 = vld [vmem:[#allocation2 + $0xb8] sm:$0xff]
        %v3217 = vld [vmem:[#allocation2 + $0xc0] sm:$0xff]
        %v3218 = vld [vmem:[#allocation2 + $0xc8] sm:$0xff]
        %v3219 = vld [vmem:[#allocation2 + $0xd0] sm:$0xff]
        %v3220 = vld [vmem:[#allocation2 + $0xd8] sm:$0xff]
        %v3221 = vld [vmem:[#allocation2 + $0xe0] sm:$0xff]
        %v3222 = vld [vmem:[#allocation2 + $0xe8] sm:$0xff]
        %v3223 = vld [vmem:[#allocation2 + $0xf0] sm:$0xff]
        %v3224 = vld [vmem:[#allocation2 + $0xf8] sm:$0xff]
        %v3225 = vmax.f32 %v2481, %v3193
        %v3226 = vmax.f32 %v2482, %v3194
        %v3227 = vmax.f32 %v2483, %v3195
        %v3228 = vmax.f32 %v2484, %v3196
        %v3229 = vmax.f32 %v2485, %v3197
        %v3230 = vmax.f32 %v2486, %v3198
        %v3231 = vmax.f32 %v2487, %v3199
        %v3232 = vmax.f32 %v2488, %v3200
        %v3233 = vmax.f32 %v2489, %v3201
        %v3234 = vmax.f32 %v2490, %v3202
        %v3235 = vmax.f32 %v2491, %v3203
        %v3236 = vmax.f32 %v2492, %v3204
        %v3237 = vmax.f32 %v2493, %v3205
        %v3238 = vmax.f32 %v2494, %v3206
        %v3239 = vmax.f32 %v2495, %v3207
        %v3240 = vmax.f32 %v2496, %v3208
        %v3241 = vmax.f32 %v2497, %v3209
        %v3242 = vmax.f32 %v2498, %v3210
        %v3243 = vmax.f32 %v2499, %v3211
        %v3244 = vmax.f32 %v2500, %v3212
        %v3245 = vmax.f32 %v2501, %v3213
        %v3246 = vmax.f32 %v2502, %v3214
        %v3247 = vmax.f32 %v2503, %v3215
        %v3248 = vmax.f32 %v2504, %v3216
        %v3249 = vmax.f32 %v2505, %v3217
        %v3250 = vmax.f32 %v2506, %v3218
        %v3251 = vmax.f32 %v2507, %v3219
        %v3252 = vmax.f32 %v2508, %v3220
        %v3253 = vmax.f32 %v2509, %v3221
        %v3254 = vmax.f32 %v2510, %v3222
        %v3255 = vmax.f32 %v2511, %v3223
        %v3256 = vmax.f32 %v2512, %v3224
        %3257 = vrot.lane.b32.xlu0 %v941, 48
        %v3258 = vpop.permute.xlu0 %3257
        %3259 = vrot.lane.b32.xlu0 %v942, 48
        %v3260 = vpop.permute.xlu0 %3259
        %3261 = vrot.lane.b32.xlu0 %v943, 48
        %v3262 = vpop.permute.xlu0 %3261
        %3263 = vrot.lane.b32.xlu0 %v944, 48
        %v3264 = vpop.permute.xlu0 %3263
        %3265 = vrot.lane.b32.xlu0 %v945, 48
        %v3266 = vpop.permute.xlu0 %3265
        %3267 = vrot.lane.b32.xlu0 %v946, 48
        %v3268 = vpop.permute.xlu0 %3267
        %3269 = vrot.lane.b32.xlu0 %v947, 48
        %v3270 = vpop.permute.xlu0 %3269
        %3271 = vrot.lane.b32.xlu0 %v948, 48
        %v3272 = vpop.permute.xlu0 %3271
        %3273 = vrot.lane.b32.xlu0 %v949, 48
        %v3274 = vpop.permute.xlu0 %3273
        %3275 = vrot.lane.b32.xlu0 %v950, 48
        %v3276 = vpop.permute.xlu0 %3275
        %3277 = vrot.lane.b32.xlu0 %v951, 48
        %v3278 = vpop.permute.xlu0 %3277
        %3279 = vrot.lane.b32.xlu0 %v952, 48
        %v3280 = vpop.permute.xlu0 %3279
        %3281 = vrot.lane.b32.xlu0 %v953, 48
        %v3282 = vpop.permute.xlu0 %3281
        %3283 = vrot.lane.b32.xlu0 %v954, 48
        %v3284 = vpop.permute.xlu0 %3283
        %3285 = vrot.lane.b32.xlu0 %v955, 48
        %v3286 = vpop.permute.xlu0 %3285
        %3287 = vrot.lane.b32.xlu0 %v956, 48
        %v3288 = vpop.permute.xlu0 %3287
        %3289 = vrot.lane.b32.xlu0 %v957, 48
        %v3290 = vpop.permute.xlu0 %3289
        %3291 = vrot.lane.b32.xlu0 %v958, 48
        %v3292 = vpop.permute.xlu0 %3291
        %3293 = vrot.lane.b32.xlu0 %v959, 48
        %v3294 = vpop.permute.xlu0 %3293
        %3295 = vrot.lane.b32.xlu0 %v960, 48
        %v3296 = vpop.permute.xlu0 %3295
        %3297 = vrot.lane.b32.xlu0 %v961, 48
        %v3298 = vpop.permute.xlu0 %3297
        %3299 = vrot.lane.b32.xlu0 %v962, 48
        %v3300 = vpop.permute.xlu0 %3299
        %3301 = vrot.lane.b32.xlu0 %v963, 48
        %v3302 = vpop.permute.xlu0 %3301
        %3303 = vrot.lane.b32.xlu0 %v964, 48
        %v3304 = vpop.permute.xlu0 %3303
        %3305 = vrot.lane.b32.xlu0 %v965, 48
        %v3306 = vpop.permute.xlu0 %3305
        %3307 = vrot.lane.b32.xlu0 %v966, 48
        %v3308 = vpop.permute.xlu0 %3307
        %3309 = vrot.lane.b32.xlu0 %v967, 48
        %v3310 = vpop.permute.xlu0 %3309
        %3311 = vrot.lane.b32.xlu0 %v968, 48
        %v3312 = vpop.permute.xlu0 %3311
        %3313 = vrot.lane.b32.xlu0 %v969, 48
        %v3314 = vpop.permute.xlu0 %3313
        %3315 = vrot.lane.b32.xlu0 %v970, 48
        %v3316 = vpop.permute.xlu0 %3315
        %3317 = vrot.lane.b32.xlu0 %v971, 48
        %v3318 = vpop.permute.xlu0 %3317
        %3319 = vrot.lane.b32.xlu0 %v972, 48
        %v3320 = vpop.permute.xlu0 %3319
        %3353 = vst.msk [vmem:[#allocation2] sm:$0xff] %vm1101, %v3258
        %3354 = vst.msk [vmem:[#allocation2 + $0x8] sm:$0xff] %vm1101, %v3260
        %3355 = vst.msk [vmem:[#allocation2 + $0x10] sm:$0xff] %vm1101, %v3262
        %3356 = vst.msk [vmem:[#allocation2 + $0x18] sm:$0xff] %vm1101, %v3264
        %3357 = vst.msk [vmem:[#allocation2 + $0x20] sm:$0xff] %vm1101, %v3266
        %3358 = vst.msk [vmem:[#allocation2 + $0x28] sm:$0xff] %vm1101, %v3268
        %3359 = vst.msk [vmem:[#allocation2 + $0x30] sm:$0xff] %vm1101, %v3270
        %3360 = vst.msk [vmem:[#allocation2 + $0x38] sm:$0xff] %vm1101, %v3272
        %3361 = vst.msk [vmem:[#allocation2 + $0x40] sm:$0xff] %vm1101, %v3274
        %3362 = vst.msk [vmem:[#allocation2 + $0x48] sm:$0xff] %vm1101, %v3276
        %3363 = vst.msk [vmem:[#allocation2 + $0x50] sm:$0xff] %vm1101, %v3278
        %3364 = vst.msk [vmem:[#allocation2 + $0x58] sm:$0xff] %vm1101, %v3280
        %3365 = vst.msk [vmem:[#allocation2 + $0x60] sm:$0xff] %vm1101, %v3282
        %3366 = vst.msk [vmem:[#allocation2 + $0x68] sm:$0xff] %vm1101, %v3284
        %3367 = vst.msk [vmem:[#allocation2 + $0x70] sm:$0xff] %vm1101, %v3286
        %3368 = vst.msk [vmem:[#allocation2 + $0x78] sm:$0xff] %vm1101, %v3288
        %3369 = vst.msk [vmem:[#allocation2 + $0x80] sm:$0xff] %vm1101, %v3290
        %3370 = vst.msk [vmem:[#allocation2 + $0x88] sm:$0xff] %vm1101, %v3292
        %3371 = vst.msk [vmem:[#allocation2 + $0x90] sm:$0xff] %vm1101, %v3294
        %3372 = vst.msk [vmem:[#allocation2 + $0x98] sm:$0xff] %vm1101, %v3296
        %3373 = vst.msk [vmem:[#allocation2 + $0xa0] sm:$0xff] %vm1101, %v3298
        %3374 = vst.msk [vmem:[#allocation2 + $0xa8] sm:$0xff] %vm1101, %v3300
        %3375 = vst.msk [vmem:[#allocation2 + $0xb0] sm:$0xff] %vm1101, %v3302
        %3376 = vst.msk [vmem:[#allocation2 + $0xb8] sm:$0xff] %vm1101, %v3304
        %3377 = vst.msk [vmem:[#allocation2 + $0xc0] sm:$0xff] %vm1101, %v3306
        %3378 = vst.msk [vmem:[#allocation2 + $0xc8] sm:$0xff] %vm1101, %v3308
        %3379 = vst.msk [vmem:[#allocation2 + $0xd0] sm:$0xff] %vm1101, %v3310
        %3380 = vst.msk [vmem:[#allocation2 + $0xd8] sm:$0xff] %vm1101, %v3312
        %3381 = vst.msk [vmem:[#allocation2 + $0xe0] sm:$0xff] %vm1101, %v3314
        %3382 = vst.msk [vmem:[#allocation2 + $0xe8] sm:$0xff] %vm1101, %v3316
        %3383 = vst.msk [vmem:[#allocation2 + $0xf0] sm:$0xff] %vm1101, %v3318
        %3384 = vst.msk [vmem:[#allocation2 + $0xf8] sm:$0xff] %vm1101, %v3320
        %v3385 = vld [vmem:[#allocation2] sm:$0xff]
        %v3386 = vld [vmem:[#allocation2 + $0x8] sm:$0x7f]
        %v3387 = vld [vmem:[#allocation2 + $0x10] sm:$0xff]
        %v3388 = vld [vmem:[#allocation2 + $0x18] sm:$0x7f]
        %v3389 = vld [vmem:[#allocation2 + $0x20] sm:$0xff]
        %v3390 = vld [vmem:[#allocation2 + $0x28] sm:$0x7f]
        %v3391 = vld [vmem:[#allocation2 + $0x30] sm:$0xff]
        %v3392 = vld [vmem:[#allocation2 + $0x38] sm:$0x7f]
        %v3393 = vld [vmem:[#allocation2 + $0x40] sm:$0xff]
        %v3394 = vld [vmem:[#allocation2 + $0x48] sm:$0x7f]
        %v3395 = vld [vmem:[#allocation2 + $0x50] sm:$0xff]
        %v3396 = vld [vmem:[#allocation2 + $0x58] sm:$0x7f]
        %v3397 = vld [vmem:[#allocation2 + $0x60] sm:$0xff]
        %v3398 = vld [vmem:[#allocation2 + $0x68] sm:$0x7f]
        %v3399 = vld [vmem:[#allocation2 + $0x70] sm:$0xff]
        %v3400 = vld [vmem:[#allocation2 + $0x78] sm:$0x7f]
        %v3401 = vld [vmem:[#allocation2 + $0x80] sm:$0xff]
        %v3402 = vld [vmem:[#allocation2 + $0x88] sm:$0x7f]
        %v3403 = vld [vmem:[#allocation2 + $0x90] sm:$0xff]
        %v3404 = vld [vmem:[#allocation2 + $0x98] sm:$0x7f]
        %v3405 = vld [vmem:[#allocation2 + $0xa0] sm:$0xff]
        %v3406 = vld [vmem:[#allocation2 + $0xa8] sm:$0x7f]
        %v3407 = vld [vmem:[#allocation2 + $0xb0] sm:$0xff]
        %v3408 = vld [vmem:[#allocation2 + $0xb8] sm:$0x7f]
        %v3409 = vld [vmem:[#allocation2 + $0xc0] sm:$0xff]
        %v3410 = vld [vmem:[#allocation2 + $0xc8] sm:$0x7f]
        %v3411 = vld [vmem:[#allocation2 + $0xd0] sm:$0xff]
        %v3412 = vld [vmem:[#allocation2 + $0xd8] sm:$0x7f]
        %v3413 = vld [vmem:[#allocation2 + $0xe0] sm:$0xff]
        %v3414 = vld [vmem:[#allocation2 + $0xe8] sm:$0x7f]
        %v3445 = vadd.f32 %v3385, %v1886
        %v3446 = vadd.f32 %v3386, %v1885
        %v3447 = vadd.f32 %v3387, %v1889
        %v3448 = vadd.f32 %v3388, %v1888
        %v3449 = vadd.f32 %v3389, %v1892
        %v3450 = vadd.f32 %v3390, %v1891
        %v3451 = vadd.f32 %v3391, %v1895
        %v3452 = vadd.f32 %v3392, %v1894
        %v3453 = vadd.f32 %v3393, %v1898
        %v3454 = vadd.f32 %v3394, %v1897
        %v3455 = vadd.f32 %v3395, %v1901
        %v3456 = vadd.f32 %v3396, %v1900
        %v3457 = vadd.f32 %v3397, %v1904
        %v3458 = vadd.f32 %v3398, %v1903
        %v3459 = vadd.f32 %v3399, %v1907
        %v3460 = vadd.f32 %v3400, %v1906
        %v3461 = vadd.f32 %v3401, %v1910
        %v3462 = vadd.f32 %v3402, %v1909
        %v3463 = vadd.f32 %v3403, %v1913
        %v3464 = vadd.f32 %v3404, %v1912
        %v3465 = vadd.f32 %v3405, %v1916
        %v3466 = vadd.f32 %v3406, %v1915
        %v3467 = vadd.f32 %v3407, %v1919
        %v3468 = vadd.f32 %v3408, %v1918
        %v3469 = vadd.f32 %v3409, %v1922
        %v3470 = vadd.f32 %v3410, %v1921
        %v3471 = vadd.f32 %v3411, %v1925
        %v3472 = vadd.f32 %v3412, %v1924
        %v3473 = vadd.f32 %v3413, %v1928
        %v3474 = vadd.f32 %v3414, %v1927
        %3475 = vst.msk [vmem:[#allocation2] sm:$0xff] %vm1101, %v3445
        %3476 = vst.msk [vmem:[#allocation2 + $0x8] sm:$0x7f] %vm1295, %v3446
        %3477 = vst.msk [vmem:[#allocation2 + $0x10] sm:$0xff] %vm1101, %v3447
        %3478 = vst.msk [vmem:[#allocation2 + $0x18] sm:$0x7f] %vm1295, %v3448
        %3479 = vst.msk [vmem:[#allocation2 + $0x20] sm:$0xff] %vm1101, %v3449
        %3480 = vst.msk [vmem:[#allocation2 + $0x28] sm:$0x7f] %vm1295, %v3450
        %3481 = vst.msk [vmem:[#allocation2 + $0x30] sm:$0xff] %vm1101, %v3451
        %3482 = vst.msk [vmem:[#allocation2 + $0x38] sm:$0x7f] %vm1295, %v3452
        %3483 = vst.msk [vmem:[#allocation2 + $0x40] sm:$0xff] %vm1101, %v3453
        %3484 = vst.msk [vmem:[#allocation2 + $0x48] sm:$0x7f] %vm1295, %v3454
        %3485 = vst.msk [vmem:[#allocation2 + $0x50] sm:$0xff] %vm1101, %v3455
        %3486 = vst.msk [vmem:[#allocation2 + $0x58] sm:$0x7f] %vm1295, %v3456
        %3487 = vst.msk [vmem:[#allocation2 + $0x60] sm:$0xff] %vm1101, %v3457
        %3488 = vst.msk [vmem:[#allocation2 + $0x68] sm:$0x7f] %vm1295, %v3458
        %3489 = vst.msk [vmem:[#allocation2 + $0x70] sm:$0xff] %vm1101, %v3459
        %3490 = vst.msk [vmem:[#allocation2 + $0x78] sm:$0x7f] %vm1295, %v3460
        %3491 = vst.msk [vmem:[#allocation2 + $0x80] sm:$0xff] %vm1101, %v3461
        %3492 = vst.msk [vmem:[#allocation2 + $0x88] sm:$0x7f] %vm1295, %v3462
        %3493 = vst.msk [vmem:[#allocation2 + $0x90] sm:$0xff] %vm1101, %v3463
        %3494 = vst.msk [vmem:[#allocation2 + $0x98] sm:$0x7f] %vm1295, %v3464
        %3495 = vst.msk [vmem:[#allocation2 + $0xa0] sm:$0xff] %vm1101, %v3465
        %3496 = vst.msk [vmem:[#allocation2 + $0xa8] sm:$0x7f] %vm1295, %v3466
        %3497 = vst.msk [vmem:[#allocation2 + $0xb0] sm:$0xff] %vm1101, %v3467
        %3498 = vst.msk [vmem:[#allocation2 + $0xb8] sm:$0x7f] %vm1295, %v3468
        %3499 = vst.msk [vmem:[#allocation2 + $0xc0] sm:$0xff] %vm1101, %v3469
        %3500 = vst.msk [vmem:[#allocation2 + $0xc8] sm:$0x7f] %vm1295, %v3470
        %3501 = vst.msk [vmem:[#allocation2 + $0xd0] sm:$0xff] %vm1101, %v3471
        %3502 = vst.msk [vmem:[#allocation2 + $0xd8] sm:$0x7f] %vm1295, %v3472
        %3503 = vst.msk [vmem:[#allocation2 + $0xe0] sm:$0xff] %vm1101, %v3473
        %3504 = vst.msk [vmem:[#allocation2 + $0xe8] sm:$0x7f] %vm1295, %v3474
        %v3505 = vld [vmem:[#allocation2] sm:$0xff]
        %v3506 = vld [vmem:[#allocation2 + $0x8] sm:$0xff]
        %v3507 = vld [vmem:[#allocation2 + $0x10] sm:$0xff]
        %v3508 = vld [vmem:[#allocation2 + $0x18] sm:$0xff]
        %v3509 = vld [vmem:[#allocation2 + $0x20] sm:$0xff]
        %v3510 = vld [vmem:[#allocation2 + $0x28] sm:$0xff]
        %v3511 = vld [vmem:[#allocation2 + $0x30] sm:$0xff]
        %v3512 = vld [vmem:[#allocation2 + $0x38] sm:$0xff]
        %v3513 = vld [vmem:[#allocation2 + $0x40] sm:$0xff]
        %v3514 = vld [vmem:[#allocation2 + $0x48] sm:$0xff]
        %v3515 = vld [vmem:[#allocation2 + $0x50] sm:$0xff]
        %v3516 = vld [vmem:[#allocation2 + $0x58] sm:$0xff]
        %v3517 = vld [vmem:[#allocation2 + $0x60] sm:$0xff]
        %v3518 = vld [vmem:[#allocation2 + $0x68] sm:$0xff]
        %v3519 = vld [vmem:[#allocation2 + $0x70] sm:$0xff]
        %v3520 = vld [vmem:[#allocation2 + $0x78] sm:$0xff]
        %v3521 = vld [vmem:[#allocation2 + $0x80] sm:$0xff]
        %v3522 = vld [vmem:[#allocation2 + $0x88] sm:$0xff]
        %v3523 = vld [vmem:[#allocation2 + $0x90] sm:$0xff]
        %v3524 = vld [vmem:[#allocation2 + $0x98] sm:$0xff]
        %v3525 = vld [vmem:[#allocation2 + $0xa0] sm:$0xff]
        %v3526 = vld [vmem:[#allocation2 + $0xa8] sm:$0xff]
        %v3527 = vld [vmem:[#allocation2 + $0xb0] sm:$0xff]
        %v3528 = vld [vmem:[#allocation2 + $0xb8] sm:$0xff]
        %v3529 = vld [vmem:[#allocation2 + $0xc0] sm:$0xff]
        %v3530 = vld [vmem:[#allocation2 + $0xc8] sm:$0xff]
        %v3531 = vld [vmem:[#allocation2 + $0xd0] sm:$0xff]
        %v3532 = vld [vmem:[#allocation2 + $0xd8] sm:$0xff]
        %v3533 = vld [vmem:[#allocation2 + $0xe0] sm:$0xff]
        %v3534 = vld [vmem:[#allocation2 + $0xe8] sm:$0xff]
        %3535 = vrot.lane.b32.xlu0 %v943, 112
        %v3536 = vpop.permute.xlu0 %3535
        %3537 = vrot.lane.b32.xlu0 %v944, 112
        %v3538 = vpop.permute.xlu0 %3537
        %3539 = vrot.lane.b32.xlu0 %v945, 112
        %v3540 = vpop.permute.xlu0 %3539
        %3541 = vrot.lane.b32.xlu0 %v946, 112
        %v3542 = vpop.permute.xlu0 %3541
        %3543 = vrot.lane.b32.xlu0 %v947, 112
        %v3544 = vpop.permute.xlu0 %3543
        %3545 = vrot.lane.b32.xlu0 %v948, 112
        %v3546 = vpop.permute.xlu0 %3545
        %3547 = vrot.lane.b32.xlu0 %v949, 112
        %v3548 = vpop.permute.xlu0 %3547
        %3549 = vrot.lane.b32.xlu0 %v950, 112
        %v3550 = vpop.permute.xlu0 %3549
        %3551 = vrot.lane.b32.xlu0 %v951, 112
        %v3552 = vpop.permute.xlu0 %3551
        %3553 = vrot.lane.b32.xlu0 %v952, 112
        %v3554 = vpop.permute.xlu0 %3553
        %3555 = vrot.lane.b32.xlu0 %v953, 112
        %v3556 = vpop.permute.xlu0 %3555
        %3557 = vrot.lane.b32.xlu0 %v954, 112
        %v3558 = vpop.permute.xlu0 %3557
        %3559 = vrot.lane.b32.xlu0 %v955, 112
        %v3560 = vpop.permute.xlu0 %3559
        %3561 = vrot.lane.b32.xlu0 %v956, 112
        %v3562 = vpop.permute.xlu0 %3561
        %3563 = vrot.lane.b32.xlu0 %v957, 112
        %v3564 = vpop.permute.xlu0 %3563
        %3565 = vrot.lane.b32.xlu0 %v958, 112
        %v3566 = vpop.permute.xlu0 %3565
        %3567 = vrot.lane.b32.xlu0 %v959, 112
        %v3568 = vpop.permute.xlu0 %3567
        %3569 = vrot.lane.b32.xlu0 %v960, 112
        %v3570 = vpop.permute.xlu0 %3569
        %3571 = vrot.lane.b32.xlu0 %v961, 112
        %v3572 = vpop.permute.xlu0 %3571
        %3573 = vrot.lane.b32.xlu0 %v962, 112
        %v3574 = vpop.permute.xlu0 %3573
        %3575 = vrot.lane.b32.xlu0 %v963, 112
        %v3576 = vpop.permute.xlu0 %3575
        %3577 = vrot.lane.b32.xlu0 %v964, 112
        %v3578 = vpop.permute.xlu0 %3577
        %3579 = vrot.lane.b32.xlu0 %v965, 112
        %v3580 = vpop.permute.xlu0 %3579
        %3581 = vrot.lane.b32.xlu0 %v966, 112
        %v3582 = vpop.permute.xlu0 %3581
        %3583 = vrot.lane.b32.xlu0 %v967, 112
        %v3584 = vpop.permute.xlu0 %3583
        %3585 = vrot.lane.b32.xlu0 %v968, 112
        %v3586 = vpop.permute.xlu0 %3585
        %3587 = vrot.lane.b32.xlu0 %v969, 112
        %v3588 = vpop.permute.xlu0 %3587
        %3589 = vrot.lane.b32.xlu0 %v970, 112
        %v3590 = vpop.permute.xlu0 %3589
        %3591 = vrot.lane.b32.xlu0 %v971, 112
        %v3592 = vpop.permute.xlu0 %3591
        %3593 = vrot.lane.b32.xlu0 %v972, 112
        %v3594 = vpop.permute.xlu0 %3593
        %v3625 = vadd.f32 %v3505, %v3536
        %v3626 = vadd.f32 %v3506, %v3538
        %v3627 = vadd.f32 %v3507, %v3540
        %v3628 = vadd.f32 %v3508, %v3542
        %v3629 = vadd.f32 %v3509, %v3544
        %v3630 = vadd.f32 %v3510, %v3546
        %v3631 = vadd.f32 %v3511, %v3548
        %v3632 = vadd.f32 %v3512, %v3550
        %v3633 = vadd.f32 %v3513, %v3552
        %v3634 = vadd.f32 %v3514, %v3554
        %v3635 = vadd.f32 %v3515, %v3556
        %v3636 = vadd.f32 %v3516, %v3558
        %v3637 = vadd.f32 %v3517, %v3560
        %v3638 = vadd.f32 %v3518, %v3562
        %v3639 = vadd.f32 %v3519, %v3564
        %v3640 = vadd.f32 %v3520, %v3566
        %v3641 = vadd.f32 %v3521, %v3568
        %v3642 = vadd.f32 %v3522, %v3570
        %v3643 = vadd.f32 %v3523, %v3572
        %v3644 = vadd.f32 %v3524, %v3574
        %v3645 = vadd.f32 %v3525, %v3576
        %v3646 = vadd.f32 %v3526, %v3578
        %v3647 = vadd.f32 %v3527, %v3580
        %v3648 = vadd.f32 %v3528, %v3582
        %v3649 = vadd.f32 %v3529, %v3584
        %v3650 = vadd.f32 %v3530, %v3586
        %v3651 = vadd.f32 %v3531, %v3588
        %v3652 = vadd.f32 %v3532, %v3590
        %v3653 = vadd.f32 %v3533, %v3592
        %v3654 = vadd.f32 %v3534, %v3594
        %3655 = vst.msk [vmem:[#allocation2] sm:$0xff] %vm1101, %v3625
        %3656 = vst.msk [vmem:[#allocation2 + $0x8] sm:$0xff] %vm1101, %v3626
        %3657 = vst.msk [vmem:[#allocation2 + $0x10] sm:$0xff] %vm1101, %v3627
        %3658 = vst.msk [vmem:[#allocation2 + $0x18] sm:$0xff] %vm1101, %v3628
        %3659 = vst.msk [vmem:[#allocation2 + $0x20] sm:$0xff] %vm1101, %v3629
        %3660 = vst.msk [vmem:[#allocation2 + $0x28] sm:$0xff] %vm1101, %v3630
        %3661 = vst.msk [vmem:[#allocation2 + $0x30] sm:$0xff] %vm1101, %v3631
        %3662 = vst.msk [vmem:[#allocation2 + $0x38] sm:$0xff] %vm1101, %v3632
        %3663 = vst.msk [vmem:[#allocation2 + $0x40] sm:$0xff] %vm1101, %v3633
        %3664 = vst.msk [vmem:[#allocation2 + $0x48] sm:$0xff] %vm1101, %v3634
        %3665 = vst.msk [vmem:[#allocation2 + $0x50] sm:$0xff] %vm1101, %v3635
        %3666 = vst.msk [vmem:[#allocation2 + $0x58] sm:$0xff] %vm1101, %v3636
        %3667 = vst.msk [vmem:[#allocation2 + $0x60] sm:$0xff] %vm1101, %v3637
        %3668 = vst.msk [vmem:[#allocation2 + $0x68] sm:$0xff] %vm1101, %v3638
        %3669 = vst.msk [vmem:[#allocation2 + $0x70] sm:$0xff] %vm1101, %v3639
        %3670 = vst.msk [vmem:[#allocation2 + $0x78] sm:$0xff] %vm1101, %v3640
        %3671 = vst.msk [vmem:[#allocation2 + $0x80] sm:$0xff] %vm1101, %v3641
        %3672 = vst.msk [vmem:[#allocation2 + $0x88] sm:$0xff] %vm1101, %v3642
        %3673 = vst.msk [vmem:[#allocation2 + $0x90] sm:$0xff] %vm1101, %v3643
        %3674 = vst.msk [vmem:[#allocation2 + $0x98] sm:$0xff] %vm1101, %v3644
        %3675 = vst.msk [vmem:[#allocation2 + $0xa0] sm:$0xff] %vm1101, %v3645
        %3676 = vst.msk [vmem:[#allocation2 + $0xa8] sm:$0xff] %vm1101, %v3646
        %3677 = vst.msk [vmem:[#allocation2 + $0xb0] sm:$0xff] %vm1101, %v3647
        %3678 = vst.msk [vmem:[#allocation2 + $0xb8] sm:$0xff] %vm1101, %v3648
        %3679 = vst.msk [vmem:[#allocation2 + $0xc0] sm:$0xff] %vm1101, %v3649
        %3680 = vst.msk [vmem:[#allocation2 + $0xc8] sm:$0xff] %vm1101, %v3650
        %3681 = vst.msk [vmem:[#allocation2 + $0xd0] sm:$0xff] %vm1101, %v3651
        %3682 = vst.msk [vmem:[#allocation2 + $0xd8] sm:$0xff] %vm1101, %v3652
        %3683 = vst.msk [vmem:[#allocation2 + $0xe0] sm:$0xff] %vm1101, %v3653
        %3684 = vst.msk [vmem:[#allocation2 + $0xe8] sm:$0xff] %vm1101, %v3654
        %v3685 = vld [vmem:[#allocation2] sm:$0xff]
        %v3686 = vld [vmem:[#allocation2 + $0x8] sm:$0x7f]
        %v3687 = vld [vmem:[#allocation2 + $0x10] sm:$0xff]
        %v3688 = vld [vmem:[#allocation2 + $0x18] sm:$0x7f]
        %v3689 = vld [vmem:[#allocation2 + $0x20] sm:$0xff]
        %v3690 = vld [vmem:[#allocation2 + $0x28] sm:$0x7f]
        %v3691 = vld [vmem:[#allocation2 + $0x30] sm:$0xff]
        %v3692 = vld [vmem:[#allocation2 + $0x38] sm:$0x7f]
        %v3693 = vld [vmem:[#allocation2 + $0x40] sm:$0xff]
        %v3694 = vld [vmem:[#allocation2 + $0x48] sm:$0x7f]
        %v3695 = vld [vmem:[#allocation2 + $0x50] sm:$0xff]
        %v3696 = vld [vmem:[#allocation2 + $0x58] sm:$0x7f]
        %v3697 = vld [vmem:[#allocation2 + $0x60] sm:$0xff]
        %v3698 = vld [vmem:[#allocation2 + $0x68] sm:$0x7f]
        %v3699 = vld [vmem:[#allocation2 + $0x70] sm:$0xff]
        %v3700 = vld [vmem:[#allocation2 + $0x78] sm:$0x7f]
        %v3701 = vld [vmem:[#allocation2 + $0x80] sm:$0xff]
        %v3702 = vld [vmem:[#allocation2 + $0x88] sm:$0x7f]
        %v3703 = vld [vmem:[#allocation2 + $0x90] sm:$0xff]
        %v3704 = vld [vmem:[#allocation2 + $0x98] sm:$0x7f]
        %v3705 = vld [vmem:[#allocation2 + $0xa0] sm:$0xff]
        %v3706 = vld [vmem:[#allocation2 + $0xa8] sm:$0x7f]
        %v3707 = vld [vmem:[#allocation2 + $0xb0] sm:$0xff]
        %v3708 = vld [vmem:[#allocation2 + $0xb8] sm:$0x7f]
        %v3709 = vld [vmem:[#allocation2 + $0xc0] sm:$0xff]
        %v3710 = vld [vmem:[#allocation2 + $0xc8] sm:$0x7f]
        %v3711 = vld [vmem:[#allocation2 + $0xd0] sm:$0xff]
        %v3712 = vld [vmem:[#allocation2 + $0xd8] sm:$0x7f]
        %v3713 = vld [vmem:[#allocation2 + $0xe0] sm:$0xff]
        %v3714 = vld [vmem:[#allocation2 + $0xe8] sm:$0x7f]
        %v3715 = vld [vmem:[#allocation2 + $0xf0] sm:$0xff]
        %v3716 = vld [vmem:[#allocation2 + $0xf8] sm:$0x7f]
        %3717 = vrot.lane.b32.xlu0 %v1883, 64
        %v3718 = vpop.permute.xlu0 %3717
        %3719 = vrot.lane.b32.xlu0 %v1882, 64
        %v3720 = vpop.permute.xlu0 %3719
        %3721 = vrot.lane.b32.xlu0 %v1886, 64
        %v3722 = vpop.permute.xlu0 %3721
        %3723 = vrot.lane.b32.xlu0 %v1885, 64
        %v3724 = vpop.permute.xlu0 %3723
        %3725 = vrot.lane.b32.xlu0 %v1889, 64
        %v3726 = vpop.permute.xlu0 %3725
        %3727 = vrot.lane.b32.xlu0 %v1888, 64
        %v3728 = vpop.permute.xlu0 %3727
        %3729 = vrot.lane.b32.xlu0 %v1892, 64
        %v3730 = vpop.permute.xlu0 %3729
        %3731 = vrot.lane.b32.xlu0 %v1891, 64
        %v3732 = vpop.permute.xlu0 %3731
        %3733 = vrot.lane.b32.xlu0 %v1895, 64
        %v3734 = vpop.permute.xlu0 %3733
        %3735 = vrot.lane.b32.xlu0 %v1894, 64
        %v3736 = vpop.permute.xlu0 %3735
        %3737 = vrot.lane.b32.xlu0 %v1898, 64
        %v3738 = vpop.permute.xlu0 %3737
        %3739 = vrot.lane.b32.xlu0 %v1897, 64
        %v3740 = vpop.permute.xlu0 %3739
        %3741 = vrot.lane.b32.xlu0 %v1901, 64
        %v3742 = vpop.permute.xlu0 %3741
        %3743 = vrot.lane.b32.xlu0 %v1900, 64
        %v3744 = vpop.permute.xlu0 %3743
        %3745 = vrot.lane.b32.xlu0 %v1904, 64
        %v3746 = vpop.permute.xlu0 %3745
        %3747 = vrot.lane.b32.xlu0 %v1903, 64
        %v3748 = vpop.permute.xlu0 %3747
        %3749 = vrot.lane.b32.xlu0 %v1907, 64
        %v3750 = vpop.permute.xlu0 %3749
        %3751 = vrot.lane.b32.xlu0 %v1906, 64
        %v3752 = vpop.permute.xlu0 %3751
        %3753 = vrot.lane.b32.xlu0 %v1910, 64
        %v3754 = vpop.permute.xlu0 %3753
        %3755 = vrot.lane.b32.xlu0 %v1909, 64
        %v3756 = vpop.permute.xlu0 %3755
        %3757 = vrot.lane.b32.xlu0 %v1913, 64
        %v3758 = vpop.permute.xlu0 %3757
        %3759 = vrot.lane.b32.xlu0 %v1912, 64
        %v3760 = vpop.permute.xlu0 %3759
        %3761 = vrot.lane.b32.xlu0 %v1916, 64
        %v3762 = vpop.permute.xlu0 %3761
        %3763 = vrot.lane.b32.xlu0 %v1915, 64
        %v3764 = vpop.permute.xlu0 %3763
        %3765 = vrot.lane.b32.xlu0 %v1919, 64
        %v3766 = vpop.permute.xlu0 %3765
        %3767 = vrot.lane.b32.xlu0 %v1918, 64
        %v3768 = vpop.permute.xlu0 %3767
        %3769 = vrot.lane.b32.xlu0 %v1922, 64
        %v3770 = vpop.permute.xlu0 %3769
        %3771 = vrot.lane.b32.xlu0 %v1921, 64
        %v3772 = vpop.permute.xlu0 %3771
        %3773 = vrot.lane.b32.xlu0 %v1925, 64
        %v3774 = vpop.permute.xlu0 %3773
        %3775 = vrot.lane.b32.xlu0 %v1924, 64
        %v3776 = vpop.permute.xlu0 %3775
        %3777 = vrot.lane.b32.xlu0 %v1928, 64
        %v3778 = vpop.permute.xlu0 %3777
        %3779 = vrot.lane.b32.xlu0 %v1927, 64
        %v3780 = vpop.permute.xlu0 %3779
        %v3813 = vadd.f32 %v3685, %v3718
        %v3814 = vadd.f32 %v3686, %v3720
        %v3815 = vadd.f32 %v3687, %v3722
        %v3816 = vadd.f32 %v3688, %v3724
        %v3817 = vadd.f32 %v3689, %v3726
        %v3818 = vadd.f32 %v3690, %v3728
        %v3819 = vadd.f32 %v3691, %v3730
        %v3820 = vadd.f32 %v3692, %v3732
        %v3821 = vadd.f32 %v3693, %v3734
        %v3822 = vadd.f32 %v3694, %v3736
        %v3823 = vadd.f32 %v3695, %v3738
        %v3824 = vadd.f32 %v3696, %v3740
        %v3825 = vadd.f32 %v3697, %v3742
        %v3826 = vadd.f32 %v3698, %v3744
        %v3827 = vadd.f32 %v3699, %v3746
        %v3828 = vadd.f32 %v3700, %v3748
        %v3829 = vadd.f32 %v3701, %v3750
        %v3830 = vadd.f32 %v3702, %v3752
        %v3831 = vadd.f32 %v3703, %v3754
        %v3832 = vadd.f32 %v3704, %v3756
        %v3833 = vadd.f32 %v3705, %v3758
        %v3834 = vadd.f32 %v3706, %v3760
        %v3835 = vadd.f32 %v3707, %v3762
        %v3836 = vadd.f32 %v3708, %v3764
        %v3837 = vadd.f32 %v3709, %v3766
        %v3838 = vadd.f32 %v3710, %v3768
        %v3839 = vadd.f32 %v3711, %v3770
        %v3840 = vadd.f32 %v3712, %v3772
        %v3841 = vadd.f32 %v3713, %v3774
        %v3842 = vadd.f32 %v3714, %v3776
        %v3843 = vadd.f32 %v3715, %v3778
        %v3844 = vadd.f32 %v3716, %v3780
        %3845 = vst.msk [vmem:[#allocation2] sm:$0xff] %vm1101, %v3813
        %3846 = vst.msk [vmem:[#allocation2 + $0x8] sm:$0x7f] %vm1295, %v3814
        %3847 = vst.msk [vmem:[#allocation2 + $0x10] sm:$0xff] %vm1101, %v3815
        %3848 = vst.msk [vmem:[#allocation2 + $0x18] sm:$0x7f] %vm1295, %v3816
        %3849 = vst.msk [vmem:[#allocation2 + $0x20] sm:$0xff] %vm1101, %v3817
        %3850 = vst.msk [vmem:[#allocation2 + $0x28] sm:$0x7f] %vm1295, %v3818
        %3851 = vst.msk [vmem:[#allocation2 + $0x30] sm:$0xff] %vm1101, %v3819
        %3852 = vst.msk [vmem:[#allocation2 + $0x38] sm:$0x7f] %vm1295, %v3820
        %3853 = vst.msk [vmem:[#allocation2 + $0x40] sm:$0xff] %vm1101, %v3821
        %3854 = vst.msk [vmem:[#allocation2 + $0x48] sm:$0x7f] %vm1295, %v3822
        %3855 = vst.msk [vmem:[#allocation2 + $0x50] sm:$0xff] %vm1101, %v3823
        %3856 = vst.msk [vmem:[#allocation2 + $0x58] sm:$0x7f] %vm1295, %v3824
        %3857 = vst.msk [vmem:[#allocation2 + $0x60] sm:$0xff] %vm1101, %v3825
        %3858 = vst.msk [vmem:[#allocation2 + $0x68] sm:$0x7f] %vm1295, %v3826
        %3859 = vst.msk [vmem:[#allocation2 + $0x70] sm:$0xff] %vm1101, %v3827
        %3860 = vst.msk [vmem:[#allocation2 + $0x78] sm:$0x7f] %vm1295, %v3828
        %3861 = vst.msk [vmem:[#allocation2 + $0x80] sm:$0xff] %vm1101, %v3829
        %3862 = vst.msk [vmem:[#allocation2 + $0x88] sm:$0x7f] %vm1295, %v3830
        %3863 = vst.msk [vmem:[#allocation2 + $0x90] sm:$0xff] %vm1101, %v3831
        %3864 = vst.msk [vmem:[#allocation2 + $0x98] sm:$0x7f] %vm1295, %v3832
        %3865 = vst.msk [vmem:[#allocation2 + $0xa0] sm:$0xff] %vm1101, %v3833
        %3866 = vst.msk [vmem:[#allocation2 + $0xa8] sm:$0x7f] %vm1295, %v3834
        %3867 = vst.msk [vmem:[#allocation2 + $0xb0] sm:$0xff] %vm1101, %v3835
        %3868 = vst.msk [vmem:[#allocation2 + $0xb8] sm:$0x7f] %vm1295, %v3836
        %3869 = vst.msk [vmem:[#allocation2 + $0xc0] sm:$0xff] %vm1101, %v3837
        %3870 = vst.msk [vmem:[#allocation2 + $0xc8] sm:$0x7f] %vm1295, %v3838
        %3871 = vst.msk [vmem:[#allocation2 + $0xd0] sm:$0xff] %vm1101, %v3839
        %3872 = vst.msk [vmem:[#allocation2 + $0xd8] sm:$0x7f] %vm1295, %v3840
        %3873 = vst.msk [vmem:[#allocation2 + $0xe0] sm:$0xff] %vm1101, %v3841
        %3874 = vst.msk [vmem:[#allocation2 + $0xe8] sm:$0x7f] %vm1295, %v3842
        %3875 = vst.msk [vmem:[#allocation2 + $0xf0] sm:$0xff] %vm1101, %v3843
        %3876 = vst.msk [vmem:[#allocation2 + $0xf8] sm:$0x7f] %vm1295, %v3844
        %v3877 = vld [vmem:[#allocation2] sm:$0xff]
        %v3878 = vld [vmem:[#allocation2 + $0x8] sm:$0xff]
        %v3879 = vld [vmem:[#allocation2 + $0x10] sm:$0xff]
        %v3880 = vld [vmem:[#allocation2 + $0x18] sm:$0xff]
        %v3881 = vld [vmem:[#allocation2 + $0x20] sm:$0xff]
        %v3882 = vld [vmem:[#allocation2 + $0x28] sm:$0xff]
        %v3883 = vld [vmem:[#allocation2 + $0x30] sm:$0xff]
        %v3884 = vld [vmem:[#allocation2 + $0x38] sm:$0xff]
        %v3885 = vld [vmem:[#allocation2 + $0x40] sm:$0xff]
        %v3886 = vld [vmem:[#allocation2 + $0x48] sm:$0xff]
        %v3887 = vld [vmem:[#allocation2 + $0x50] sm:$0xff]
        %v3888 = vld [vmem:[#allocation2 + $0x58] sm:$0xff]
        %v3889 = vld [vmem:[#allocation2 + $0x60] sm:$0xff]
        %v3890 = vld [vmem:[#allocation2 + $0x68] sm:$0xff]
        %v3891 = vld [vmem:[#allocation2 + $0x70] sm:$0xff]
        %v3892 = vld [vmem:[#allocation2 + $0x78] sm:$0xff]
        %v3893 = vld [vmem:[#allocation2 + $0x80] sm:$0xff]
        %v3894 = vld [vmem:[#allocation2 + $0x88] sm:$0xff]
        %v3895 = vld [vmem:[#allocation2 + $0x90] sm:$0xff]
        %v3896 = vld [vmem:[#allocation2 + $0x98] sm:$0xff]
        %v3897 = vld [vmem:[#allocation2 + $0xa0] sm:$0xff]
        %v3898 = vld [vmem:[#allocation2 + $0xa8] sm:$0xff]
        %v3899 = vld [vmem:[#allocation2 + $0xb0] sm:$0xff]
        %v3900 = vld [vmem:[#allocation2 + $0xb8] sm:$0xff]
        %v3901 = vld [vmem:[#allocation2 + $0xc0] sm:$0xff]
        %v3902 = vld [vmem:[#allocation2 + $0xc8] sm:$0xff]
        %v3903 = vld [vmem:[#allocation2 + $0xd0] sm:$0xff]
        %v3904 = vld [vmem:[#allocation2 + $0xd8] sm:$0xff]
        %v3905 = vld [vmem:[#allocation2 + $0xe0] sm:$0xff]
        %v3906 = vld [vmem:[#allocation2 + $0xe8] sm:$0xff]
        %v3907 = vld [vmem:[#allocation2 + $0xf0] sm:$0xff]
        %v3908 = vld [vmem:[#allocation2 + $0xf8] sm:$0xff]
        %v3909 = vmax.f32 %v3225, %v3877
        %v3910 = vmax.f32 %v3226, %v3878
        %v3911 = vmax.f32 %v3227, %v3879
        %v3912 = vmax.f32 %v3228, %v3880
        %v3913 = vmax.f32 %v3229, %v3881
        %v3914 = vmax.f32 %v3230, %v3882
        %v3915 = vmax.f32 %v3231, %v3883
        %v3916 = vmax.f32 %v3232, %v3884
        %v3917 = vmax.f32 %v3233, %v3885
        %v3918 = vmax.f32 %v3234, %v3886
        %v3919 = vmax.f32 %v3235, %v3887
        %v3920 = vmax.f32 %v3236, %v3888
        %v3921 = vmax.f32 %v3237, %v3889
        %v3922 = vmax.f32 %v3238, %v3890
        %v3923 = vmax.f32 %v3239, %v3891
        %v3924 = vmax.f32 %v3240, %v3892
        %v3925 = vmax.f32 %v3241, %v3893
        %v3926 = vmax.f32 %v3242, %v3894
        %v3927 = vmax.f32 %v3243, %v3895
        %v3928 = vmax.f32 %v3244, %v3896
        %v3929 = vmax.f32 %v3245, %v3897
        %v3930 = vmax.f32 %v3246, %v3898
        %v3931 = vmax.f32 %v3247, %v3899
        %v3932 = vmax.f32 %v3248, %v3900
        %v3933 = vmax.f32 %v3249, %v3901
        %v3934 = vmax.f32 %v3250, %v3902
        %v3935 = vmax.f32 %v3251, %v3903
        %v3936 = vmax.f32 %v3252, %v3904
        %v3937 = vmax.f32 %v3253, %v3905
        %v3938 = vmax.f32 %v3254, %v3906
        %v3939 = vmax.f32 %v3255, %v3907
        %v3940 = vmax.f32 %v3256, %v3908
        %v3941 = vld [vmem:[%s2] sm:$0x1]
        %v3943 = vperm.slane %v3941, 0
        %v3945 = vadd.f32 %v3909, %v3943
        %v3946 = vadd.f32 %v3910, %v3943
        %v3947 = vadd.f32 %v3911, %v3943
        %v3948 = vadd.f32 %v3912, %v3943
        %v3949 = vadd.f32 %v3913, %v3943
        %v3950 = vadd.f32 %v3914, %v3943
        %v3951 = vadd.f32 %v3915, %v3943
        %v3952 = vadd.f32 %v3916, %v3943
        %v3953 = vadd.f32 %v3917, %v3943
        %v3954 = vadd.f32 %v3918, %v3943
        %v3955 = vadd.f32 %v3919, %v3943
        %v3956 = vadd.f32 %v3920, %v3943
        %v3957 = vadd.f32 %v3921, %v3943
        %v3958 = vadd.f32 %v3922, %v3943
        %v3959 = vadd.f32 %v3923, %v3943
        %v3960 = vadd.f32 %v3924, %v3943
        %v3961 = vadd.f32 %v3925, %v3943
        %v3962 = vadd.f32 %v3926, %v3943
        %v3963 = vadd.f32 %v3927, %v3943
        %v3964 = vadd.f32 %v3928, %v3943
        %v3965 = vadd.f32 %v3929, %v3943
        %v3966 = vadd.f32 %v3930, %v3943
        %v3967 = vadd.f32 %v3931, %v3943
        %v3968 = vadd.f32 %v3932, %v3943
        %v3969 = vadd.f32 %v3933, %v3943
        %v3970 = vadd.f32 %v3934, %v3943
        %v3971 = vadd.f32 %v3935, %v3943
        %v3972 = vadd.f32 %v3936, %v3943
        %v3973 = vadd.f32 %v3937, %v3943
        %v3974 = vadd.f32 %v3938, %v3943
        %v3975 = vadd.f32 %v3939, %v3943
        %v3976 = vadd.f32 %v3940, %v3943
        %v3977 = vmax.f32 %v3945, -1.0
        %v3978 = vmax.f32 %v3946, -1.0
        %v3979 = vmax.f32 %v3947, -1.0
        %v3980 = vmax.f32 %v3948, -1.0
        %v3981 = vmax.f32 %v3949, -1.0
        %v3982 = vmax.f32 %v3950, -1.0
        %v3983 = vmax.f32 %v3951, -1.0
        %v3984 = vmax.f32 %v3952, -1.0
        %v3985 = vmax.f32 %v3953, -1.0
        %v3986 = vmax.f32 %v3954, -1.0
        %v3987 = vmax.f32 %v3955, -1.0
        %v3988 = vmax.f32 %v3956, -1.0
        %v3989 = vmax.f32 %v3957, -1.0
        %v3990 = vmax.f32 %v3958, -1.0
        %v3991 = vmax.f32 %v3959, -1.0
        %v3992 = vmax.f32 %v3960, -1.0
        %v3993 = vmax.f32 %v3961, -1.0
        %v3994 = vmax.f32 %v3962, -1.0
        %v3995 = vmax.f32 %v3963, -1.0
        %v3996 = vmax.f32 %v3964, -1.0
        %v3997 = vmax.f32 %v3965, -1.0
        %v3998 = vmax.f32 %v3966, -1.0
        %v3999 = vmax.f32 %v3967, -1.0
        %v4000 = vmax.f32 %v3968, -1.0
        %v4001 = vmax.f32 %v3969, -1.0
        %v4002 = vmax.f32 %v3970, -1.0
        %v4003 = vmax.f32 %v3971, -1.0
        %v4004 = vmax.f32 %v3972, -1.0
        %v4005 = vmax.f32 %v3973, -1.0
        %v4006 = vmax.f32 %v3974, -1.0
        %v4007 = vmax.f32 %v3975, -1.0
        %v4008 = vmax.f32 %v3976, -1.0
        %v4009 = vmin.f32 %v3977, 1.0
        %v4010 = vmin.f32 %v3978, 1.0
        %v4011 = vmin.f32 %v3979, 1.0
        %v4012 = vmin.f32 %v3980, 1.0
        %v4013 = vmin.f32 %v3981, 1.0
        %v4014 = vmin.f32 %v3982, 1.0
        %v4015 = vmin.f32 %v3983, 1.0
        %v4016 = vmin.f32 %v3984, 1.0
        %v4017 = vmin.f32 %v3985, 1.0
        %v4018 = vmin.f32 %v3986, 1.0
        %v4019 = vmin.f32 %v3987, 1.0
        %v4020 = vmin.f32 %v3988, 1.0
        %v4021 = vmin.f32 %v3989, 1.0
        %v4022 = vmin.f32 %v3990, 1.0
        %v4023 = vmin.f32 %v3991, 1.0
        %v4024 = vmin.f32 %v3992, 1.0
        %v4025 = vmin.f32 %v3993, 1.0
        %v4026 = vmin.f32 %v3994, 1.0
        %v4027 = vmin.f32 %v3995, 1.0
        %v4028 = vmin.f32 %v3996, 1.0
        %v4029 = vmin.f32 %v3997, 1.0
        %v4030 = vmin.f32 %v3998, 1.0
        %v4031 = vmin.f32 %v3999, 1.0
        %v4032 = vmin.f32 %v4000, 1.0
        %v4033 = vmin.f32 %v4001, 1.0
        %v4034 = vmin.f32 %v4002, 1.0
        %v4035 = vmin.f32 %v4003, 1.0
        %v4036 = vmin.f32 %v4004, 1.0
        %v4037 = vmin.f32 %v4005, 1.0
        %v4038 = vmin.f32 %v4006, 1.0
        %v4039 = vmin.f32 %v4007, 1.0
        %v4040 = vmin.f32 %v4008, 1.0
        %v4041 = vsel %vm1101, %v4009, 0.0
        %v4042 = vsel %vm1101, %v4010, 0.0
        %v4043 = vadd.f32 %v4041, %v4042
        %v4044 = vsel %vm1101, %v4011, 0.0
        %v4045 = vadd.f32 %v4043, %v4044
        %v4046 = vsel %vm1101, %v4012, 0.0
        %v4047 = vadd.f32 %v4045, %v4046
        %v4048 = vsel %vm1101, %v4013, 0.0
        %v4049 = vadd.f32 %v4047, %v4048
        %v4050 = vsel %vm1101, %v4014, 0.0
        %v4051 = vadd.f32 %v4049, %v4050
        %v4052 = vsel %vm1101, %v4015, 0.0
        %v4053 = vadd.f32 %v4051, %v4052
        %v4054 = vsel %vm1101, %v4016, 0.0
        %v4055 = vadd.f32 %v4053, %v4054
        %v4056 = vsel %vm1101, %v4017, 0.0
        %v4057 = vadd.f32 %v4055, %v4056
        %v4058 = vsel %vm1101, %v4018, 0.0
        %v4059 = vadd.f32 %v4057, %v4058
        %v4060 = vsel %vm1101, %v4019, 0.0
        %v4061 = vadd.f32 %v4059, %v4060
        %v4062 = vsel %vm1101, %v4020, 0.0
        %v4063 = vadd.f32 %v4061, %v4062
        %v4064 = vsel %vm1101, %v4021, 0.0
        %v4065 = vadd.f32 %v4063, %v4064
        %v4066 = vsel %vm1101, %v4022, 0.0
        %v4067 = vadd.f32 %v4065, %v4066
        %v4068 = vsel %vm1101, %v4023, 0.0
        %v4069 = vadd.f32 %v4067, %v4068
        %v4070 = vsel %vm1101, %v4024, 0.0
        %v4071 = vadd.f32 %v4069, %v4070
        %v4072 = vsel %vm1101, %v4025, 0.0
        %v4073 = vadd.f32 %v4071, %v4072
        %v4074 = vsel %vm1101, %v4026, 0.0
        %v4075 = vadd.f32 %v4073, %v4074
        %v4076 = vsel %vm1101, %v4027, 0.0
        %v4077 = vadd.f32 %v4075, %v4076
        %v4078 = vsel %vm1101, %v4028, 0.0
        %v4079 = vadd.f32 %v4077, %v4078
        %v4080 = vsel %vm1101, %v4029, 0.0
        %v4081 = vadd.f32 %v4079, %v4080
        %v4082 = vsel %vm1101, %v4030, 0.0
        %v4083 = vadd.f32 %v4081, %v4082
        %v4084 = vsel %vm1101, %v4031, 0.0
        %v4085 = vadd.f32 %v4083, %v4084
        %v4086 = vsel %vm1101, %v4032, 0.0
        %v4087 = vadd.f32 %v4085, %v4086
        %v4088 = vsel %vm1101, %v4033, 0.0
        %v4089 = vadd.f32 %v4087, %v4088
        %v4090 = vsel %vm1101, %v4034, 0.0
        %v4091 = vadd.f32 %v4089, %v4090
        %v4092 = vsel %vm1101, %v4035, 0.0
        %v4093 = vadd.f32 %v4091, %v4092
        %v4094 = vsel %vm1101, %v4036, 0.0
        %v4095 = vadd.f32 %v4093, %v4094
        %v4096 = vsel %vm1101, %v4037, 0.0
        %v4097 = vadd.f32 %v4095, %v4096
        %v4098 = vsel %vm1101, %v4038, 0.0
        %v4099 = vadd.f32 %v4097, %v4098
        %v4100 = vsel %vm1101, %v4039, 0.0
        %v4101 = vadd.f32 %v4099, %v4100
        %v4102 = vsel %vm1101, %v4040, 0.0
        %v4103 = vadd.f32 %v4101, %v4102
        %v4104 = vrot.slane %v4103, 4
        %v4105 = vadd.f32 %v4103, %v4104
        %v4106 = vrot.slane %v4105, 2
        %v4107 = vadd.f32 %v4105, %v4106
        %v4108 = vrot.slane %v4107, 1
        %v4109 = vadd.f32 %v4107, %v4108
        %v4110 = vmul.f32 %v4109, 0.00390625
        %v4111 = vtanh.pop %v4110
        %vm4112 = vcmask 57344
        %4113 = vst.msk [vmem:[%s162] sm:$0x1] %vm4112, %v4111
        %s4114 = sand.u32 %s93, 1
        %s4115 = scalar_lea.sflag [#allocation4], %s4114
        %s4116 = sand.u32 %s93, 1
        %s4117 = scalar_lea.vmem [#allocation3], %s4116
        // Predicated region
        $region33: #{tpu_custom_call.1} parent=31 // pred_check
          %p4118 = pneg %p103
        $region34: #{tpu_custom_call.1} parent=31 // pred_check_branch
          %4120 = sbr.rel (%p4118) target = $region36
        $region35: #{tpu_custom_call.1} parent=31 // pred_region
          %4122 = vsyncadd %s4115, 0
          %s4123 = scalar_lea.hbm %s3, %s17
          %s4125 = sshll.u32 %s4117, 4
          %s4126 = int_to_ptr.vmem [resolvable:$true] %s4125
          %s4127 = sshll.u32 %s4123, 4
          %s4128 = int_to_ptr.hbm [resolvable:$true] %s4127
          %4130 = dma.vmem_to_hbm [thread:$0]  %s4126, 16, %s4128, %s4115
        $region36: #{tpu_custom_call.1} parent=31 // pred_fallthru
          _
      $region32: #{tpu_custom_call.1} parent=5 // pred_fallthru
        _
      %p4131 = scmp.le.s32.totalorder 2, %s12
      // Predicated region
      $region37: #{tpu_custom_call.1} parent=5 // pred_check
        %p4132 = pneg %p4131
      $region38: #{tpu_custom_call.1} parent=5 // pred_check_branch
        %4134 = sbr.rel (%p4132) target = $region40
      $region39: #{tpu_custom_call.1} parent=5 // pred_region
        %s4135 = ssub.s32 %s12, 2
        // Predicated region
        $region41: #{tpu_custom_call.1} parent=39 // pred_check
          %p4136 = pneg %p109
        $region42: #{tpu_custom_call.1} parent=39 // pred_check_branch
          %4138 = sbr.rel (%p4136) target = $region44
        $region43: #{tpu_custom_call.1} parent=39 // pred_region
          %s4139 = sand.u32 %s94, 1
          %s4140 = scalar_lea.sflag [#allocation4], %s4139
          %s4141 = sand.u32 %s94, 1
          %s4142 = scalar_lea.vmem [#allocation3], %s4141
          %4144 = dma.done %s4140, 16
        $region44: #{tpu_custom_call.1} parent=39 // pred_fallthru
          _
      $region40: #{tpu_custom_call.1} parent=5 // pred_fallthru
        _
    $region6: #{tpu_custom_call.1} parent=1 // loop_footer
      %s16 = sadd.s32 1, %s12
    $region7: #{tpu_custom_call.1} parent=1 // loop_footer_branch
      %11 = sbr.rel target = $region3
    $region8: #{tpu_custom_call.1} parent=1 // loop_exit
      _
    %4145 = vsyncpa [#allocation4], 1
    %s4146 = scalar_lea.sflag [#allocation4], 1
    %4147 = vsyncpa %s4146, 1

</llo_original>
